<compile_context>
chip_gen: v6e
topology: v6e:2x2x1
jax: 0.10.0
libtpu: 0.0.40
codegen_flags: <defaults>
</compile_context>

<pallas_src>
import numpy as np
import jax
import jax.numpy as jnp
from jax.experimental import pallas as pl
from jax.experimental.pallas import tpu as pltpu

_EPS = 1e-5          # torch.nn.LayerNorm default eps
_NC_PAD = 128        # lane-dense padded class dimension
_NEG_BIG = -1e9      # bias for padded (fake) classes -> exp() == 0


# ---------------------------------------------------------------------------
# Host-side (one-time) weight preparation
# ---------------------------------------------------------------------------
def _round_up(x, m):
    return ((x + m - 1) // m) * m


def _conv_toeplitz_taps(w_hwio, width_in):
    """(K,K,Cin,Cout) conv weight -> list of K per-height-tap Toeplitz matrices.

    Tap kh has shape (width_in*Cin, Wo*Cout).  With activations laid out as
    rows of (W*Cin) lanes, `sum_kh row[h+kh] @ tap[kh]` is a stride-1 VALID
    Conv2d output row (lane order of the output is (ox, cout), cout fastest)."""
    w = np.asarray(w_hwio, np.float32)
    k, _, cin, cout = w.shape
    wo = width_in - k + 1
    taps = []
    for kh in range(k):
        m = np.zeros((width_in, cin, wo, cout), np.float32)
        for ox in range(wo):
            m[ox:ox + k, :, ox, :] = w[kh]          # w[kh]: (K, Cin, Cout)
        taps.append(m.reshape(width_in * cin, wo * cout))
    return taps


def _pool_w_matrix(w, c):
    """Width-direction 2x average pool as a (W*C, W/2*C) matrix (0.5 entries)."""
    wo = w // 2
    pw = np.zeros((w * c, wo * c), np.float32)
    eye = 0.5 * np.eye(c, dtype=np.float32)
    for ox in range(wo):
        for dx in range(2):
            r = (2 * ox + dx) * c
            pw[r:r + c, ox * c:ox * c + c] = eye
    return pw


def init_raw_params(n_classes, key):
    """Synthetic LeNet5 weights in standard layouts (conv: KH,KW,Cin,Cout)."""
    ks = jax.random.split(key, 12)

    def rnd(k, shape, scale):
        return (scale * jax.random.normal(k, shape)).astype(jnp.float32)

    return {
        'w1': rnd(ks[0], (5, 5, 1, 6), 0.2),     'b1': rnd(ks[1], (6,), 0.1),
        'w2': rnd(ks[2], (5, 5, 6, 16), 0.08),   'b2': rnd(ks[3], (16,), 0.1),
        'w3': rnd(ks[4], (5, 5, 16, 120), 0.05), 'b3': rnd(ks[5], (120,), 0.1),
        'fc1_w': rnd(ks[6], (120, 84), 0.09),    'fc1_b': rnd(ks[7], (1, 84), 0.1),
        'ln_g': (1.0 + rnd(ks[8], (1, 84), 0.1)).astype(jnp.float32),
        'ln_b': rnd(ks[9], (1, 84), 0.1),
        'fc2_w': rnd(ks[10], (84, n_classes), 0.1),
        'fc2_b': rnd(ks[11], (1, n_classes), 0.1),
    }


def prepare_params(raw):
    """Repack raw weights into the kernel layout.

    * conv weights -> bf16 per-tap Toeplitz matrices; the 2x2 avg-pool matrices
      (incl. the 0.25 scale) that FOLLOW conv1/conv2 are folded into the
      conv2/conv3 Toeplitz taps (pool is linear, so it commutes with the next
      conv's weights; the height half becomes an in-kernel adjacent-row add).
    * conv biases -> tiled along output width (lane order (ox, cout)).
    * fc weights bf16; fc2 padded to 128 classes (zero weights, -1e9 bias).
    * biases / LayerNorm params stay f32.
    """
    b16 = jnp.bfloat16
    m1 = np.stack(_conv_toeplitz_taps(raw['w1'], 32))                  # (5, 32, 168)
    m2_raw = _conv_toeplitz_taps(raw['w2'], 14)                        # 5 x (84, 160)
    m3_raw = _conv_toeplitz_taps(raw['w3'], 5)                         # 5 x (80, 120)
    pw1 = _pool_w_matrix(28, 6)                                        # (168, 84)
    pw2 = _pool_w_matrix(10, 16)                                       # (160, 80)
    # 0.5 = height-pool factor (kernel uses unscaled adjacent-row sums);
    # the other 0.5 lives inside pw1/pw2 (width pool).
    m2 = np.stack([0.5 * (pw1 @ m) for m in m2_raw])                   # (5, 168, 160)
    m3 = np.stack([0.5 * (pw2 @ m) for m in m3_raw])                   # (5, 160, 120)

    b1 = np.tile(np.asarray(raw['b1'], np.float32), 28)[None, :]       # (1, 168)
    b2 = np.tile(np.asarray(raw['b2'], np.float32), 10)[None, :]       # (1, 160)
    b3 = np.asarray(raw['b3'], np.float32)[None, :]                    # (1, 120)

    n_classes = int(np.asarray(raw['fc2_w']).shape[-1])
    assert n_classes <= _NC_PAD
    fc2_w = np.zeros((84, _NC_PAD), np.float32)
    fc2_w[:, :n_classes] = np.asarray(raw['fc2_w'], np.float32)
    fc2_b = np.full((1, _NC_PAD), _NEG_BIG, np.float32)
    fc2_b[0, :n_classes] = np.asarray(raw['fc2_b'], np.float32).reshape(-1)

    return {
        'm1': jnp.asarray(m1, b16), 'b1': jnp.asarray(b1),
        'm2': jnp.asarray(m2, b16), 'b2': jnp.asarray(b2),
        'm3': jnp.asarray(m3, b16), 'b3': jnp.asarray(b3),
        'fc1_w': jnp.asarray(raw['fc1_w'], b16),
        'fc1_b': jnp.asarray(raw['fc1_b'], jnp.float32).reshape(1, -1),
        'ln_g': jnp.asarray(raw['ln_g'], jnp.float32).reshape(1, -1),
        'ln_b': jnp.asarray(raw['ln_b'], jnp.float32).reshape(1, -1),
        'fc2_w': jnp.asarray(fc2_w, b16), 'fc2_b': jnp.asarray(fc2_b),
    }


# ---------------------------------------------------------------------------
# Fused Pallas kernel: whole LeNet5 forward for one batch tile
# ---------------------------------------------------------------------------
def _lenet5_kernel(x_ref,
                   m1_ref, b1_ref, m2_ref, b2_ref, m3_ref, b3_ref,
                   fc1w_ref, fc1b_ref, lng_ref, lnb_ref, fc2w_ref, fc2b_ref,
                   logits_ref, probs_ref):
    f32, bf16 = jnp.float32, jnp.bfloat16
    h0, tb, _ = x_ref.shape            # (32, TB, 32); TB is a multiple of 16
    k = m1_ref.shape[0]                # 5
    n1 = m1_ref.shape[2]               # 168 = 28*6
    n2 = m2_ref.shape[2]               # 160 = 10*16
    h1 = h0 - (k - 1)                  # 28
    hs = h1 - 1                        # 27  adjacent-row sums of a1
    h2 = hs - 2 * (k - 1)              # 19  conv2 evaluated at un-subsampled height

    def mm(lhs, rhs):                  # 2-D bf16 MXU matmul, f32 accumulate
        return jnp.dot(lhs, rhs, preferred_element_type=f32)

    # ---- conv1 + tanh: 5 per-tap Toeplitz matmuls, M = 28*TB ----
    x = x_ref[...]                                               # bf16 (32, TB, 32)
    z1 = mm(x[0:h1].reshape(h1 * tb, -1), m1_ref[0])
    for kh in range(1, k):
        z1 = z1 + mm(x[kh:kh + h1].reshape(h1 * tb, -1), m1_ref[kh])
    a1 = jnp.tanh(z1 + b1_ref[...]).reshape(h1, tb, n1)          # f32 (28, TB, 168)

    # ---- pool1 (height half): adjacent-row sum on the VPU; the width half and
    #      the 0.25 scale are folded into m2 ----
    s1 = (a1[0:hs] + a1[1:hs + 1]).astype(bf16)                  # (27, TB, 168)

    # ---- conv2 + tanh at full (unstrided) height: 19 rows; true conv2 output
    #      rows are the even ones (tanh commutes with row selection) ----
    z2 = mm(s1[0:h2].reshape(h2 * tb, -1), m2_ref[0])
    for kh in range(1, k):
        z2 = z2 + mm(s1[2 * kh:2 * kh + h2].reshape(h2 * tb, -1), m2_ref[kh])
    a2 = jnp.tanh(z2 + b2_ref[...]).reshape(h2, tb, n2)          # f32 (19, TB, 160)

    # ---- pool2 + conv3 + tanh: pooled-height row kh = 0.5*(a2_full[4kh] +
    #      a2_full[4kh+2]); width pool + 0.25 folded into m3 ----
    z3 = mm((a2[0] + a2[2]).astype(bf16), m3_ref[0])
    for kh in range(1, k):
        z3 = z3 + mm((a2[4 * kh] + a2[4 * kh + 2]).astype(bf16), m3_ref[kh])
    a3 = jnp.tanh(z3 + b3_ref[...])                              # f32 (TB, 120) == flatten(x, 1)

    # ---- classifier: Linear -> LayerNorm -> tanh -> Linear -> softmax ----
    h = mm(a3.astype(bf16), fc1w_ref[...]) + fc1b_ref[...]       # (TB, 84)
    mu = jnp.mean(h, axis=-1, keepdims=True)
    var = jnp.mean(jnp.square(h - mu), axis=-1, keepdims=True)
    h = (h - mu) * jax.lax.rsqrt(var + _EPS)
    h = jnp.tanh(h * lng_ref[...] + lnb_ref[...])
    logits = mm(h.astype(bf16), fc2w_ref[...]) + fc2b_ref[...]   # (TB, 128); pad cols = -1e9
    logits_ref[...] = logits

    m = jnp.max(logits, axis=-1, keepdims=True)
    e = jnp.exp(logits - m)                                      # padded cols -> exactly 0
    probs_ref[...] = e / jnp.sum(e, axis=-1, keepdims=True)      # exact normalization


# ---------------------------------------------------------------------------
# Wrapper
# ---------------------------------------------------------------------------
def _pick_tb(batch, tb_max):
    """Batch tile: multiple of 16 (bf16 sublane packing), <= tb_max, and split
    into >=2 grid steps when possible so v7x's two TensorCores both get work."""
    bp = _round_up(batch, 16)
    if bp > tb_max:
        return tb_max                      # several grid steps anyway
    if bp >= 32:
        return _round_up(bp // 2, 16)      # exactly 2 steps
    return bp                              # single small tile


def lenet5_forward(x_nchw, params, n_classes, tb_max=128):
    """NCHW input (B, 1, 32, 32) -> (logits, probs), matching LeNet5.forward."""
    B, C, H, W = x_nchw.shape
    assert C == 1, "LeNet5 expects a single input channel"

    # Layout for the kernel: (H, B, W) bf16 so per-tap slices are along the
    # leading (untiled) dim and matmul M = rows*TB.
    x = jnp.transpose(x_nchw.reshape(B, H, W), (1, 0, 2)).astype(jnp.bfloat16)

    tb = _pick_tb(B, tb_max)
    bp = _round_up(B, tb)
    if bp != B:
        x = jnp.pad(x, ((0, 0), (0, bp - B), (0, 0)))

    weight_order = ('m1', 'b1', 'm2', 'b2', 'm3', 'b3',
                    'fc1_w', 'fc1_b', 'ln_g', 'ln_b', 'fc2_w', 'fc2_b')
    weights = [params[name] for name in weight_order]

    def full_spec(arr):                    # whole array resident in VMEM, revisited
        nd = arr.ndim
        return pl.BlockSpec(arr.shape, lambda b, _nd=nd: (0,) * _nd)

    out_sds = jax.ShapeDtypeStruct((bp, _NC_PAD), jnp.float32)
    out_spec = pl.BlockSpec((tb, _NC_PAD), lambda b: (b, 0))

    logits_p, probs_p = pl.pallas_call(
        _lenet5_kernel,
        out_shape=(out_sds, out_sds),
        grid=(bp // tb,),
        in_specs=[pl.BlockSpec((H, tb, W), lambda b: (0, b, 0))]
                 + [full_spec(w) for w in weights],
        out_specs=(out_spec, out_spec),
        compiler_params=pltpu.CompilerParams(
            dimension_semantics=("parallel",),          # shard batch tiles over TCs
            vmem_limit_bytes=48 * 1024 * 1024),         # fits v5e/v6e/v7x
    )(x, *weights)

    return logits_p[:B, :n_classes], probs_p[:B, :n_classes]


# ---------------------------------------------------------------------------
# Plain-JAX f32 reference (validation only)
# ---------------------------------------------------------------------------
def lenet5_reference(x_nchw, raw):
    x = jnp.transpose(x_nchw, (0, 2, 3, 1)).astype(jnp.float32)

    def conv_tanh(x, w, b):
        y = jax.lax.conv_general_dilated(
            x, w, window_strides=(1, 1), padding='VALID',
            dimension_numbers=('NHWC', 'HWIO', 'NHWC'))
        return jnp.tanh(y + b)

    def pool(x):
        n, h, w, c = x.shape
        return x.reshape(n, h // 2, 2, w // 2, 2, c).mean(axis=(2, 4))

    x = pool(conv_tanh(x, raw['w1'], raw['b1']))
    x = pool(conv_tanh(x, raw['w2'], raw['b2']))
    x = conv_tanh(x, raw['w3'], raw['b3'])
    x = x.reshape(x.shape[0], -1)                       # torch.flatten(x, 1)
    h = x @ raw['fc1_w'] + raw['fc1_b']
    mu = h.mean(axis=-1, keepdims=True)
    var = jnp.mean(jnp.square(h - mu), axis=-1, keepdims=True)
    h = (h - mu) * jax.lax.rsqrt(var + _EPS) * raw['ln_g'] + raw['ln_b']
    h = jnp.tanh(h)
    logits = h @ raw['fc2_w'] + raw['fc2_b']
    return logits, jax.nn.softmax(logits, axis=-1)


if __name__ == "__main__":
    n_classes = 10
    batch = 2
    key = jax.random.PRNGKey(0)
    k_x, k_p = jax.random.split(key)

    # LeNet5 needs 32x32 single-channel input so conv3 yields 120 x 1 x 1.
    x = jax.random.normal(k_x, (batch, 1, 32, 32), dtype=jnp.float32)
    raw = init_raw_params(n_classes, k_p)
    params = prepare_params(raw)

    fwd = jax.jit(lenet5_forward, static_argnames=('n_classes', 'tb_max'))
    logits, probs = fwd(x, params, n_classes=n_classes)
    jax.block_until_ready((logits, probs))

    assert logits.shape == (batch, n_classes)
    assert probs.shape == (batch, n_classes)
    assert bool(jnp.all(jnp.isfinite(logits)))
    # Exact softmax normalization (division, not approx reciprocal).
    assert bool(jnp.allclose(jnp.sum(probs, axis=-1), 1.0, atol=1e-4))

    # Cross-check vs. plain-JAX f32 reference (bf16 MXU operands => small drift).
    ref_logits, ref_probs = lenet5_reference(x, raw)
    assert bool(jnp.allclose(logits, ref_logits, atol=0.2))
    assert bool(jnp.allclose(probs, ref_probs, atol=0.05))
    print("KERNEL_OK")
</pallas_src>

<mosaic_0001>
module attributes {stable_mosaic.version = 11 : i64} {
  func.func @_lenet5_kernel(%arg0: i32, %arg1: memref<32x16x32xbf16, #tpu.memory_space<vmem>>, %arg2: memref<5x32x168xbf16, #tpu.memory_space<vmem>>, %arg3: memref<1x168xf32, #tpu.memory_space<vmem>>, %arg4: memref<5x168x160xbf16, #tpu.memory_space<vmem>>, %arg5: memref<1x160xf32, #tpu.memory_space<vmem>>, %arg6: memref<5x160x120xbf16, #tpu.memory_space<vmem>>, %arg7: memref<1x120xf32, #tpu.memory_space<vmem>>, %arg8: memref<120x84xbf16, #tpu.memory_space<vmem>>, %arg9: memref<1x84xf32, #tpu.memory_space<vmem>>, %arg10: memref<1x84xf32, #tpu.memory_space<vmem>>, %arg11: memref<1x84xf32, #tpu.memory_space<vmem>>, %arg12: memref<84x128xbf16, #tpu.memory_space<vmem>>, %arg13: memref<1x128xf32, #tpu.memory_space<vmem>>, %arg14: memref<16x128xf32, #tpu.memory_space<vmem>>, %arg15: memref<16x128xf32, #tpu.memory_space<vmem>>) attributes {dimension_semantics = [#tpu.dimension_semantics<parallel>], iteration_bounds = array<i64: 1>, scalar_prefetch = 0 : i64, scratch_operands = 0 : i64, tpu.core_type = #tpu.core_type<tc>, window_params = [{transform_indices = @transform_0, window_bounds = array<i64: 32, 16, 32>}, {pipeline_mode = #tpu.pipeline_mode<synchronous>, transform_indices = @transform_1, window_bounds = array<i64: 5, 32, 168>}, {pipeline_mode = #tpu.pipeline_mode<synchronous>, transform_indices = @transform_2, window_bounds = array<i64: 1, 168>}, {pipeline_mode = #tpu.pipeline_mode<synchronous>, transform_indices = @transform_3, window_bounds = array<i64: 5, 168, 160>}, {pipeline_mode = #tpu.pipeline_mode<synchronous>, transform_indices = @transform_4, window_bounds = array<i64: 1, 160>}, {pipeline_mode = #tpu.pipeline_mode<synchronous>, transform_indices = @transform_5, window_bounds = array<i64: 5, 160, 120>}, {pipeline_mode = #tpu.pipeline_mode<synchronous>, transform_indices = @transform_6, window_bounds = array<i64: 1, 120>}, {pipeline_mode = #tpu.pipeline_mode<synchronous>, transform_indices = @transform_7, window_bounds = array<i64: 120, 84>}, {pipeline_mode = #tpu.pipeline_mode<synchronous>, transform_indices = @transform_8, window_bounds = array<i64: 1, 84>}, {pipeline_mode = #tpu.pipeline_mode<synchronous>, transform_indices = @transform_9, window_bounds = array<i64: 1, 84>}, {pipeline_mode = #tpu.pipeline_mode<synchronous>, transform_indices = @transform_10, window_bounds = array<i64: 1, 84>}, {pipeline_mode = #tpu.pipeline_mode<synchronous>, transform_indices = @transform_11, window_bounds = array<i64: 84, 128>}, {pipeline_mode = #tpu.pipeline_mode<synchronous>, transform_indices = @transform_12, window_bounds = array<i64: 1, 128>}, {transform_indices = @transform_13, window_bounds = array<i64: 16, 128>}, {transform_indices = @transform_14, window_bounds = array<i64: 16, 128>}]} {
    %c0 = arith.constant 0 : index
    %c0_0 = arith.constant 0 : index
    %c0_1 = arith.constant 0 : index
    %0 = vector.load %arg1[%c0, %c0_0, %c0_1] : memref<32x16x32xbf16, #tpu.memory_space<vmem>>, vector<32x16x32xbf16>
    %1 = vector.extract_strided_slice %0 {offsets = [0, 0, 0], sizes = [28, 16, 32], strides = [1, 1, 1]} : vector<32x16x32xbf16> to vector<28x16x32xbf16>
    %2 = vector.shape_cast %1 : vector<28x16x32xbf16> to vector<448x32xbf16>
    %c0_2 = arith.constant 0 : index
    %c0_3 = arith.constant 0 : index
    %c0_4 = arith.constant 0 : index
    %3 = vector.load %arg2[%c0_2, %c0_3, %c0_4] : memref<5x32x168xbf16, #tpu.memory_space<vmem>>, vector<1x32x168xbf16>
    %4 = vector.shape_cast %3 : vector<1x32x168xbf16> to vector<32x168xbf16>
    %cst = arith.constant dense<0.000000e+00> : vector<448x168xf32>
    %5 = tpu.matmul %2, %4, %cst {dimension_numbers = #tpu.dot_dimension_numbers<[1], [0], [0], [1], [0, 0, 1, 1], [], []>} : vector<448x32xbf16>, vector<32x168xbf16>, vector<448x168xf32> -> vector<448x168xf32>
    %6 = vector.extract_strided_slice %0 {offsets = [1, 0, 0], sizes = [28, 16, 32], strides = [1, 1, 1]} : vector<32x16x32xbf16> to vector<28x16x32xbf16>
    %7 = vector.shape_cast %6 : vector<28x16x32xbf16> to vector<448x32xbf16>
    %c1 = arith.constant 1 : index
    %c0_5 = arith.constant 0 : index
    %c0_6 = arith.constant 0 : index
    %8 = vector.load %arg2[%c1, %c0_5, %c0_6] : memref<5x32x168xbf16, #tpu.memory_space<vmem>>, vector<1x32x168xbf16>
    %9 = vector.shape_cast %8 : vector<1x32x168xbf16> to vector<32x168xbf16>
    %cst_7 = arith.constant dense<0.000000e+00> : vector<448x168xf32>
    %10 = tpu.matmul %7, %9, %cst_7 {dimension_numbers = #tpu.dot_dimension_numbers<[1], [0], [0], [1], [0, 0, 1, 1], [], []>} : vector<448x32xbf16>, vector<32x168xbf16>, vector<448x168xf32> -> vector<448x168xf32>
    %11 = arith.addf %5, %10 : vector<448x168xf32>
    %12 = vector.extract_strided_slice %0 {offsets = [2, 0, 0], sizes = [28, 16, 32], strides = [1, 1, 1]} : vector<32x16x32xbf16> to vector<28x16x32xbf16>
    %13 = vector.shape_cast %12 : vector<28x16x32xbf16> to vector<448x32xbf16>
    %c2 = arith.constant 2 : index
    %c0_8 = arith.constant 0 : index
    %c0_9 = arith.constant 0 : index
    %14 = vector.load %arg2[%c2, %c0_8, %c0_9] : memref<5x32x168xbf16, #tpu.memory_space<vmem>>, vector<1x32x168xbf16>
    %15 = vector.shape_cast %14 : vector<1x32x168xbf16> to vector<32x168xbf16>
    %cst_10 = arith.constant dense<0.000000e+00> : vector<448x168xf32>
    %16 = tpu.matmul %13, %15, %cst_10 {dimension_numbers = #tpu.dot_dimension_numbers<[1], [0], [0], [1], [0, 0, 1, 1], [], []>} : vector<448x32xbf16>, vector<32x168xbf16>, vector<448x168xf32> -> vector<448x168xf32>
    %17 = arith.addf %11, %16 : vector<448x168xf32>
    %18 = vector.extract_strided_slice %0 {offsets = [3, 0, 0], sizes = [28, 16, 32], strides = [1, 1, 1]} : vector<32x16x32xbf16> to vector<28x16x32xbf16>
    %19 = vector.shape_cast %18 : vector<28x16x32xbf16> to vector<448x32xbf16>
    %c3 = arith.constant 3 : index
    %c0_11 = arith.constant 0 : index
    %c0_12 = arith.constant 0 : index
    %20 = vector.load %arg2[%c3, %c0_11, %c0_12] : memref<5x32x168xbf16, #tpu.memory_space<vmem>>, vector<1x32x168xbf16>
    %21 = vector.shape_cast %20 : vector<1x32x168xbf16> to vector<32x168xbf16>
    %cst_13 = arith.constant dense<0.000000e+00> : vector<448x168xf32>
    %22 = tpu.matmul %19, %21, %cst_13 {dimension_numbers = #tpu.dot_dimension_numbers<[1], [0], [0], [1], [0, 0, 1, 1], [], []>} : vector<448x32xbf16>, vector<32x168xbf16>, vector<448x168xf32> -> vector<448x168xf32>
    %23 = arith.addf %17, %22 : vector<448x168xf32>
    %24 = vector.extract_strided_slice %0 {offsets = [4, 0, 0], sizes = [28, 16, 32], strides = [1, 1, 1]} : vector<32x16x32xbf16> to vector<28x16x32xbf16>
    %25 = vector.shape_cast %24 : vector<28x16x32xbf16> to vector<448x32xbf16>
    %c4 = arith.constant 4 : index
    %c0_14 = arith.constant 0 : index
    %c0_15 = arith.constant 0 : index
    %26 = vector.load %arg2[%c4, %c0_14, %c0_15] : memref<5x32x168xbf16, #tpu.memory_space<vmem>>, vector<1x32x168xbf16>
    %27 = vector.shape_cast %26 : vector<1x32x168xbf16> to vector<32x168xbf16>
    %cst_16 = arith.constant dense<0.000000e+00> : vector<448x168xf32>
    %28 = tpu.matmul %25, %27, %cst_16 {dimension_numbers = #tpu.dot_dimension_numbers<[1], [0], [0], [1], [0, 0, 1, 1], [], []>} : vector<448x32xbf16>, vector<32x168xbf16>, vector<448x168xf32> -> vector<448x168xf32>
    %29 = arith.addf %23, %28 : vector<448x168xf32>
    %c0_17 = arith.constant 0 : index
    %c0_18 = arith.constant 0 : index
    %30 = vector.load %arg3[%c0_17, %c0_18] : memref<1x168xf32, #tpu.memory_space<vmem>>, vector<1x168xf32>
    %31 = vector.broadcast %30 : vector<1x168xf32> to vector<448x168xf32>
    %32 = arith.addf %29, %31 : vector<448x168xf32>
    %33 = math.tanh %32 : vector<448x168xf32>
    %34 = vector.shape_cast %33 : vector<448x168xf32> to vector<28x16x168xf32>
    %35 = vector.extract_strided_slice %34 {offsets = [0, 0, 0], sizes = [27, 16, 168], strides = [1, 1, 1]} : vector<28x16x168xf32> to vector<27x16x168xf32>
    %36 = vector.extract_strided_slice %34 {offsets = [1, 0, 0], sizes = [27, 16, 168], strides = [1, 1, 1]} : vector<28x16x168xf32> to vector<27x16x168xf32>
    %37 = arith.addf %35, %36 : vector<27x16x168xf32>
    %38 = arith.truncf %37 : vector<27x16x168xf32> to vector<27x16x168xbf16>
    %39 = vector.extract_strided_slice %38 {offsets = [0, 0, 0], sizes = [19, 16, 168], strides = [1, 1, 1]} : vector<27x16x168xbf16> to vector<19x16x168xbf16>
    %40 = vector.shape_cast %39 : vector<19x16x168xbf16> to vector<304x168xbf16>
    %c0_19 = arith.constant 0 : index
    %c0_20 = arith.constant 0 : index
    %c0_21 = arith.constant 0 : index
    %41 = vector.load %arg4[%c0_19, %c0_20, %c0_21] : memref<5x168x160xbf16, #tpu.memory_space<vmem>>, vector<1x168x160xbf16>
    %42 = vector.shape_cast %41 : vector<1x168x160xbf16> to vector<168x160xbf16>
    %cst_22 = arith.constant dense<0.000000e+00> : vector<304x160xf32>
    %43 = tpu.matmul %40, %42, %cst_22 {dimension_numbers = #tpu.dot_dimension_numbers<[1], [0], [0], [1], [0, 0, 1, 1], [], []>} : vector<304x168xbf16>, vector<168x160xbf16>, vector<304x160xf32> -> vector<304x160xf32>
    %44 = vector.extract_strided_slice %38 {offsets = [2, 0, 0], sizes = [19, 16, 168], strides = [1, 1, 1]} : vector<27x16x168xbf16> to vector<19x16x168xbf16>
    %45 = vector.shape_cast %44 : vector<19x16x168xbf16> to vector<304x168xbf16>
    %c1_23 = arith.constant 1 : index
    %c0_24 = arith.constant 0 : index
    %c0_25 = arith.constant 0 : index
    %46 = vector.load %arg4[%c1_23, %c0_24, %c0_25] : memref<5x168x160xbf16, #tpu.memory_space<vmem>>, vector<1x168x160xbf16>
    %47 = vector.shape_cast %46 : vector<1x168x160xbf16> to vector<168x160xbf16>
    %cst_26 = arith.constant dense<0.000000e+00> : vector<304x160xf32>
    %48 = tpu.matmul %45, %47, %cst_26 {dimension_numbers = #tpu.dot_dimension_numbers<[1], [0], [0], [1], [0, 0, 1, 1], [], []>} : vector<304x168xbf16>, vector<168x160xbf16>, vector<304x160xf32> -> vector<304x160xf32>
    %49 = arith.addf %43, %48 : vector<304x160xf32>
    %50 = vector.extract_strided_slice %38 {offsets = [4, 0, 0], sizes = [19, 16, 168], strides = [1, 1, 1]} : vector<27x16x168xbf16> to vector<19x16x168xbf16>
    %51 = vector.shape_cast %50 : vector<19x16x168xbf16> to vector<304x168xbf16>
    %c2_27 = arith.constant 2 : index
    %c0_28 = arith.constant 0 : index
    %c0_29 = arith.constant 0 : index
    %52 = vector.load %arg4[%c2_27, %c0_28, %c0_29] : memref<5x168x160xbf16, #tpu.memory_space<vmem>>, vector<1x168x160xbf16>
    %53 = vector.shape_cast %52 : vector<1x168x160xbf16> to vector<168x160xbf16>
    %cst_30 = arith.constant dense<0.000000e+00> : vector<304x160xf32>
    %54 = tpu.matmul %51, %53, %cst_30 {dimension_numbers = #tpu.dot_dimension_numbers<[1], [0], [0], [1], [0, 0, 1, 1], [], []>} : vector<304x168xbf16>, vector<168x160xbf16>, vector<304x160xf32> -> vector<304x160xf32>
    %55 = arith.addf %49, %54 : vector<304x160xf32>
    %56 = vector.extract_strided_slice %38 {offsets = [6, 0, 0], sizes = [19, 16, 168], strides = [1, 1, 1]} : vector<27x16x168xbf16> to vector<19x16x168xbf16>
    %57 = vector.shape_cast %56 : vector<19x16x168xbf16> to vector<304x168xbf16>
    %c3_31 = arith.constant 3 : index
    %c0_32 = arith.constant 0 : index
    %c0_33 = arith.constant 0 : index
    %58 = vector.load %arg4[%c3_31, %c0_32, %c0_33] : memref<5x168x160xbf16, #tpu.memory_space<vmem>>, vector<1x168x160xbf16>
    %59 = vector.shape_cast %58 : vector<1x168x160xbf16> to vector<168x160xbf16>
    %cst_34 = arith.constant dense<0.000000e+00> : vector<304x160xf32>
    %60 = tpu.matmul %57, %59, %cst_34 {dimension_numbers = #tpu.dot_dimension_numbers<[1], [0], [0], [1], [0, 0, 1, 1], [], []>} : vector<304x168xbf16>, vector<168x160xbf16>, vector<304x160xf32> -> vector<304x160xf32>
    %61 = arith.addf %55, %60 : vector<304x160xf32>
    %62 = vector.extract_strided_slice %38 {offsets = [8, 0, 0], sizes = [19, 16, 168], strides = [1, 1, 1]} : vector<27x16x168xbf16> to vector<19x16x168xbf16>
    %63 = vector.shape_cast %62 : vector<19x16x168xbf16> to vector<304x168xbf16>
    %c4_35 = arith.constant 4 : index
    %c0_36 = arith.constant 0 : index
    %c0_37 = arith.constant 0 : index
    %64 = vector.load %arg4[%c4_35, %c0_36, %c0_37] : memref<5x168x160xbf16, #tpu.memory_space<vmem>>, vector<1x168x160xbf16>
    %65 = vector.shape_cast %64 : vector<1x168x160xbf16> to vector<168x160xbf16>
    %cst_38 = arith.constant dense<0.000000e+00> : vector<304x160xf32>
    %66 = tpu.matmul %63, %65, %cst_38 {dimension_numbers = #tpu.dot_dimension_numbers<[1], [0], [0], [1], [0, 0, 1, 1], [], []>} : vector<304x168xbf16>, vector<168x160xbf16>, vector<304x160xf32> -> vector<304x160xf32>
    %67 = arith.addf %61, %66 : vector<304x160xf32>
    %c0_39 = arith.constant 0 : index
    %c0_40 = arith.constant 0 : index
    %68 = vector.load %arg5[%c0_39, %c0_40] : memref<1x160xf32, #tpu.memory_space<vmem>>, vector<1x160xf32>
    %69 = vector.broadcast %68 : vector<1x160xf32> to vector<304x160xf32>
    %70 = arith.addf %67, %69 : vector<304x160xf32>
    %71 = math.tanh %70 : vector<304x160xf32>
    %72 = vector.shape_cast %71 : vector<304x160xf32> to vector<19x16x160xf32>
    %73 = vector.extract_strided_slice %72 {offsets = [0, 0, 0], sizes = [1, 16, 160], strides = [1, 1, 1]} : vector<19x16x160xf32> to vector<1x16x160xf32>
    %74 = vector.shape_cast %73 : vector<1x16x160xf32> to vector<16x160xf32>
    %75 = vector.extract_strided_slice %72 {offsets = [2, 0, 0], sizes = [1, 16, 160], strides = [1, 1, 1]} : vector<19x16x160xf32> to vector<1x16x160xf32>
    %76 = vector.shape_cast %75 : vector<1x16x160xf32> to vector<16x160xf32>
    %77 = arith.addf %74, %76 : vector<16x160xf32>
    %78 = arith.truncf %77 : vector<16x160xf32> to vector<16x160xbf16>
    %c0_41 = arith.constant 0 : index
    %c0_42 = arith.constant 0 : index
    %c0_43 = arith.constant 0 : index
    %79 = vector.load %arg6[%c0_41, %c0_42, %c0_43] : memref<5x160x120xbf16, #tpu.memory_space<vmem>>, vector<1x160x120xbf16>
    %80 = vector.shape_cast %79 : vector<1x160x120xbf16> to vector<160x120xbf16>
    %cst_44 = arith.constant dense<0.000000e+00> : vector<16x120xf32>
    %81 = tpu.matmul %78, %80, %cst_44 {dimension_numbers = #tpu.dot_dimension_numbers<[1], [0], [0], [1], [0, 0, 1, 1], [], []>} : vector<16x160xbf16>, vector<160x120xbf16>, vector<16x120xf32> -> vector<16x120xf32>
    %82 = vector.extract_strided_slice %72 {offsets = [4, 0, 0], sizes = [1, 16, 160], strides = [1, 1, 1]} : vector<19x16x160xf32> to vector<1x16x160xf32>
    %83 = vector.shape_cast %82 : vector<1x16x160xf32> to vector<16x160xf32>
    %84 = vector.extract_strided_slice %72 {offsets = [6, 0, 0], sizes = [1, 16, 160], strides = [1, 1, 1]} : vector<19x16x160xf32> to vector<1x16x160xf32>
    %85 = vector.shape_cast %84 : vector<1x16x160xf32> to vector<16x160xf32>
    %86 = arith.addf %83, %85 : vector<16x160xf32>
    %87 = arith.truncf %86 : vector<16x160xf32> to vector<16x160xbf16>
    %c1_45 = arith.constant 1 : index
    %c0_46 = arith.constant 0 : index
    %c0_47 = arith.constant 0 : index
    %88 = vector.load %arg6[%c1_45, %c0_46, %c0_47] : memref<5x160x120xbf16, #tpu.memory_space<vmem>>, vector<1x160x120xbf16>
    %89 = vector.shape_cast %88 : vector<1x160x120xbf16> to vector<160x120xbf16>
    %cst_48 = arith.constant dense<0.000000e+00> : vector<16x120xf32>
    %90 = tpu.matmul %87, %89, %cst_48 {dimension_numbers = #tpu.dot_dimension_numbers<[1], [0], [0], [1], [0, 0, 1, 1], [], []>} : vector<16x160xbf16>, vector<160x120xbf16>, vector<16x120xf32> -> vector<16x120xf32>
    %91 = arith.addf %81, %90 : vector<16x120xf32>
    %92 = vector.extract_strided_slice %72 {offsets = [8, 0, 0], sizes = [1, 16, 160], strides = [1, 1, 1]} : vector<19x16x160xf32> to vector<1x16x160xf32>
    %93 = vector.shape_cast %92 : vector<1x16x160xf32> to vector<16x160xf32>
    %94 = vector.extract_strided_slice %72 {offsets = [10, 0, 0], sizes = [1, 16, 160], strides = [1, 1, 1]} : vector<19x16x160xf32> to vector<1x16x160xf32>
    %95 = vector.shape_cast %94 : vector<1x16x160xf32> to vector<16x160xf32>
    %96 = arith.addf %93, %95 : vector<16x160xf32>
    %97 = arith.truncf %96 : vector<16x160xf32> to vector<16x160xbf16>
    %c2_49 = arith.constant 2 : index
    %c0_50 = arith.constant 0 : index
    %c0_51 = arith.constant 0 : index
    %98 = vector.load %arg6[%c2_49, %c0_50, %c0_51] : memref<5x160x120xbf16, #tpu.memory_space<vmem>>, vector<1x160x120xbf16>
    %99 = vector.shape_cast %98 : vector<1x160x120xbf16> to vector<160x120xbf16>
    %cst_52 = arith.constant dense<0.000000e+00> : vector<16x120xf32>
    %100 = tpu.matmul %97, %99, %cst_52 {dimension_numbers = #tpu.dot_dimension_numbers<[1], [0], [0], [1], [0, 0, 1, 1], [], []>} : vector<16x160xbf16>, vector<160x120xbf16>, vector<16x120xf32> -> vector<16x120xf32>
    %101 = arith.addf %91, %100 : vector<16x120xf32>
    %102 = vector.extract_strided_slice %72 {offsets = [12, 0, 0], sizes = [1, 16, 160], strides = [1, 1, 1]} : vector<19x16x160xf32> to vector<1x16x160xf32>
    %103 = vector.shape_cast %102 : vector<1x16x160xf32> to vector<16x160xf32>
    %104 = vector.extract_strided_slice %72 {offsets = [14, 0, 0], sizes = [1, 16, 160], strides = [1, 1, 1]} : vector<19x16x160xf32> to vector<1x16x160xf32>
    %105 = vector.shape_cast %104 : vector<1x16x160xf32> to vector<16x160xf32>
    %106 = arith.addf %103, %105 : vector<16x160xf32>
    %107 = arith.truncf %106 : vector<16x160xf32> to vector<16x160xbf16>
    %c3_53 = arith.constant 3 : index
    %c0_54 = arith.constant 0 : index
    %c0_55 = arith.constant 0 : index
    %108 = vector.load %arg6[%c3_53, %c0_54, %c0_55] : memref<5x160x120xbf16, #tpu.memory_space<vmem>>, vector<1x160x120xbf16>
    %109 = vector.shape_cast %108 : vector<1x160x120xbf16> to vector<160x120xbf16>
    %cst_56 = arith.constant dense<0.000000e+00> : vector<16x120xf32>
    %110 = tpu.matmul %107, %109, %cst_56 {dimension_numbers = #tpu.dot_dimension_numbers<[1], [0], [0], [1], [0, 0, 1, 1], [], []>} : vector<16x160xbf16>, vector<160x120xbf16>, vector<16x120xf32> -> vector<16x120xf32>
    %111 = arith.addf %101, %110 : vector<16x120xf32>
    %112 = vector.extract_strided_slice %72 {offsets = [16, 0, 0], sizes = [1, 16, 160], strides = [1, 1, 1]} : vector<19x16x160xf32> to vector<1x16x160xf32>
    %113 = vector.shape_cast %112 : vector<1x16x160xf32> to vector<16x160xf32>
    %114 = vector.extract_strided_slice %72 {offsets = [18, 0, 0], sizes = [1, 16, 160], strides = [1, 1, 1]} : vector<19x16x160xf32> to vector<1x16x160xf32>
    %115 = vector.shape_cast %114 : vector<1x16x160xf32> to vector<16x160xf32>
    %116 = arith.addf %113, %115 : vector<16x160xf32>
    %117 = arith.truncf %116 : vector<16x160xf32> to vector<16x160xbf16>
    %c4_57 = arith.constant 4 : index
    %c0_58 = arith.constant 0 : index
    %c0_59 = arith.constant 0 : index
    %118 = vector.load %arg6[%c4_57, %c0_58, %c0_59] : memref<5x160x120xbf16, #tpu.memory_space<vmem>>, vector<1x160x120xbf16>
    %119 = vector.shape_cast %118 : vector<1x160x120xbf16> to vector<160x120xbf16>
    %cst_60 = arith.constant dense<0.000000e+00> : vector<16x120xf32>
    %120 = tpu.matmul %117, %119, %cst_60 {dimension_numbers = #tpu.dot_dimension_numbers<[1], [0], [0], [1], [0, 0, 1, 1], [], []>} : vector<16x160xbf16>, vector<160x120xbf16>, vector<16x120xf32> -> vector<16x120xf32>
    %121 = arith.addf %111, %120 : vector<16x120xf32>
    %c0_61 = arith.constant 0 : index
    %c0_62 = arith.constant 0 : index
    %122 = vector.load %arg7[%c0_61, %c0_62] : memref<1x120xf32, #tpu.memory_space<vmem>>, vector<1x120xf32>
    %123 = vector.broadcast %122 : vector<1x120xf32> to vector<16x120xf32>
    %124 = arith.addf %121, %123 : vector<16x120xf32>
    %125 = math.tanh %124 : vector<16x120xf32>
    %126 = arith.truncf %125 : vector<16x120xf32> to vector<16x120xbf16>
    %c0_63 = arith.constant 0 : index
    %c0_64 = arith.constant 0 : index
    %127 = vector.load %arg8[%c0_63, %c0_64] : memref<120x84xbf16, #tpu.memory_space<vmem>>, vector<120x84xbf16>
    %cst_65 = arith.constant dense<0.000000e+00> : vector<16x84xf32>
    %128 = tpu.matmul %126, %127, %cst_65 {dimension_numbers = #tpu.dot_dimension_numbers<[1], [0], [0], [1], [0, 0, 1, 1], [], []>} : vector<16x120xbf16>, vector<120x84xbf16>, vector<16x84xf32> -> vector<16x84xf32>
    %c0_66 = arith.constant 0 : index
    %c0_67 = arith.constant 0 : index
    %129 = vector.load %arg9[%c0_66, %c0_67] : memref<1x84xf32, #tpu.memory_space<vmem>>, vector<1x84xf32>
    %130 = vector.broadcast %129 : vector<1x84xf32> to vector<16x84xf32>
    %131 = arith.addf %128, %130 : vector<16x84xf32>
    %cst_68 = arith.constant dense<0.000000e+00> : vector<16xf32>
    %132 = vector.multi_reduction <add>, %131, %cst_68 [1] : vector<16x84xf32> to vector<16xf32>
    %133 = vector.shape_cast %132 : vector<16xf32> to vector<16x1xf32>
    %cst_69 = arith.constant 8.400000e+01 : f32
    %134 = vector.broadcast %cst_69 : f32 to vector<16x1xf32>
    %135 = arith.divf %133, %134 : vector<16x1xf32>
    %136 = vector.broadcast %135 : vector<16x1xf32> to vector<16x84xf32>
    %137 = arith.subf %131, %136 : vector<16x84xf32>
    %138 = arith.mulf %137, %137 : vector<16x84xf32>
    %cst_70 = arith.constant dense<0.000000e+00> : vector<16xf32>
    %139 = vector.multi_reduction <add>, %138, %cst_70 [1] : vector<16x84xf32> to vector<16xf32>
    %140 = vector.shape_cast %139 : vector<16xf32> to vector<16x1xf32>
    %cst_71 = arith.constant 8.400000e+01 : f32
    %141 = vector.broadcast %cst_71 : f32 to vector<16x1xf32>
    %142 = arith.divf %140, %141 : vector<16x1xf32>
    %143 = vector.broadcast %135 : vector<16x1xf32> to vector<16x84xf32>
    %144 = arith.subf %131, %143 : vector<16x84xf32>
    %cst_72 = arith.constant 9.99999974E-6 : f32
    %145 = vector.broadcast %cst_72 : f32 to vector<16x1xf32>
    %146 = arith.addf %142, %145 : vector<16x1xf32>
    %147 = math.rsqrt %146 : vector<16x1xf32>
    %148 = vector.broadcast %147 : vector<16x1xf32> to vector<16x84xf32>
    %149 = arith.mulf %144, %148 : vector<16x84xf32>
    %c0_73 = arith.constant 0 : index
    %c0_74 = arith.constant 0 : index
    %150 = vector.load %arg10[%c0_73, %c0_74] : memref<1x84xf32, #tpu.memory_space<vmem>>, vector<1x84xf32>
    %151 = vector.broadcast %150 : vector<1x84xf32> to vector<16x84xf32>
    %152 = arith.mulf %149, %151 : vector<16x84xf32>
    %c0_75 = arith.constant 0 : index
    %c0_76 = arith.constant 0 : index
    %153 = vector.load %arg11[%c0_75, %c0_76] : memref<1x84xf32, #tpu.memory_space<vmem>>, vector<1x84xf32>
    %154 = vector.broadcast %153 : vector<1x84xf32> to vector<16x84xf32>
    %155 = arith.addf %152, %154 : vector<16x84xf32>
    %156 = math.tanh %155 : vector<16x84xf32>
    %157 = arith.truncf %156 : vector<16x84xf32> to vector<16x84xbf16>
    %c0_77 = arith.constant 0 : index
    %c0_78 = arith.constant 0 : index
    %158 = vector.load %arg12[%c0_77, %c0_78] : memref<84x128xbf16, #tpu.memory_space<vmem>>, vector<84x128xbf16>
    %cst_79 = arith.constant dense<0.000000e+00> : vector<16x128xf32>
    %159 = tpu.matmul %157, %158, %cst_79 {dimension_numbers = #tpu.dot_dimension_numbers<[1], [0], [0], [1], [0, 0, 1, 1], [], []>} : vector<16x84xbf16>, vector<84x128xbf16>, vector<16x128xf32> -> vector<16x128xf32>
    %c0_80 = arith.constant 0 : index
    %c0_81 = arith.constant 0 : index
    %160 = vector.load %arg13[%c0_80, %c0_81] : memref<1x128xf32, #tpu.memory_space<vmem>>, vector<1x128xf32>
    %161 = vector.broadcast %160 : vector<1x128xf32> to vector<16x128xf32>
    %162 = arith.addf %159, %161 : vector<16x128xf32>
    %c0_82 = arith.constant 0 : index
    %c0_83 = arith.constant 0 : index
    %163 = vector.load %arg14[%c0_82, %c0_83] : memref<16x128xf32, #tpu.memory_space<vmem>>, vector<16x128xf32>
    tpu.vector_store %arg14[%c0_82, %c0_83], %162 {strides = array<i32>} : memref<16x128xf32, #tpu.memory_space<vmem>>, vector<16x128xf32>,
    %cst_84 = arith.constant dense<0xFF800000> : vector<16xf32>
    %164 = vector.multi_reduction <maximumf>, %162, %cst_84 [1] : vector<16x128xf32> to vector<16xf32>
    %165 = vector.shape_cast %164 : vector<16xf32> to vector<16x1xf32>
    %166 = vector.broadcast %165 : vector<16x1xf32> to vector<16x128xf32>
    %167 = arith.subf %162, %166 : vector<16x128xf32>
    %168 = math.exp %167 : vector<16x128xf32>
    %cst_85 = arith.constant dense<0.000000e+00> : vector<16xf32>
    %169 = vector.multi_reduction <add>, %168, %cst_85 [1] : vector<16x128xf32> to vector<16xf32>
    %170 = vector.shape_cast %169 : vector<16xf32> to vector<16x1xf32>
    %171 = vector.broadcast %170 : vector<16x1xf32> to vector<16x128xf32>
    %172 = arith.divf %168, %171 : vector<16x128xf32>
    %c0_86 = arith.constant 0 : index
    %c0_87 = arith.constant 0 : index
    %173 = vector.load %arg15[%c0_86, %c0_87] : memref<16x128xf32, #tpu.memory_space<vmem>>, vector<16x128xf32>
    tpu.vector_store %arg15[%c0_86, %c0_87], %172 {strides = array<i32>} : memref<16x128xf32, #tpu.memory_space<vmem>>, vector<16x128xf32>,
    return
  }
  func.func @transform_0(%arg0: i32) -> (i32, i32, i32) {
    %c0_i32 = arith.constant 0 : i32
    %c0_i32_0 = arith.constant 0 : i32
    %c0_i32_1 = arith.constant 0 : i32
    return %c0_i32, %arg0, %c0_i32_0 : i32, i32, i32
  }
  func.func @transform_1(%arg0: i32) -> (i32, i32, i32) {
    %c0_i32 = arith.constant 0 : i32
    %c0_i32_0 = arith.constant 0 : i32
    %c0_i32_1 = arith.constant 0 : i32
    %c0_i32_2 = arith.constant 0 : i32
    return %c0_i32, %c0_i32_0, %c0_i32_1 : i32, i32, i32
  }
  func.func @transform_2(%arg0: i32) -> (i32, i32) {
    %c0_i32 = arith.constant 0 : i32
    %c0_i32_0 = arith.constant 0 : i32
    %c0_i32_1 = arith.constant 0 : i32
    return %c0_i32, %c0_i32_0 : i32, i32
  }
  func.func @transform_3(%arg0: i32) -> (i32, i32, i32) {
    %c0_i32 = arith.constant 0 : i32
    %c0_i32_0 = arith.constant 0 : i32
    %c0_i32_1 = arith.constant 0 : i32
    %c0_i32_2 = arith.constant 0 : i32
    return %c0_i32, %c0_i32_0, %c0_i32_1 : i32, i32, i32
  }
  func.func @transform_4(%arg0: i32) -> (i32, i32) {
    %c0_i32 = arith.constant 0 : i32
    %c0_i32_0 = arith.constant 0 : i32
    %c0_i32_1 = arith.constant 0 : i32
    return %c0_i32, %c0_i32_0 : i32, i32
  }
  func.func @transform_5(%arg0: i32) -> (i32, i32, i32) {
    %c0_i32 = arith.constant 0 : i32
    %c0_i32_0 = arith.constant 0 : i32
    %c0_i32_1 = arith.constant 0 : i32
    %c0_i32_2 = arith.constant 0 : i32
    return %c0_i32, %c0_i32_0, %c0_i32_1 : i32, i32, i32
  }
  func.func @transform_6(%arg0: i32) -> (i32, i32) {
    %c0_i32 = arith.constant 0 : i32
    %c0_i32_0 = arith.constant 0 : i32
    %c0_i32_1 = arith.constant 0 : i32
    return %c0_i32, %c0_i32_0 : i32, i32
  }
  func.func @transform_7(%arg0: i32) -> (i32, i32) {
    %c0_i32 = arith.constant 0 : i32
    %c0_i32_0 = arith.constant 0 : i32
    %c0_i32_1 = arith.constant 0 : i32
    return %c0_i32, %c0_i32_0 : i32, i32
  }
  func.func @transform_8(%arg0: i32) -> (i32, i32) {
    %c0_i32 = arith.constant 0 : i32
    %c0_i32_0 = arith.constant 0 : i32
    %c0_i32_1 = arith.constant 0 : i32
    return %c0_i32, %c0_i32_0 : i32, i32
  }
  func.func @transform_9(%arg0: i32) -> (i32, i32) {
    %c0_i32 = arith.constant 0 : i32
    %c0_i32_0 = arith.constant 0 : i32
    %c0_i32_1 = arith.constant 0 : i32
    return %c0_i32, %c0_i32_0 : i32, i32
  }
  func.func @transform_10(%arg0: i32) -> (i32, i32) {
    %c0_i32 = arith.constant 0 : i32
    %c0_i32_0 = arith.constant 0 : i32
    %c0_i32_1 = arith.constant 0 : i32
    return %c0_i32, %c0_i32_0 : i32, i32
  }
  func.func @transform_11(%arg0: i32) -> (i32, i32) {
    %c0_i32 = arith.constant 0 : i32
    %c0_i32_0 = arith.constant 0 : i32
    %c0_i32_1 = arith.constant 0 : i32
    return %c0_i32, %c0_i32_0 : i32, i32
  }
  func.func @transform_12(%arg0: i32) -> (i32, i32) {
    %c0_i32 = arith.constant 0 : i32
    %c0_i32_0 = arith.constant 0 : i32
    %c0_i32_1 = arith.constant 0 : i32
    return %c0_i32, %c0_i32_0 : i32, i32
  }
  func.func @transform_13(%arg0: i32) -> (i32, i32) {
    %c0_i32 = arith.constant 0 : i32
    %c0_i32_0 = arith.constant 0 : i32
    return %arg0, %c0_i32 : i32, i32
  }
  func.func @transform_14(%arg0: i32) -> (i32, i32) {
    %c0_i32 = arith.constant 0 : i32
    %c0_i32_0 = arith.constant 0 : i32
    return %arg0, %c0_i32 : i32, i32
  }
}

</mosaic_0001>

<llo_original>
// kernel: lenet5_forward.1
$region0: #{lenet5_forward.1}
  #allocation0 [shape = 'u32[]', space=smem, size = 0x4, offset = 0x4, fixed_abs, tag = 'smem constant byte address 0x4 - core index']
  #allocation1 [shape = 'u32[144,128]{1,0:T(1,128)}', space=vmem, size = 0x12000, scoped, tag = 'internal scratch']
  %s0 = inlined_call_operand.vmem [shape: bf16[32,16,32], index: 0, kind: input, shape index: {}]
  %s1 = inlined_call_operand.vmem [shape: bf16[5,32,168], index: 1, kind: input, shape index: {}]
  %s2 = inlined_call_operand.vmem [shape: f32[1,168], index: 2, kind: input, shape index: {}]
  %s3 = inlined_call_operand.vmem [shape: bf16[5,168,160], index: 3, kind: input, shape index: {}]
  %s4 = inlined_call_operand.vmem [shape: f32[1,160], index: 4, kind: input, shape index: {}]
  %s5 = inlined_call_operand.vmem [shape: bf16[5,160,120], index: 5, kind: input, shape index: {}]
  %s6 = inlined_call_operand.vmem [shape: f32[1,120], index: 6, kind: input, shape index: {}]
  %s7 = inlined_call_operand.vmem [shape: bf16[120,84], index: 7, kind: input, shape index: {}]
  %s8 = inlined_call_operand.vmem [shape: f32[1,84], index: 8, kind: input, shape index: {}]
  %s9 = inlined_call_operand.vmem [shape: f32[1,84], index: 9, kind: input, shape index: {}]
  %s10 = inlined_call_operand.vmem [shape: f32[1,84], index: 10, kind: input, shape index: {}]
  %s11 = inlined_call_operand.vmem [shape: bf16[84,128], index: 11, kind: input, shape index: {}]
  %s12 = inlined_call_operand.vmem [shape: f32[1,128], index: 12, kind: input, shape index: {}]
  %s13 = inlined_call_operand.vmem [shape: f32[16,128], index: 13, kind: output, shape index: {0}]
  %s14 = inlined_call_operand.vmem [shape: f32[16,128], index: 14, kind: output, shape index: {1}]
  %15 = xla_tuple %s13, %s14
  %s16 = sld [smem:[#allocation0]]
  $region70: #{lenet5_forward.1} parent=0
    _
  %s18 = ssub.s32 1, %s16
  %s19 = scalar_select 0, %s18, %s16
  // Predicated region
  $region2: #{lenet5_forward.1} parent=0 // pred_check
    _
  $region3: #{lenet5_forward.1} parent=0 // pred_check_branch
    %21 = sbr.rel (0) target = $region5
  $region4: #{lenet5_forward.1} parent=0 // pred_region
    _
  $region5: #{lenet5_forward.1} parent=0 // pred_fallthru
    _
  // Predicated region
  $region6: #{lenet5_forward.1} parent=0 // pred_check
    _
  $region7: #{lenet5_forward.1} parent=0 // pred_check_branch
    %23 = sbr.rel (0) target = $region9
  $region8: #{lenet5_forward.1} parent=0 // pred_region
    _
  $region9: #{lenet5_forward.1} parent=0 // pred_fallthru
    _
  // Predicated region
  $region10: #{lenet5_forward.1} parent=0 // pred_check
    _
  $region11: #{lenet5_forward.1} parent=0 // pred_check_branch
    %25 = sbr.rel (0) target = $region13
  $region12: #{lenet5_forward.1} parent=0 // pred_region
    _
  $region13: #{lenet5_forward.1} parent=0 // pred_fallthru
    _
  // Predicated region
  $region14: #{lenet5_forward.1} parent=0 // pred_check
    _
  $region15: #{lenet5_forward.1} parent=0 // pred_check_branch
    %27 = sbr.rel (0) target = $region17
  $region16: #{lenet5_forward.1} parent=0 // pred_region
    _
  $region17: #{lenet5_forward.1} parent=0 // pred_fallthru
    _
  // Predicated region
  $region18: #{lenet5_forward.1} parent=0 // pred_check
    _
  $region19: #{lenet5_forward.1} parent=0 // pred_check_branch
    %29 = sbr.rel (0) target = $region21
  $region20: #{lenet5_forward.1} parent=0 // pred_region
    _
  $region21: #{lenet5_forward.1} parent=0 // pred_fallthru
    _
  // Predicated region
  $region22: #{lenet5_forward.1} parent=0 // pred_check
    _
  $region23: #{lenet5_forward.1} parent=0 // pred_check_branch
    %31 = sbr.rel (0) target = $region25
  $region24: #{lenet5_forward.1} parent=0 // pred_region
    _
  $region25: #{lenet5_forward.1} parent=0 // pred_fallthru
    _
  // Predicated region
  $region26: #{lenet5_forward.1} parent=0 // pred_check
    _
  $region27: #{lenet5_forward.1} parent=0 // pred_check_branch
    %33 = sbr.rel (0) target = $region29
  $region28: #{lenet5_forward.1} parent=0 // pred_region
    _
  $region29: #{lenet5_forward.1} parent=0 // pred_fallthru
    _
  // Predicated region
  $region30: #{lenet5_forward.1} parent=0 // pred_check
    _
  $region31: #{lenet5_forward.1} parent=0 // pred_check_branch
    %35 = sbr.rel (0) target = $region33
  $region32: #{lenet5_forward.1} parent=0 // pred_region
    _
  $region33: #{lenet5_forward.1} parent=0 // pred_fallthru
    _
  // Predicated region
  $region34: #{lenet5_forward.1} parent=0 // pred_check
    _
  $region35: #{lenet5_forward.1} parent=0 // pred_check_branch
    %37 = sbr.rel (0) target = $region37
  $region36: #{lenet5_forward.1} parent=0 // pred_region
    _
  $region37: #{lenet5_forward.1} parent=0 // pred_fallthru
    _
  // Predicated region
  $region38: #{lenet5_forward.1} parent=0 // pred_check
    _
  $region39: #{lenet5_forward.1} parent=0 // pred_check_branch
    %39 = sbr.rel (0) target = $region41
  $region40: #{lenet5_forward.1} parent=0 // pred_region
    _
  $region41: #{lenet5_forward.1} parent=0 // pred_fallthru
    _
  // Predicated region
  $region42: #{lenet5_forward.1} parent=0 // pred_check
    _
  $region43: #{lenet5_forward.1} parent=0 // pred_check_branch
    %41 = sbr.rel (0) target = $region45
  $region44: #{lenet5_forward.1} parent=0 // pred_region
    _
  $region45: #{lenet5_forward.1} parent=0 // pred_fallthru
    _
  // Predicated region
  $region46: #{lenet5_forward.1} parent=0 // pred_check
    _
  $region47: #{lenet5_forward.1} parent=0 // pred_check_branch
    %43 = sbr.rel (0) target = $region49
  $region48: #{lenet5_forward.1} parent=0 // pred_region
    _
  $region49: #{lenet5_forward.1} parent=0 // pred_fallthru
    _
  // Predicated region
  $region50: #{lenet5_forward.1} parent=0 // pred_check
    _
  $region51: #{lenet5_forward.1} parent=0 // pred_check_branch
    %45 = sbr.rel (0) target = $region53
  $region52: #{lenet5_forward.1} parent=0 // pred_region
    _
  $region53: #{lenet5_forward.1} parent=0 // pred_fallthru
    _
  %v47 = vld [vmem:[%s0] sm:$0xf]
  %v48 = vld [vmem:[%s0 + $0x4] sm:$0xf]
  %v49 = vld [vmem:[%s0 + $0x8] sm:$0xf]
  %v50 = vld [vmem:[%s0 + $0xc] sm:$0xf]
  %v51 = vld [vmem:[%s0 + $0x10] sm:$0xf]
  %v52 = vld [vmem:[%s0 + $0x14] sm:$0xf]
  %v53 = vld [vmem:[%s0 + $0x18] sm:$0xf]
  %v54 = vld [vmem:[%s0 + $0x1c] sm:$0xf]
  %v55 = vld [vmem:[%s0 + $0x20] sm:$0xf]
  %v56 = vld [vmem:[%s0 + $0x24] sm:$0xf]
  %v57 = vld [vmem:[%s0 + $0x28] sm:$0xf]
  %v58 = vld [vmem:[%s0 + $0x2c] sm:$0xf]
  %v59 = vld [vmem:[%s0 + $0x30] sm:$0xf]
  %v60 = vld [vmem:[%s0 + $0x34] sm:$0xf]
  %v61 = vld [vmem:[%s0 + $0x38] sm:$0xf]
  %v62 = vld [vmem:[%s0 + $0x3c] sm:$0xf]
  %v63 = vld [vmem:[%s0 + $0x40] sm:$0xf]
  %v64 = vld [vmem:[%s0 + $0x44] sm:$0xf]
  %v65 = vld [vmem:[%s0 + $0x48] sm:$0xf]
  %v66 = vld [vmem:[%s0 + $0x4c] sm:$0xf]
  %v67 = vld [vmem:[%s0 + $0x50] sm:$0xf]
  %v68 = vld [vmem:[%s0 + $0x54] sm:$0xf]
  %v69 = vld [vmem:[%s0 + $0x58] sm:$0xf]
  %v70 = vld [vmem:[%s0 + $0x5c] sm:$0xf]
  %v71 = vld [vmem:[%s0 + $0x60] sm:$0xf]
  %v72 = vld [vmem:[%s0 + $0x64] sm:$0xf]
  %v73 = vld [vmem:[%s0 + $0x68] sm:$0xf]
  %v74 = vld [vmem:[%s0 + $0x6c] sm:$0xf]
  %v75 = vld [vmem:[%s0 + $0x70] sm:$0xf]
  %v76 = vld [vmem:[%s0 + $0x74] sm:$0xf]
  %v77 = vld [vmem:[%s0 + $0x78] sm:$0xf]
  %v78 = vld [vmem:[%s0 + $0x7c] sm:$0xf]
  %v79 = vld [vmem:[%s0 + $0x80] sm:$0xf]
  %v80 = vld [vmem:[%s0 + $0x84] sm:$0xf]
  %v81 = vld [vmem:[%s0 + $0x88] sm:$0xf]
  %v82 = vld [vmem:[%s0 + $0x8c] sm:$0xf]
  %v83 = vld [vmem:[%s0 + $0x90] sm:$0xf]
  %v84 = vld [vmem:[%s0 + $0x94] sm:$0xf]
  %v85 = vld [vmem:[%s0 + $0x98] sm:$0xf]
  %v86 = vld [vmem:[%s0 + $0x9c] sm:$0xf]
  %v87 = vld [vmem:[%s0 + $0xa0] sm:$0xf]
  %v88 = vld [vmem:[%s0 + $0xa4] sm:$0xf]
  %v89 = vld [vmem:[%s0 + $0xa8] sm:$0xf]
  %v90 = vld [vmem:[%s0 + $0xac] sm:$0xf]
  %v91 = vld [vmem:[%s0 + $0xb0] sm:$0xf]
  %v92 = vld [vmem:[%s0 + $0xb4] sm:$0xf]
  %v93 = vld [vmem:[%s0 + $0xb8] sm:$0xf]
  %v94 = vld [vmem:[%s0 + $0xbc] sm:$0xf]
  %v95 = vld [vmem:[%s0 + $0xc0] sm:$0xf]
  %v96 = vld [vmem:[%s0 + $0xc4] sm:$0xf]
  %v97 = vld [vmem:[%s0 + $0xc8] sm:$0xf]
  %v98 = vld [vmem:[%s0 + $0xcc] sm:$0xf]
  %v99 = vld [vmem:[%s0 + $0xd0] sm:$0xf]
  %v100 = vld [vmem:[%s0 + $0xd4] sm:$0xf]
  %v101 = vld [vmem:[%s0 + $0xd8] sm:$0xf]
  %v102 = vld [vmem:[%s0 + $0xdc] sm:$0xf]
  %v103 = vld [vmem:[%s0 + $0xe0] sm:$0xf]
  %v104 = vld [vmem:[%s0 + $0xe4] sm:$0xf]
  %v105 = vld [vmem:[%s0 + $0xe8] sm:$0xf]
  %v106 = vld [vmem:[%s0 + $0xec] sm:$0xf]
  %v107 = vld [vmem:[%s0 + $0xf0] sm:$0xf]
  %v108 = vld [vmem:[%s0 + $0xf4] sm:$0xf]
  %v109 = vld [vmem:[%s0 + $0xf8] sm:$0xf]
  %v110 = vld [vmem:[%s0 + $0xfc] sm:$0xf]
  %v111 = vld [vmem:[%s1] sm:$0xff]
  %v112 = vld [vmem:[%s1 + $0x8] sm:$0xff]
  %v113 = vld [vmem:[%s1 + $0x10] sm:$0xff]
  %v114 = vld [vmem:[%s1 + $0x18] sm:$0xff]
  %s115 = scalar_lea.vmem %s1, 32
  %v116 = vld [vmem:[%s115] sm:$0xff]
  %v117 = vld [vmem:[%s115 + $0x8] sm:$0xff]
  %v118 = vld [vmem:[%s115 + $0x10] sm:$0xff]
  %v119 = vld [vmem:[%s115 + $0x18] sm:$0xff]
  %v176 = vunpack.c.l.b16 %v49
  %v177 = vunpack.c.l.b16 %v50
  %v178 = vunpack.c.l.b16 %v51
  %v179 = vunpack.c.l.b16 %v52
  %v180 = vunpack.c.l.b16 %v53
  %v181 = vunpack.c.l.b16 %v54
  %v182 = vunpack.c.l.b16 %v55
  %v183 = vunpack.c.l.b16 %v56
  %v184 = vunpack.c.l.b16 %v57
  %v185 = vunpack.c.l.b16 %v58
  %v186 = vunpack.c.l.b16 %v59
  %v187 = vunpack.c.l.b16 %v60
  %v188 = vunpack.c.l.b16 %v61
  %v189 = vunpack.c.l.b16 %v62
  %v190 = vunpack.c.l.b16 %v63
  %v191 = vunpack.c.l.b16 %v64
  %v192 = vunpack.c.l.b16 %v65
  %v193 = vunpack.c.l.b16 %v66
  %v194 = vunpack.c.l.b16 %v67
  %v195 = vunpack.c.l.b16 %v68
  %v196 = vunpack.c.l.b16 %v69
  %v197 = vunpack.c.l.b16 %v70
  %v198 = vunpack.c.l.b16 %v71
  %v199 = vunpack.c.l.b16 %v72
  %v200 = vunpack.c.l.b16 %v73
  %v201 = vunpack.c.l.b16 %v74
  %v202 = vunpack.c.l.b16 %v75
  %v203 = vunpack.c.l.b16 %v76
  %v204 = vunpack.c.l.b16 %v77
  %v205 = vunpack.c.l.b16 %v78
  %v206 = vunpack.c.l.b16 %v79
  %v207 = vunpack.c.l.b16 %v80
  %v208 = vunpack.c.l.b16 %v81
  %v209 = vunpack.c.l.b16 %v82
  %v210 = vunpack.c.l.b16 %v83
  %v211 = vunpack.c.l.b16 %v84
  %v212 = vunpack.c.l.b16 %v85
  %v213 = vunpack.c.l.b16 %v86
  %v214 = vunpack.c.l.b16 %v87
  %v215 = vunpack.c.l.b16 %v88
  %v216 = vunpack.c.l.b16 %v89
  %v217 = vunpack.c.l.b16 %v90
  %v218 = vunpack.c.l.b16 %v91
  %v219 = vunpack.c.l.b16 %v92
  %v220 = vunpack.c.l.b16 %v93
  %v221 = vunpack.c.l.b16 %v94
  %v222 = vunpack.c.l.b16 %v95
  %v223 = vunpack.c.l.b16 %v96
  %v224 = vunpack.c.l.b16 %v97
  %v225 = vunpack.c.l.b16 %v98
  %v226 = vunpack.c.l.b16 %v99
  %v227 = vunpack.c.l.b16 %v100
  %v228 = vunpack.c.l.b16 %v101
  %v229 = vunpack.c.l.b16 %v102
  %v230 = vunpack.c.l.b16 %v103
  %v231 = vunpack.c.l.b16 %v104
  %v232 = vpack.c.b16 %v177, %v176
  %v233 = vpack.c.b16 %v179, %v178
  %v234 = vpack.c.b16 %v181, %v180
  %v235 = vpack.c.b16 %v183, %v182
  %v236 = vpack.c.b16 %v185, %v184
  %v237 = vpack.c.b16 %v187, %v186
  %v238 = vpack.c.b16 %v189, %v188
  %v239 = vpack.c.b16 %v191, %v190
  %v240 = vpack.c.b16 %v193, %v192
  %v241 = vpack.c.b16 %v195, %v194
  %v242 = vpack.c.b16 %v197, %v196
  %v243 = vpack.c.b16 %v199, %v198
  %v244 = vpack.c.b16 %v201, %v200
  %v245 = vpack.c.b16 %v203, %v202
  %v246 = vpack.c.b16 %v205, %v204
  %v247 = vpack.c.b16 %v207, %v206
  %v248 = vpack.c.b16 %v209, %v208
  %v249 = vpack.c.b16 %v211, %v210
  %v250 = vpack.c.b16 %v213, %v212
  %v251 = vpack.c.b16 %v215, %v214
  %v252 = vpack.c.b16 %v217, %v216
  %v253 = vpack.c.b16 %v219, %v218
  %v254 = vpack.c.b16 %v221, %v220
  %v255 = vpack.c.b16 %v223, %v222
  %v256 = vpack.c.b16 %v225, %v224
  %v257 = vpack.c.b16 %v227, %v226
  %v258 = vpack.c.b16 %v229, %v228
  %v259 = vpack.c.b16 %v231, %v230
  %v264 = vunpack.c.l.b16 %v116
  %v265 = vunpack.c.h.b16 %v116
  %v266 = vunpack.c.l.b16 %v117
  %v267 = vunpack.c.h.b16 %v117
  %v268 = vunpack.c.l.b16 %v118
  %v269 = vunpack.c.h.b16 %v118
  %v270 = vunpack.c.l.b16 %v119
  %v271 = vunpack.c.h.b16 %v119
  %v272 = vpack.c.b16 %v266, %v264
  %v273 = vpack.c.b16 %v267, %v265
  %v274 = vpack.c.b16 %v270, %v268
  %v275 = vpack.c.b16 %v271, %v269
  %vm280 = vcmask 261120
  %v282 = vsel %vm280, %v232, 0
  %v285 = vsel %vm280, %v233, 0
  %v288 = vsel %vm280, %v234, 0
  %v291 = vsel %vm280, %v235, 0
  %v294 = vsel %vm280, %v236, 0
  %v297 = vsel %vm280, %v237, 0
  %v300 = vsel %vm280, %v238, 0
  %v303 = vsel %vm280, %v239, 0
  %v306 = vsel %vm280, %v240, 0
  %v309 = vsel %vm280, %v241, 0
  %v312 = vsel %vm280, %v242, 0
  %v315 = vsel %vm280, %v243, 0
  %v318 = vsel %vm280, %v244, 0
  %v321 = vsel %vm280, %v245, 0
  %v324 = vsel %vm280, %v246, 0
  %v327 = vsel %vm280, %v247, 0
  %v330 = vsel %vm280, %v248, 0
  %v333 = vsel %vm280, %v249, 0
  %v336 = vsel %vm280, %v250, 0
  %v339 = vsel %vm280, %v251, 0
  %v342 = vsel %vm280, %v252, 0
  %v345 = vsel %vm280, %v253, 0
  %v348 = vsel %vm280, %v254, 0
  %v351 = vsel %vm280, %v255, 0
  %v354 = vsel %vm280, %v256, 0
  %v357 = vsel %vm280, %v257, 0
  %v360 = vsel %vm280, %v258, 0
  %v363 = vsel %vm280, %v259, 0
  %365 = vmatprep.subr.bf16.mxu0 0
  %366 = vmatpush1.bf16.msra.mxu0 0
  %367 = vmatprep.subr.bf16.mxu0 0
  %368 = vmatpush1.bf16.msra.mxu0 0
  %369 = vmatprep.subr.bf16.mxu0 0
  %370 = vmatpush1.bf16.msra.mxu0 0
  %371 = vmatprep.subr.bf16.mxu0 0
  %372 = vmatpush1.bf16.msra.mxu0 0
  %373 = vmatprep.subr.bf16.mxu0 0
  %374 = vmatpush1.bf16.msra.mxu0 0
  %375 = vmatprep.subr.bf16.mxu0 0
  %376 = vmatpush1.bf16.msra.mxu0 0
  %377 = vmatprep.subr.bf16.mxu0 %v275
  %378 = vmatpush1.bf16.msra.mxu0 %v274
  %379 = vmatprep.subr.bf16.mxu0 %v273
  %380 = vmatpush1.bf16.msra.mxu0 %v272
  %381 = vmatprep.subr.bf16.mxu0 0
  %382 = vmatpush2.bf16.msra.mxu0 0
  %383 = vmatprep.subr.bf16.mxu0 0
  %384 = vmatpush2.bf16.msra.mxu0 0
  %385 = vmatprep.subr.bf16.mxu0 0
  %386 = vmatpush2.bf16.msra.mxu0 0
  %387 = vmatprep.subr.bf16.mxu0 0
  %388 = vmatpush2.bf16.msra.mxu0 0
  %389 = vmatprep.subr.bf16.mxu0 0
  %390 = vmatpush2.bf16.msra.mxu0 0
  %391 = vmatprep.subr.bf16.mxu0 0
  %392 = vmatpush2.bf16.msra.mxu0 0
  %393 = vmatprep.subr.bf16.mxu0 0
  %394 = vmatpush2.bf16.msra.mxu0 0
  %395 = vmatprep.subr.bf16.mxu0 0
  %396 = vmatpush2.bf16.msra.mxu0 0
  %397 = vmatprep.mubr.bf16.mxu0 0
  %398 = vmatmul.mubr.bf16.gmra.mxu0 %v282
  %v399 = vpop.f32.mrf.mxu0
  %v400 = vadd.f32 0.0, %v399
  %v401 = vpop.f32.mrf.mxu0
  %v402 = vadd.f32 0.0, %v401
  %v403 = vpop.f32.mrf.mxu0
  %v404 = vadd.f32 0.0, %v403
  %v405 = vpop.f32.mrf.mxu0
  %v406 = vadd.f32 0.0, %v405
  %407 = vmatprep.mubr.bf16.mxu0 0
  %408 = vmatmul.mubr.bf16.gmra.mxu0 %v285
  %v409 = vpop.f32.mrf.mxu0
  %v410 = vadd.f32 0.0, %v409
  %v411 = vpop.f32.mrf.mxu0
  %v412 = vadd.f32 0.0, %v411
  %v413 = vpop.f32.mrf.mxu0
  %v414 = vadd.f32 0.0, %v413
  %v415 = vpop.f32.mrf.mxu0
  %v416 = vadd.f32 0.0, %v415
  %417 = vmatprep.mubr.bf16.mxu0 0
  %418 = vmatmul.mubr.bf16.gmra.mxu0 %v288
  %v419 = vpop.f32.mrf.mxu0
  %v420 = vadd.f32 0.0, %v419
  %v421 = vpop.f32.mrf.mxu0
  %v422 = vadd.f32 0.0, %v421
  %v423 = vpop.f32.mrf.mxu0
  %v424 = vadd.f32 0.0, %v423
  %v425 = vpop.f32.mrf.mxu0
  %v426 = vadd.f32 0.0, %v425
  %427 = vmatprep.mubr.bf16.mxu0 0
  %428 = vmatmul.mubr.bf16.gmra.mxu0 %v291
  %v429 = vpop.f32.mrf.mxu0
  %v430 = vadd.f32 0.0, %v429
  %v431 = vpop.f32.mrf.mxu0
  %v432 = vadd.f32 0.0, %v431
  %v433 = vpop.f32.mrf.mxu0
  %v434 = vadd.f32 0.0, %v433
  %v435 = vpop.f32.mrf.mxu0
  %v436 = vadd.f32 0.0, %v435
  %437 = vmatprep.mubr.bf16.mxu0 0
  %438 = vmatmul.mubr.bf16.gmra.mxu0 %v294
  %v439 = vpop.f32.mrf.mxu0
  %v440 = vadd.f32 0.0, %v439
  %v441 = vpop.f32.mrf.mxu0
  %v442 = vadd.f32 0.0, %v441
  %v443 = vpop.f32.mrf.mxu0
  %v444 = vadd.f32 0.0, %v443
  %v445 = vpop.f32.mrf.mxu0
  %v446 = vadd.f32 0.0, %v445
  %447 = vmatprep.mubr.bf16.mxu0 0
  %448 = vmatmul.mubr.bf16.gmra.mxu0 %v297
  %v449 = vpop.f32.mrf.mxu0
  %v450 = vadd.f32 0.0, %v449
  %v451 = vpop.f32.mrf.mxu0
  %v452 = vadd.f32 0.0, %v451
  %v453 = vpop.f32.mrf.mxu0
  %v454 = vadd.f32 0.0, %v453
  %v455 = vpop.f32.mrf.mxu0
  %v456 = vadd.f32 0.0, %v455
  %457 = vmatprep.mubr.bf16.mxu0 0
  %458 = vmatmul.mubr.bf16.gmra.mxu0 %v300
  %v459 = vpop.f32.mrf.mxu0
  %v460 = vadd.f32 0.0, %v459
  %v461 = vpop.f32.mrf.mxu0
  %v462 = vadd.f32 0.0, %v461
  %v463 = vpop.f32.mrf.mxu0
  %v464 = vadd.f32 0.0, %v463
  %v465 = vpop.f32.mrf.mxu0
  %v466 = vadd.f32 0.0, %v465
  %467 = vmatprep.mubr.bf16.mxu0 0
  %468 = vmatmul.mubr.bf16.gmra.mxu0 %v303
  %v469 = vpop.f32.mrf.mxu0
  %v470 = vadd.f32 0.0, %v469
  %v471 = vpop.f32.mrf.mxu0
  %v472 = vadd.f32 0.0, %v471
  %v473 = vpop.f32.mrf.mxu0
  %v474 = vadd.f32 0.0, %v473
  %v475 = vpop.f32.mrf.mxu0
  %v476 = vadd.f32 0.0, %v475
  %477 = vmatprep.mubr.bf16.mxu0 0
  %478 = vmatmul.mubr.bf16.gmra.mxu0 %v306
  %v479 = vpop.f32.mrf.mxu0
  %v480 = vadd.f32 0.0, %v479
  %v481 = vpop.f32.mrf.mxu0
  %v482 = vadd.f32 0.0, %v481
  %v483 = vpop.f32.mrf.mxu0
  %v484 = vadd.f32 0.0, %v483
  %v485 = vpop.f32.mrf.mxu0
  %v486 = vadd.f32 0.0, %v485
  %487 = vmatprep.mubr.bf16.mxu0 0
  %488 = vmatmul.mubr.bf16.gmra.mxu0 %v309
  %v489 = vpop.f32.mrf.mxu0
  %v490 = vadd.f32 0.0, %v489
  %v491 = vpop.f32.mrf.mxu0
  %v492 = vadd.f32 0.0, %v491
  %v493 = vpop.f32.mrf.mxu0
  %v494 = vadd.f32 0.0, %v493
  %v495 = vpop.f32.mrf.mxu0
  %v496 = vadd.f32 0.0, %v495
  %497 = vmatprep.mubr.bf16.mxu0 0
  %498 = vmatmul.mubr.bf16.gmra.mxu0 %v312
  %v499 = vpop.f32.mrf.mxu0
  %v500 = vadd.f32 0.0, %v499
  %v501 = vpop.f32.mrf.mxu0
  %v502 = vadd.f32 0.0, %v501
  %v503 = vpop.f32.mrf.mxu0
  %v504 = vadd.f32 0.0, %v503
  %v505 = vpop.f32.mrf.mxu0
  %v506 = vadd.f32 0.0, %v505
  %507 = vmatprep.mubr.bf16.mxu0 0
  %508 = vmatmul.mubr.bf16.gmra.mxu0 %v315
  %v509 = vpop.f32.mrf.mxu0
  %v510 = vadd.f32 0.0, %v509
  %v511 = vpop.f32.mrf.mxu0
  %v512 = vadd.f32 0.0, %v511
  %v513 = vpop.f32.mrf.mxu0
  %v514 = vadd.f32 0.0, %v513
  %v515 = vpop.f32.mrf.mxu0
  %v516 = vadd.f32 0.0, %v515
  %517 = vmatprep.mubr.bf16.mxu0 0
  %518 = vmatmul.mubr.bf16.gmra.mxu0 %v318
  %v519 = vpop.f32.mrf.mxu0
  %v520 = vadd.f32 0.0, %v519
  %v521 = vpop.f32.mrf.mxu0
  %v522 = vadd.f32 0.0, %v521
  %v523 = vpop.f32.mrf.mxu0
  %v524 = vadd.f32 0.0, %v523
  %v525 = vpop.f32.mrf.mxu0
  %v526 = vadd.f32 0.0, %v525
  %527 = vmatprep.mubr.bf16.mxu0 0
  %528 = vmatmul.mubr.bf16.gmra.mxu0 %v321
  %v529 = vpop.f32.mrf.mxu0
  %v530 = vadd.f32 0.0, %v529
  %v531 = vpop.f32.mrf.mxu0
  %v532 = vadd.f32 0.0, %v531
  %v533 = vpop.f32.mrf.mxu0
  %v534 = vadd.f32 0.0, %v533
  %v535 = vpop.f32.mrf.mxu0
  %v536 = vadd.f32 0.0, %v535
  %537 = vmatprep.mubr.bf16.mxu0 0
  %538 = vmatmul.mubr.bf16.gmra.mxu0 %v324
  %v539 = vpop.f32.mrf.mxu0
  %v540 = vadd.f32 0.0, %v539
  %v541 = vpop.f32.mrf.mxu0
  %v542 = vadd.f32 0.0, %v541
  %v543 = vpop.f32.mrf.mxu0
  %v544 = vadd.f32 0.0, %v543
  %v545 = vpop.f32.mrf.mxu0
  %v546 = vadd.f32 0.0, %v545
  %547 = vmatprep.mubr.bf16.mxu0 0
  %548 = vmatmul.mubr.bf16.gmra.mxu0 %v327
  %v549 = vpop.f32.mrf.mxu0
  %v550 = vadd.f32 0.0, %v549
  %v551 = vpop.f32.mrf.mxu0
  %v552 = vadd.f32 0.0, %v551
  %v553 = vpop.f32.mrf.mxu0
  %v554 = vadd.f32 0.0, %v553
  %v555 = vpop.f32.mrf.mxu0
  %v556 = vadd.f32 0.0, %v555
  %557 = vmatprep.mubr.bf16.mxu0 0
  %558 = vmatmul.mubr.bf16.gmra.mxu0 %v330
  %v559 = vpop.f32.mrf.mxu0
  %v560 = vadd.f32 0.0, %v559
  %v561 = vpop.f32.mrf.mxu0
  %v562 = vadd.f32 0.0, %v561
  %v563 = vpop.f32.mrf.mxu0
  %v564 = vadd.f32 0.0, %v563
  %v565 = vpop.f32.mrf.mxu0
  %v566 = vadd.f32 0.0, %v565
  %567 = vmatprep.mubr.bf16.mxu0 0
  %568 = vmatmul.mubr.bf16.gmra.mxu0 %v333
  %v569 = vpop.f32.mrf.mxu0
  %v570 = vadd.f32 0.0, %v569
  %v571 = vpop.f32.mrf.mxu0
  %v572 = vadd.f32 0.0, %v571
  %v573 = vpop.f32.mrf.mxu0
  %v574 = vadd.f32 0.0, %v573
  %v575 = vpop.f32.mrf.mxu0
  %v576 = vadd.f32 0.0, %v575
  %577 = vmatprep.mubr.bf16.mxu0 0
  %578 = vmatmul.mubr.bf16.gmra.mxu0 %v336
  %v579 = vpop.f32.mrf.mxu0
  %v580 = vadd.f32 0.0, %v579
  %v581 = vpop.f32.mrf.mxu0
  %v582 = vadd.f32 0.0, %v581
  %v583 = vpop.f32.mrf.mxu0
  %v584 = vadd.f32 0.0, %v583
  %v585 = vpop.f32.mrf.mxu0
  %v586 = vadd.f32 0.0, %v585
  %587 = vmatprep.mubr.bf16.mxu0 0
  %588 = vmatmul.mubr.bf16.gmra.mxu0 %v339
  %v589 = vpop.f32.mrf.mxu0
  %v590 = vadd.f32 0.0, %v589
  %v591 = vpop.f32.mrf.mxu0
  %v592 = vadd.f32 0.0, %v591
  %v593 = vpop.f32.mrf.mxu0
  %v594 = vadd.f32 0.0, %v593
  %v595 = vpop.f32.mrf.mxu0
  %v596 = vadd.f32 0.0, %v595
  %597 = vmatprep.mubr.bf16.mxu0 0
  %598 = vmatmul.mubr.bf16.gmra.mxu0 %v342
  %v599 = vpop.f32.mrf.mxu0
  %v600 = vadd.f32 0.0, %v599
  %v601 = vpop.f32.mrf.mxu0
  %v602 = vadd.f32 0.0, %v601
  %v603 = vpop.f32.mrf.mxu0
  %v604 = vadd.f32 0.0, %v603
  %v605 = vpop.f32.mrf.mxu0
  %v606 = vadd.f32 0.0, %v605
  %607 = vmatprep.mubr.bf16.mxu0 0
  %608 = vmatmul.mubr.bf16.gmra.mxu0 %v345
  %v609 = vpop.f32.mrf.mxu0
  %v610 = vadd.f32 0.0, %v609
  %v611 = vpop.f32.mrf.mxu0
  %v612 = vadd.f32 0.0, %v611
  %v613 = vpop.f32.mrf.mxu0
  %v614 = vadd.f32 0.0, %v613
  %v615 = vpop.f32.mrf.mxu0
  %v616 = vadd.f32 0.0, %v615
  %617 = vmatprep.mubr.bf16.mxu0 0
  %618 = vmatmul.mubr.bf16.gmra.mxu0 %v348
  %v619 = vpop.f32.mrf.mxu0
  %v620 = vadd.f32 0.0, %v619
  %v621 = vpop.f32.mrf.mxu0
  %v622 = vadd.f32 0.0, %v621
  %v623 = vpop.f32.mrf.mxu0
  %v624 = vadd.f32 0.0, %v623
  %v625 = vpop.f32.mrf.mxu0
  %v626 = vadd.f32 0.0, %v625
  %627 = vmatprep.mubr.bf16.mxu0 0
  %628 = vmatmul.mubr.bf16.gmra.mxu0 %v351
  %v629 = vpop.f32.mrf.mxu0
  %v630 = vadd.f32 0.0, %v629
  %v631 = vpop.f32.mrf.mxu0
  %v632 = vadd.f32 0.0, %v631
  %v633 = vpop.f32.mrf.mxu0
  %v634 = vadd.f32 0.0, %v633
  %v635 = vpop.f32.mrf.mxu0
  %v636 = vadd.f32 0.0, %v635
  %637 = vmatprep.mubr.bf16.mxu0 0
  %638 = vmatmul.mubr.bf16.gmra.mxu0 %v354
  %v639 = vpop.f32.mrf.mxu0
  %v640 = vadd.f32 0.0, %v639
  %v641 = vpop.f32.mrf.mxu0
  %v642 = vadd.f32 0.0, %v641
  %v643 = vpop.f32.mrf.mxu0
  %v644 = vadd.f32 0.0, %v643
  %v645 = vpop.f32.mrf.mxu0
  %v646 = vadd.f32 0.0, %v645
  %647 = vmatprep.mubr.bf16.mxu0 0
  %648 = vmatmul.mubr.bf16.gmra.mxu0 %v357
  %v649 = vpop.f32.mrf.mxu0
  %v650 = vadd.f32 0.0, %v649
  %v651 = vpop.f32.mrf.mxu0
  %v652 = vadd.f32 0.0, %v651
  %v653 = vpop.f32.mrf.mxu0
  %v654 = vadd.f32 0.0, %v653
  %v655 = vpop.f32.mrf.mxu0
  %v656 = vadd.f32 0.0, %v655
  %657 = vmatprep.mubr.bf16.mxu0 0
  %658 = vmatmul.mubr.bf16.gmra.mxu0 %v360
  %v659 = vpop.f32.mrf.mxu0
  %v660 = vadd.f32 0.0, %v659
  %v661 = vpop.f32.mrf.mxu0
  %v662 = vadd.f32 0.0, %v661
  %v663 = vpop.f32.mrf.mxu0
  %v664 = vadd.f32 0.0, %v663
  %v665 = vpop.f32.mrf.mxu0
  %v666 = vadd.f32 0.0, %v665
  %667 = vmatprep.mubr.bf16.mxu0 0
  %668 = vmatmul.mubr.bf16.gmra.mxu0 %v363
  %v669 = vpop.f32.mrf.mxu0
  %v670 = vadd.f32 0.0, %v669
  %v671 = vpop.f32.mrf.mxu0
  %v672 = vadd.f32 0.0, %v671
  %v673 = vpop.f32.mrf.mxu0
  %v674 = vadd.f32 0.0, %v673
  %v675 = vpop.f32.mrf.mxu0
  %v676 = vadd.f32 0.0, %v675
  %677 = vdwg.mxu0
  %v680 = vunpack.c.l.b16 %v47
  %v681 = vunpack.c.l.b16 %v48
  %v682 = vpack.c.b16 %v681, %v680
  %v687 = vunpack.c.l.b16 %v111
  %v688 = vunpack.c.h.b16 %v111
  %v689 = vunpack.c.l.b16 %v112
  %v690 = vunpack.c.h.b16 %v112
  %v691 = vunpack.c.l.b16 %v113
  %v692 = vunpack.c.h.b16 %v113
  %v693 = vunpack.c.l.b16 %v114
  %v694 = vunpack.c.h.b16 %v114
  %v695 = vpack.c.b16 %v689, %v687
  %v696 = vpack.c.b16 %v690, %v688
  %v697 = vpack.c.b16 %v693, %v691
  %v698 = vpack.c.b16 %v694, %v692
  %v704 = vsel %vm280, %v682, 0
  %706 = vmatprep.subr.bf16.mxu0 0
  %707 = vmatpush1.bf16.msra.mxu0 0
  %708 = vmatprep.subr.bf16.mxu0 0
  %709 = vmatpush1.bf16.msra.mxu0 0
  %710 = vmatprep.subr.bf16.mxu0 0
  %711 = vmatpush1.bf16.msra.mxu0 0
  %712 = vmatprep.subr.bf16.mxu0 0
  %713 = vmatpush1.bf16.msra.mxu0 0
  %714 = vmatprep.subr.bf16.mxu0 0
  %715 = vmatpush1.bf16.msra.mxu0 0
  %716 = vmatprep.subr.bf16.mxu0 0
  %717 = vmatpush1.bf16.msra.mxu0 0
  %718 = vmatprep.subr.bf16.mxu0 %v698
  %719 = vmatpush1.bf16.msra.mxu0 %v697
  %720 = vmatprep.subr.bf16.mxu0 %v696
  %721 = vmatpush1.bf16.msra.mxu0 %v695
  %722 = vmatprep.subr.bf16.mxu0 0
  %723 = vmatpush2.bf16.msra.mxu0 0
  %724 = vmatprep.subr.bf16.mxu0 0
  %725 = vmatpush2.bf16.msra.mxu0 0
  %726 = vmatprep.subr.bf16.mxu0 0
  %727 = vmatpush2.bf16.msra.mxu0 0
  %728 = vmatprep.subr.bf16.mxu0 0
  %729 = vmatpush2.bf16.msra.mxu0 0
  %730 = vmatprep.subr.bf16.mxu0 0
  %731 = vmatpush2.bf16.msra.mxu0 0
  %732 = vmatprep.subr.bf16.mxu0 0
  %733 = vmatpush2.bf16.msra.mxu0 0
  %734 = vmatprep.subr.bf16.mxu0 0
  %735 = vmatpush2.bf16.msra.mxu0 0
  %736 = vmatprep.subr.bf16.mxu0 0
  %737 = vmatpush2.bf16.msra.mxu0 0
  %738 = vmatprep.mubr.bf16.mxu0 0
  %739 = vmatmul.mubr.bf16.gmra.mxu0 %v704
  %v740 = vpop.f32.mrf.mxu0
  %v741 = vadd.f32 %v400, %v740
  %v742 = vpop.f32.mrf.mxu0
  %v743 = vadd.f32 %v402, %v742
  %v744 = vpop.f32.mrf.mxu0
  %v745 = vadd.f32 %v404, %v744
  %v746 = vpop.f32.mrf.mxu0
  %v747 = vadd.f32 %v406, %v746
  %748 = vmatprep.mubr.bf16.mxu0 0
  %749 = vmatmul.mubr.bf16.gmra.mxu0 %v282
  %v750 = vpop.f32.mrf.mxu0
  %v751 = vadd.f32 %v410, %v750
  %v752 = vpop.f32.mrf.mxu0
  %v753 = vadd.f32 %v412, %v752
  %v754 = vpop.f32.mrf.mxu0
  %v755 = vadd.f32 %v414, %v754
  %v756 = vpop.f32.mrf.mxu0
  %v757 = vadd.f32 %v416, %v756
  %758 = vmatprep.mubr.bf16.mxu0 0
  %759 = vmatmul.mubr.bf16.gmra.mxu0 %v285
  %v760 = vpop.f32.mrf.mxu0
  %v761 = vadd.f32 %v420, %v760
  %v762 = vpop.f32.mrf.mxu0
  %v763 = vadd.f32 %v422, %v762
  %v764 = vpop.f32.mrf.mxu0
  %v765 = vadd.f32 %v424, %v764
  %v766 = vpop.f32.mrf.mxu0
  %v767 = vadd.f32 %v426, %v766
  %768 = vmatprep.mubr.bf16.mxu0 0
  %769 = vmatmul.mubr.bf16.gmra.mxu0 %v288
  %v770 = vpop.f32.mrf.mxu0
  %v771 = vadd.f32 %v430, %v770
  %v772 = vpop.f32.mrf.mxu0
  %v773 = vadd.f32 %v432, %v772
  %v774 = vpop.f32.mrf.mxu0
  %v775 = vadd.f32 %v434, %v774
  %v776 = vpop.f32.mrf.mxu0
  %v777 = vadd.f32 %v436, %v776
  %778 = vmatprep.mubr.bf16.mxu0 0
  %779 = vmatmul.mubr.bf16.gmra.mxu0 %v291
  %v780 = vpop.f32.mrf.mxu0
  %v781 = vadd.f32 %v440, %v780
  %v782 = vpop.f32.mrf.mxu0
  %v783 = vadd.f32 %v442, %v782
  %v784 = vpop.f32.mrf.mxu0
  %v785 = vadd.f32 %v444, %v784
  %v786 = vpop.f32.mrf.mxu0
  %v787 = vadd.f32 %v446, %v786
  %788 = vmatprep.mubr.bf16.mxu0 0
  %789 = vmatmul.mubr.bf16.gmra.mxu0 %v294
  %v790 = vpop.f32.mrf.mxu0
  %v791 = vadd.f32 %v450, %v790
  %v792 = vpop.f32.mrf.mxu0
  %v793 = vadd.f32 %v452, %v792
  %v794 = vpop.f32.mrf.mxu0
  %v795 = vadd.f32 %v454, %v794
  %v796 = vpop.f32.mrf.mxu0
  %v797 = vadd.f32 %v456, %v796
  %798 = vmatprep.mubr.bf16.mxu0 0
  %799 = vmatmul.mubr.bf16.gmra.mxu0 %v297
  %v800 = vpop.f32.mrf.mxu0
  %v801 = vadd.f32 %v460, %v800
  %v802 = vpop.f32.mrf.mxu0
  %v803 = vadd.f32 %v462, %v802
  %v804 = vpop.f32.mrf.mxu0
  %v805 = vadd.f32 %v464, %v804
  %v806 = vpop.f32.mrf.mxu0
  %v807 = vadd.f32 %v466, %v806
  %808 = vmatprep.mubr.bf16.mxu0 0
  %809 = vmatmul.mubr.bf16.gmra.mxu0 %v300
  %v810 = vpop.f32.mrf.mxu0
  %v811 = vadd.f32 %v470, %v810
  %v812 = vpop.f32.mrf.mxu0
  %v813 = vadd.f32 %v472, %v812
  %v814 = vpop.f32.mrf.mxu0
  %v815 = vadd.f32 %v474, %v814
  %v816 = vpop.f32.mrf.mxu0
  %v817 = vadd.f32 %v476, %v816
  %818 = vmatprep.mubr.bf16.mxu0 0
  %819 = vmatmul.mubr.bf16.gmra.mxu0 %v303
  %v820 = vpop.f32.mrf.mxu0
  %v821 = vadd.f32 %v480, %v820
  %v822 = vpop.f32.mrf.mxu0
  %v823 = vadd.f32 %v482, %v822
  %v824 = vpop.f32.mrf.mxu0
  %v825 = vadd.f32 %v484, %v824
  %v826 = vpop.f32.mrf.mxu0
  %v827 = vadd.f32 %v486, %v826
  %828 = vmatprep.mubr.bf16.mxu0 0
  %829 = vmatmul.mubr.bf16.gmra.mxu0 %v306
  %v830 = vpop.f32.mrf.mxu0
  %v831 = vadd.f32 %v490, %v830
  %v832 = vpop.f32.mrf.mxu0
  %v833 = vadd.f32 %v492, %v832
  %v834 = vpop.f32.mrf.mxu0
  %v835 = vadd.f32 %v494, %v834
  %v836 = vpop.f32.mrf.mxu0
  %v837 = vadd.f32 %v496, %v836
  %838 = vmatprep.mubr.bf16.mxu0 0
  %839 = vmatmul.mubr.bf16.gmra.mxu0 %v309
  %v840 = vpop.f32.mrf.mxu0
  %v841 = vadd.f32 %v500, %v840
  %v842 = vpop.f32.mrf.mxu0
  %v843 = vadd.f32 %v502, %v842
  %v844 = vpop.f32.mrf.mxu0
  %v845 = vadd.f32 %v504, %v844
  %v846 = vpop.f32.mrf.mxu0
  %v847 = vadd.f32 %v506, %v846
  %848 = vmatprep.mubr.bf16.mxu0 0
  %849 = vmatmul.mubr.bf16.gmra.mxu0 %v312
  %v850 = vpop.f32.mrf.mxu0
  %v851 = vadd.f32 %v510, %v850
  %v852 = vpop.f32.mrf.mxu0
  %v853 = vadd.f32 %v512, %v852
  %v854 = vpop.f32.mrf.mxu0
  %v855 = vadd.f32 %v514, %v854
  %v856 = vpop.f32.mrf.mxu0
  %v857 = vadd.f32 %v516, %v856
  %858 = vmatprep.mubr.bf16.mxu0 0
  %859 = vmatmul.mubr.bf16.gmra.mxu0 %v315
  %v860 = vpop.f32.mrf.mxu0
  %v861 = vadd.f32 %v520, %v860
  %v862 = vpop.f32.mrf.mxu0
  %v863 = vadd.f32 %v522, %v862
  %v864 = vpop.f32.mrf.mxu0
  %v865 = vadd.f32 %v524, %v864
  %v866 = vpop.f32.mrf.mxu0
  %v867 = vadd.f32 %v526, %v866
  %868 = vmatprep.mubr.bf16.mxu0 0
  %869 = vmatmul.mubr.bf16.gmra.mxu0 %v318
  %v870 = vpop.f32.mrf.mxu0
  %v871 = vadd.f32 %v530, %v870
  %v872 = vpop.f32.mrf.mxu0
  %v873 = vadd.f32 %v532, %v872
  %v874 = vpop.f32.mrf.mxu0
  %v875 = vadd.f32 %v534, %v874
  %v876 = vpop.f32.mrf.mxu0
  %v877 = vadd.f32 %v536, %v876
  %878 = vmatprep.mubr.bf16.mxu0 0
  %879 = vmatmul.mubr.bf16.gmra.mxu0 %v321
  %v880 = vpop.f32.mrf.mxu0
  %v881 = vadd.f32 %v540, %v880
  %v882 = vpop.f32.mrf.mxu0
  %v883 = vadd.f32 %v542, %v882
  %v884 = vpop.f32.mrf.mxu0
  %v885 = vadd.f32 %v544, %v884
  %v886 = vpop.f32.mrf.mxu0
  %v887 = vadd.f32 %v546, %v886
  %888 = vmatprep.mubr.bf16.mxu0 0
  %889 = vmatmul.mubr.bf16.gmra.mxu0 %v324
  %v890 = vpop.f32.mrf.mxu0
  %v891 = vadd.f32 %v550, %v890
  %v892 = vpop.f32.mrf.mxu0
  %v893 = vadd.f32 %v552, %v892
  %v894 = vpop.f32.mrf.mxu0
  %v895 = vadd.f32 %v554, %v894
  %v896 = vpop.f32.mrf.mxu0
  %v897 = vadd.f32 %v556, %v896
  %898 = vmatprep.mubr.bf16.mxu0 0
  %899 = vmatmul.mubr.bf16.gmra.mxu0 %v327
  %v900 = vpop.f32.mrf.mxu0
  %v901 = vadd.f32 %v560, %v900
  %v902 = vpop.f32.mrf.mxu0
  %v903 = vadd.f32 %v562, %v902
  %v904 = vpop.f32.mrf.mxu0
  %v905 = vadd.f32 %v564, %v904
  %v906 = vpop.f32.mrf.mxu0
  %v907 = vadd.f32 %v566, %v906
  %908 = vmatprep.mubr.bf16.mxu0 0
  %909 = vmatmul.mubr.bf16.gmra.mxu0 %v330
  %v910 = vpop.f32.mrf.mxu0
  %v911 = vadd.f32 %v570, %v910
  %v912 = vpop.f32.mrf.mxu0
  %v913 = vadd.f32 %v572, %v912
  %v914 = vpop.f32.mrf.mxu0
  %v915 = vadd.f32 %v574, %v914
  %v916 = vpop.f32.mrf.mxu0
  %v917 = vadd.f32 %v576, %v916
  %918 = vmatprep.mubr.bf16.mxu0 0
  %919 = vmatmul.mubr.bf16.gmra.mxu0 %v333
  %v920 = vpop.f32.mrf.mxu0
  %v921 = vadd.f32 %v580, %v920
  %v922 = vpop.f32.mrf.mxu0
  %v923 = vadd.f32 %v582, %v922
  %v924 = vpop.f32.mrf.mxu0
  %v925 = vadd.f32 %v584, %v924
  %v926 = vpop.f32.mrf.mxu0
  %v927 = vadd.f32 %v586, %v926
  %928 = vmatprep.mubr.bf16.mxu0 0
  %929 = vmatmul.mubr.bf16.gmra.mxu0 %v336
  %v930 = vpop.f32.mrf.mxu0
  %v931 = vadd.f32 %v590, %v930
  %v932 = vpop.f32.mrf.mxu0
  %v933 = vadd.f32 %v592, %v932
  %v934 = vpop.f32.mrf.mxu0
  %v935 = vadd.f32 %v594, %v934
  %v936 = vpop.f32.mrf.mxu0
  %v937 = vadd.f32 %v596, %v936
  %938 = vmatprep.mubr.bf16.mxu0 0
  %939 = vmatmul.mubr.bf16.gmra.mxu0 %v339
  %v940 = vpop.f32.mrf.mxu0
  %v941 = vadd.f32 %v600, %v940
  %v942 = vpop.f32.mrf.mxu0
  %v943 = vadd.f32 %v602, %v942
  %v944 = vpop.f32.mrf.mxu0
  %v945 = vadd.f32 %v604, %v944
  %v946 = vpop.f32.mrf.mxu0
  %v947 = vadd.f32 %v606, %v946
  %948 = vmatprep.mubr.bf16.mxu0 0
  %949 = vmatmul.mubr.bf16.gmra.mxu0 %v342
  %v950 = vpop.f32.mrf.mxu0
  %v951 = vadd.f32 %v610, %v950
  %v952 = vpop.f32.mrf.mxu0
  %v953 = vadd.f32 %v612, %v952
  %v954 = vpop.f32.mrf.mxu0
  %v955 = vadd.f32 %v614, %v954
  %v956 = vpop.f32.mrf.mxu0
  %v957 = vadd.f32 %v616, %v956
  %958 = vmatprep.mubr.bf16.mxu0 0
  %959 = vmatmul.mubr.bf16.gmra.mxu0 %v345
  %v960 = vpop.f32.mrf.mxu0
  %v961 = vadd.f32 %v620, %v960
  %v962 = vpop.f32.mrf.mxu0
  %v963 = vadd.f32 %v622, %v962
  %v964 = vpop.f32.mrf.mxu0
  %v965 = vadd.f32 %v624, %v964
  %v966 = vpop.f32.mrf.mxu0
  %v967 = vadd.f32 %v626, %v966
  %968 = vmatprep.mubr.bf16.mxu0 0
  %969 = vmatmul.mubr.bf16.gmra.mxu0 %v348
  %v970 = vpop.f32.mrf.mxu0
  %v971 = vadd.f32 %v630, %v970
  %v972 = vpop.f32.mrf.mxu0
  %v973 = vadd.f32 %v632, %v972
  %v974 = vpop.f32.mrf.mxu0
  %v975 = vadd.f32 %v634, %v974
  %v976 = vpop.f32.mrf.mxu0
  %v977 = vadd.f32 %v636, %v976
  %978 = vmatprep.mubr.bf16.mxu0 0
  %979 = vmatmul.mubr.bf16.gmra.mxu0 %v351
  %v980 = vpop.f32.mrf.mxu0
  %v981 = vadd.f32 %v640, %v980
  %v982 = vpop.f32.mrf.mxu0
  %v983 = vadd.f32 %v642, %v982
  %v984 = vpop.f32.mrf.mxu0
  %v985 = vadd.f32 %v644, %v984
  %v986 = vpop.f32.mrf.mxu0
  %v987 = vadd.f32 %v646, %v986
  %988 = vmatprep.mubr.bf16.mxu0 0
  %989 = vmatmul.mubr.bf16.gmra.mxu0 %v354
  %v990 = vpop.f32.mrf.mxu0
  %v991 = vadd.f32 %v650, %v990
  %v992 = vpop.f32.mrf.mxu0
  %v993 = vadd.f32 %v652, %v992
  %v994 = vpop.f32.mrf.mxu0
  %v995 = vadd.f32 %v654, %v994
  %v996 = vpop.f32.mrf.mxu0
  %v997 = vadd.f32 %v656, %v996
  %998 = vmatprep.mubr.bf16.mxu0 0
  %999 = vmatmul.mubr.bf16.gmra.mxu0 %v357
  %v1000 = vpop.f32.mrf.mxu0
  %v1001 = vadd.f32 %v660, %v1000
  %v1002 = vpop.f32.mrf.mxu0
  %v1003 = vadd.f32 %v662, %v1002
  %v1004 = vpop.f32.mrf.mxu0
  %v1005 = vadd.f32 %v664, %v1004
  %v1006 = vpop.f32.mrf.mxu0
  %v1007 = vadd.f32 %v666, %v1006
  %1008 = vmatprep.mubr.bf16.mxu0 0
  %1009 = vmatmul.mubr.bf16.gmra.mxu0 %v360
  %v1010 = vpop.f32.mrf.mxu0
  %v1011 = vadd.f32 %v670, %v1010
  %v1012 = vpop.f32.mrf.mxu0
  %v1013 = vadd.f32 %v672, %v1012
  %v1014 = vpop.f32.mrf.mxu0
  %v1015 = vadd.f32 %v674, %v1014
  %v1016 = vpop.f32.mrf.mxu0
  %v1017 = vadd.f32 %v676, %v1016
  %1018 = vdwg.mxu0
  %s1019 = scalar_lea.vmem %s1, 64
  %v1020 = vld [vmem:[%s1019] sm:$0xff]
  %v1021 = vld [vmem:[%s1019 + $0x8] sm:$0xff]
  %v1022 = vld [vmem:[%s1019 + $0x10] sm:$0xff]
  %v1023 = vld [vmem:[%s1019 + $0x18] sm:$0xff]
  %v1026 = vunpack.c.l.b16 %v105
  %v1027 = vunpack.c.l.b16 %v106
  %v1028 = vpack.c.b16 %v1027, %v1026
  %v1033 = vunpack.c.l.b16 %v1020
  %v1034 = vunpack.c.h.b16 %v1020
  %v1035 = vunpack.c.l.b16 %v1021
  %v1036 = vunpack.c.h.b16 %v1021
  %v1037 = vunpack.c.l.b16 %v1022
  %v1038 = vunpack.c.h.b16 %v1022
  %v1039 = vunpack.c.l.b16 %v1023
  %v1040 = vunpack.c.h.b16 %v1023
  %v1041 = vpack.c.b16 %v1035, %v1033
  %v1042 = vpack.c.b16 %v1036, %v1034
  %v1043 = vpack.c.b16 %v1039, %v1037
  %v1044 = vpack.c.b16 %v1040, %v1038
  %v1050 = vsel %vm280, %v1028, 0
  %1052 = vmatprep.subr.bf16.mxu0 0
  %1053 = vmatpush1.bf16.msra.mxu0 0
  %1054 = vmatprep.subr.bf16.mxu0 0
  %1055 = vmatpush1.bf16.msra.mxu0 0
  %1056 = vmatprep.subr.bf16.mxu0 0
  %1057 = vmatpush1.bf16.msra.mxu0 0
  %1058 = vmatprep.subr.bf16.mxu0 0
  %1059 = vmatpush1.bf16.msra.mxu0 0
  %1060 = vmatprep.subr.bf16.mxu0 0
  %1061 = vmatpush1.bf16.msra.mxu0 0
  %1062 = vmatprep.subr.bf16.mxu0 0
  %1063 = vmatpush1.bf16.msra.mxu0 0
  %1064 = vmatprep.subr.bf16.mxu0 %v1044
  %1065 = vmatpush1.bf16.msra.mxu0 %v1043
  %1066 = vmatprep.subr.bf16.mxu0 %v1042
  %1067 = vmatpush1.bf16.msra.mxu0 %v1041
  %1068 = vmatprep.subr.bf16.mxu0 0
  %1069 = vmatpush2.bf16.msra.mxu0 0
  %1070 = vmatprep.subr.bf16.mxu0 0
  %1071 = vmatpush2.bf16.msra.mxu0 0
  %1072 = vmatprep.subr.bf16.mxu0 0
  %1073 = vmatpush2.bf16.msra.mxu0 0
  %1074 = vmatprep.subr.bf16.mxu0 0
  %1075 = vmatpush2.bf16.msra.mxu0 0
  %1076 = vmatprep.subr.bf16.mxu0 0
  %1077 = vmatpush2.bf16.msra.mxu0 0
  %1078 = vmatprep.subr.bf16.mxu0 0
  %1079 = vmatpush2.bf16.msra.mxu0 0
  %1080 = vmatprep.subr.bf16.mxu0 0
  %1081 = vmatpush2.bf16.msra.mxu0 0
  %1082 = vmatprep.subr.bf16.mxu0 0
  %1083 = vmatpush2.bf16.msra.mxu0 0
  %1084 = vmatprep.mubr.bf16.mxu0 0
  %1085 = vmatmul.mubr.bf16.gmra.mxu0 %v285
  %v1086 = vpop.f32.mrf.mxu0
  %v1087 = vadd.f32 0.0, %v1086
  %v1088 = vpop.f32.mrf.mxu0
  %v1089 = vadd.f32 0.0, %v1088
  %v1090 = vpop.f32.mrf.mxu0
  %v1091 = vadd.f32 0.0, %v1090
  %v1092 = vpop.f32.mrf.mxu0
  %v1093 = vadd.f32 0.0, %v1092
  %1094 = vmatprep.mubr.bf16.mxu0 0
  %1095 = vmatmul.mubr.bf16.gmra.mxu0 %v288
  %v1096 = vpop.f32.mrf.mxu0
  %v1097 = vadd.f32 0.0, %v1096
  %v1098 = vpop.f32.mrf.mxu0
  %v1099 = vadd.f32 0.0, %v1098
  %v1100 = vpop.f32.mrf.mxu0
  %v1101 = vadd.f32 0.0, %v1100
  %v1102 = vpop.f32.mrf.mxu0
  %v1103 = vadd.f32 0.0, %v1102
  %1104 = vmatprep.mubr.bf16.mxu0 0
  %1105 = vmatmul.mubr.bf16.gmra.mxu0 %v291
  %v1106 = vpop.f32.mrf.mxu0
  %v1107 = vadd.f32 0.0, %v1106
  %v1108 = vpop.f32.mrf.mxu0
  %v1109 = vadd.f32 0.0, %v1108
  %v1110 = vpop.f32.mrf.mxu0
  %v1111 = vadd.f32 0.0, %v1110
  %v1112 = vpop.f32.mrf.mxu0
  %v1113 = vadd.f32 0.0, %v1112
  %1114 = vmatprep.mubr.bf16.mxu0 0
  %1115 = vmatmul.mubr.bf16.gmra.mxu0 %v294
  %v1116 = vpop.f32.mrf.mxu0
  %v1117 = vadd.f32 0.0, %v1116
  %v1118 = vpop.f32.mrf.mxu0
  %v1119 = vadd.f32 0.0, %v1118
  %v1120 = vpop.f32.mrf.mxu0
  %v1121 = vadd.f32 0.0, %v1120
  %v1122 = vpop.f32.mrf.mxu0
  %v1123 = vadd.f32 0.0, %v1122
  %1124 = vmatprep.mubr.bf16.mxu0 0
  %1125 = vmatmul.mubr.bf16.gmra.mxu0 %v297
  %v1126 = vpop.f32.mrf.mxu0
  %v1127 = vadd.f32 0.0, %v1126
  %v1128 = vpop.f32.mrf.mxu0
  %v1129 = vadd.f32 0.0, %v1128
  %v1130 = vpop.f32.mrf.mxu0
  %v1131 = vadd.f32 0.0, %v1130
  %v1132 = vpop.f32.mrf.mxu0
  %v1133 = vadd.f32 0.0, %v1132
  %1134 = vmatprep.mubr.bf16.mxu0 0
  %1135 = vmatmul.mubr.bf16.gmra.mxu0 %v300
  %v1136 = vpop.f32.mrf.mxu0
  %v1137 = vadd.f32 0.0, %v1136
  %v1138 = vpop.f32.mrf.mxu0
  %v1139 = vadd.f32 0.0, %v1138
  %v1140 = vpop.f32.mrf.mxu0
  %v1141 = vadd.f32 0.0, %v1140
  %v1142 = vpop.f32.mrf.mxu0
  %v1143 = vadd.f32 0.0, %v1142
  %1144 = vmatprep.mubr.bf16.mxu0 0
  %1145 = vmatmul.mubr.bf16.gmra.mxu0 %v303
  %v1146 = vpop.f32.mrf.mxu0
  %v1147 = vadd.f32 0.0, %v1146
  %v1148 = vpop.f32.mrf.mxu0
  %v1149 = vadd.f32 0.0, %v1148
  %v1150 = vpop.f32.mrf.mxu0
  %v1151 = vadd.f32 0.0, %v1150
  %v1152 = vpop.f32.mrf.mxu0
  %v1153 = vadd.f32 0.0, %v1152
  %1154 = vmatprep.mubr.bf16.mxu0 0
  %1155 = vmatmul.mubr.bf16.gmra.mxu0 %v306
  %v1156 = vpop.f32.mrf.mxu0
  %v1157 = vadd.f32 0.0, %v1156
  %v1158 = vpop.f32.mrf.mxu0
  %v1159 = vadd.f32 0.0, %v1158
  %v1160 = vpop.f32.mrf.mxu0
  %v1161 = vadd.f32 0.0, %v1160
  %v1162 = vpop.f32.mrf.mxu0
  %v1163 = vadd.f32 0.0, %v1162
  %1164 = vmatprep.mubr.bf16.mxu0 0
  %1165 = vmatmul.mubr.bf16.gmra.mxu0 %v309
  %v1166 = vpop.f32.mrf.mxu0
  %v1167 = vadd.f32 0.0, %v1166
  %v1168 = vpop.f32.mrf.mxu0
  %v1169 = vadd.f32 0.0, %v1168
  %v1170 = vpop.f32.mrf.mxu0
  %v1171 = vadd.f32 0.0, %v1170
  %v1172 = vpop.f32.mrf.mxu0
  %v1173 = vadd.f32 0.0, %v1172
  %1174 = vmatprep.mubr.bf16.mxu0 0
  %1175 = vmatmul.mubr.bf16.gmra.mxu0 %v312
  %v1176 = vpop.f32.mrf.mxu0
  %v1177 = vadd.f32 0.0, %v1176
  %v1178 = vpop.f32.mrf.mxu0
  %v1179 = vadd.f32 0.0, %v1178
  %v1180 = vpop.f32.mrf.mxu0
  %v1181 = vadd.f32 0.0, %v1180
  %v1182 = vpop.f32.mrf.mxu0
  %v1183 = vadd.f32 0.0, %v1182
  %1184 = vmatprep.mubr.bf16.mxu0 0
  %1185 = vmatmul.mubr.bf16.gmra.mxu0 %v315
  %v1186 = vpop.f32.mrf.mxu0
  %v1187 = vadd.f32 0.0, %v1186
  %v1188 = vpop.f32.mrf.mxu0
  %v1189 = vadd.f32 0.0, %v1188
  %v1190 = vpop.f32.mrf.mxu0
  %v1191 = vadd.f32 0.0, %v1190
  %v1192 = vpop.f32.mrf.mxu0
  %v1193 = vadd.f32 0.0, %v1192
  %1194 = vmatprep.mubr.bf16.mxu0 0
  %1195 = vmatmul.mubr.bf16.gmra.mxu0 %v318
  %v1196 = vpop.f32.mrf.mxu0
  %v1197 = vadd.f32 0.0, %v1196
  %v1198 = vpop.f32.mrf.mxu0
  %v1199 = vadd.f32 0.0, %v1198
  %v1200 = vpop.f32.mrf.mxu0
  %v1201 = vadd.f32 0.0, %v1200
  %v1202 = vpop.f32.mrf.mxu0
  %v1203 = vadd.f32 0.0, %v1202
  %1204 = vmatprep.mubr.bf16.mxu0 0
  %1205 = vmatmul.mubr.bf16.gmra.mxu0 %v321
  %v1206 = vpop.f32.mrf.mxu0
  %v1207 = vadd.f32 0.0, %v1206
  %v1208 = vpop.f32.mrf.mxu0
  %v1209 = vadd.f32 0.0, %v1208
  %v1210 = vpop.f32.mrf.mxu0
  %v1211 = vadd.f32 0.0, %v1210
  %v1212 = vpop.f32.mrf.mxu0
  %v1213 = vadd.f32 0.0, %v1212
  %1214 = vmatprep.mubr.bf16.mxu0 0
  %1215 = vmatmul.mubr.bf16.gmra.mxu0 %v324
  %v1216 = vpop.f32.mrf.mxu0
  %v1217 = vadd.f32 0.0, %v1216
  %v1218 = vpop.f32.mrf.mxu0
  %v1219 = vadd.f32 0.0, %v1218
  %v1220 = vpop.f32.mrf.mxu0
  %v1221 = vadd.f32 0.0, %v1220
  %v1222 = vpop.f32.mrf.mxu0
  %v1223 = vadd.f32 0.0, %v1222
  %1224 = vmatprep.mubr.bf16.mxu0 0
  %1225 = vmatmul.mubr.bf16.gmra.mxu0 %v327
  %v1226 = vpop.f32.mrf.mxu0
  %v1227 = vadd.f32 0.0, %v1226
  %v1228 = vpop.f32.mrf.mxu0
  %v1229 = vadd.f32 0.0, %v1228
  %v1230 = vpop.f32.mrf.mxu0
  %v1231 = vadd.f32 0.0, %v1230
  %v1232 = vpop.f32.mrf.mxu0
  %v1233 = vadd.f32 0.0, %v1232
  %1234 = vmatprep.mubr.bf16.mxu0 0
  %1235 = vmatmul.mubr.bf16.gmra.mxu0 %v330
  %v1236 = vpop.f32.mrf.mxu0
  %v1237 = vadd.f32 0.0, %v1236
  %v1238 = vpop.f32.mrf.mxu0
  %v1239 = vadd.f32 0.0, %v1238
  %v1240 = vpop.f32.mrf.mxu0
  %v1241 = vadd.f32 0.0, %v1240
  %v1242 = vpop.f32.mrf.mxu0
  %v1243 = vadd.f32 0.0, %v1242
  %1244 = vmatprep.mubr.bf16.mxu0 0
  %1245 = vmatmul.mubr.bf16.gmra.mxu0 %v333
  %v1246 = vpop.f32.mrf.mxu0
  %v1247 = vadd.f32 0.0, %v1246
  %v1248 = vpop.f32.mrf.mxu0
  %v1249 = vadd.f32 0.0, %v1248
  %v1250 = vpop.f32.mrf.mxu0
  %v1251 = vadd.f32 0.0, %v1250
  %v1252 = vpop.f32.mrf.mxu0
  %v1253 = vadd.f32 0.0, %v1252
  %1254 = vmatprep.mubr.bf16.mxu0 0
  %1255 = vmatmul.mubr.bf16.gmra.mxu0 %v336
  %v1256 = vpop.f32.mrf.mxu0
  %v1257 = vadd.f32 0.0, %v1256
  %v1258 = vpop.f32.mrf.mxu0
  %v1259 = vadd.f32 0.0, %v1258
  %v1260 = vpop.f32.mrf.mxu0
  %v1261 = vadd.f32 0.0, %v1260
  %v1262 = vpop.f32.mrf.mxu0
  %v1263 = vadd.f32 0.0, %v1262
  %1264 = vmatprep.mubr.bf16.mxu0 0
  %1265 = vmatmul.mubr.bf16.gmra.mxu0 %v339
  %v1266 = vpop.f32.mrf.mxu0
  %v1267 = vadd.f32 0.0, %v1266
  %v1268 = vpop.f32.mrf.mxu0
  %v1269 = vadd.f32 0.0, %v1268
  %v1270 = vpop.f32.mrf.mxu0
  %v1271 = vadd.f32 0.0, %v1270
  %v1272 = vpop.f32.mrf.mxu0
  %v1273 = vadd.f32 0.0, %v1272
  %1274 = vmatprep.mubr.bf16.mxu0 0
  %1275 = vmatmul.mubr.bf16.gmra.mxu0 %v342
  %v1276 = vpop.f32.mrf.mxu0
  %v1277 = vadd.f32 0.0, %v1276
  %v1278 = vpop.f32.mrf.mxu0
  %v1279 = vadd.f32 0.0, %v1278
  %v1280 = vpop.f32.mrf.mxu0
  %v1281 = vadd.f32 0.0, %v1280
  %v1282 = vpop.f32.mrf.mxu0
  %v1283 = vadd.f32 0.0, %v1282
  %1284 = vmatprep.mubr.bf16.mxu0 0
  %1285 = vmatmul.mubr.bf16.gmra.mxu0 %v345
  %v1286 = vpop.f32.mrf.mxu0
  %v1287 = vadd.f32 0.0, %v1286
  %v1288 = vpop.f32.mrf.mxu0
  %v1289 = vadd.f32 0.0, %v1288
  %v1290 = vpop.f32.mrf.mxu0
  %v1291 = vadd.f32 0.0, %v1290
  %v1292 = vpop.f32.mrf.mxu0
  %v1293 = vadd.f32 0.0, %v1292
  %1294 = vmatprep.mubr.bf16.mxu0 0
  %1295 = vmatmul.mubr.bf16.gmra.mxu0 %v348
  %v1296 = vpop.f32.mrf.mxu0
  %v1297 = vadd.f32 0.0, %v1296
  %v1298 = vpop.f32.mrf.mxu0
  %v1299 = vadd.f32 0.0, %v1298
  %v1300 = vpop.f32.mrf.mxu0
  %v1301 = vadd.f32 0.0, %v1300
  %v1302 = vpop.f32.mrf.mxu0
  %v1303 = vadd.f32 0.0, %v1302
  %1304 = vmatprep.mubr.bf16.mxu0 0
  %1305 = vmatmul.mubr.bf16.gmra.mxu0 %v351
  %v1306 = vpop.f32.mrf.mxu0
  %v1307 = vadd.f32 0.0, %v1306
  %v1308 = vpop.f32.mrf.mxu0
  %v1309 = vadd.f32 0.0, %v1308
  %v1310 = vpop.f32.mrf.mxu0
  %v1311 = vadd.f32 0.0, %v1310
  %v1312 = vpop.f32.mrf.mxu0
  %v1313 = vadd.f32 0.0, %v1312
  %1314 = vmatprep.mubr.bf16.mxu0 0
  %1315 = vmatmul.mubr.bf16.gmra.mxu0 %v354
  %v1316 = vpop.f32.mrf.mxu0
  %v1317 = vadd.f32 0.0, %v1316
  %v1318 = vpop.f32.mrf.mxu0
  %v1319 = vadd.f32 0.0, %v1318
  %v1320 = vpop.f32.mrf.mxu0
  %v1321 = vadd.f32 0.0, %v1320
  %v1322 = vpop.f32.mrf.mxu0
  %v1323 = vadd.f32 0.0, %v1322
  %1324 = vmatprep.mubr.bf16.mxu0 0
  %1325 = vmatmul.mubr.bf16.gmra.mxu0 %v357
  %v1326 = vpop.f32.mrf.mxu0
  %v1327 = vadd.f32 0.0, %v1326
  %v1328 = vpop.f32.mrf.mxu0
  %v1329 = vadd.f32 0.0, %v1328
  %v1330 = vpop.f32.mrf.mxu0
  %v1331 = vadd.f32 0.0, %v1330
  %v1332 = vpop.f32.mrf.mxu0
  %v1333 = vadd.f32 0.0, %v1332
  %1334 = vmatprep.mubr.bf16.mxu0 0
  %1335 = vmatmul.mubr.bf16.gmra.mxu0 %v360
  %v1336 = vpop.f32.mrf.mxu0
  %v1337 = vadd.f32 0.0, %v1336
  %v1338 = vpop.f32.mrf.mxu0
  %v1339 = vadd.f32 0.0, %v1338
  %v1340 = vpop.f32.mrf.mxu0
  %v1341 = vadd.f32 0.0, %v1340
  %v1342 = vpop.f32.mrf.mxu0
  %v1343 = vadd.f32 0.0, %v1342
  %1344 = vmatprep.mubr.bf16.mxu0 0
  %1345 = vmatmul.mubr.bf16.gmra.mxu0 %v363
  %v1346 = vpop.f32.mrf.mxu0
  %v1347 = vadd.f32 0.0, %v1346
  %v1348 = vpop.f32.mrf.mxu0
  %v1349 = vadd.f32 0.0, %v1348
  %v1350 = vpop.f32.mrf.mxu0
  %v1351 = vadd.f32 0.0, %v1350
  %v1352 = vpop.f32.mrf.mxu0
  %v1353 = vadd.f32 0.0, %v1352
  %1354 = vmatprep.mubr.bf16.mxu0 0
  %1355 = vmatmul.mubr.bf16.gmra.mxu0 %v1050
  %v1356 = vpop.f32.mrf.mxu0
  %v1357 = vadd.f32 0.0, %v1356
  %v1358 = vpop.f32.mrf.mxu0
  %v1359 = vadd.f32 0.0, %v1358
  %v1360 = vpop.f32.mrf.mxu0
  %v1361 = vadd.f32 0.0, %v1360
  %v1362 = vpop.f32.mrf.mxu0
  %v1363 = vadd.f32 0.0, %v1362
  %1364 = vdwg.mxu0
  %v1365 = vadd.f32 %v741, %v1087
  %v1366 = vadd.f32 %v743, %v1089
  %v1367 = vadd.f32 %v745, %v1091
  %v1368 = vadd.f32 %v747, %v1093
  %v1369 = vadd.f32 %v751, %v1097
  %v1370 = vadd.f32 %v753, %v1099
  %v1371 = vadd.f32 %v755, %v1101
  %v1372 = vadd.f32 %v757, %v1103
  %v1373 = vadd.f32 %v761, %v1107
  %v1374 = vadd.f32 %v763, %v1109
  %v1375 = vadd.f32 %v765, %v1111
  %v1376 = vadd.f32 %v767, %v1113
  %v1377 = vadd.f32 %v771, %v1117
  %v1378 = vadd.f32 %v773, %v1119
  %v1379 = vadd.f32 %v775, %v1121
  %v1380 = vadd.f32 %v777, %v1123
  %v1381 = vadd.f32 %v781, %v1127
  %v1382 = vadd.f32 %v783, %v1129
  %v1383 = vadd.f32 %v785, %v1131
  %v1384 = vadd.f32 %v787, %v1133
  %v1385 = vadd.f32 %v791, %v1137
  %v1386 = vadd.f32 %v793, %v1139
  %v1387 = vadd.f32 %v795, %v1141
  %v1388 = vadd.f32 %v797, %v1143
  %v1389 = vadd.f32 %v801, %v1147
  %v1390 = vadd.f32 %v803, %v1149
  %v1391 = vadd.f32 %v805, %v1151
  %v1392 = vadd.f32 %v807, %v1153
  %v1393 = vadd.f32 %v811, %v1157
  %v1394 = vadd.f32 %v813, %v1159
  %v1395 = vadd.f32 %v815, %v1161
  %v1396 = vadd.f32 %v817, %v1163
  %v1397 = vadd.f32 %v821, %v1167
  %v1398 = vadd.f32 %v823, %v1169
  %v1399 = vadd.f32 %v825, %v1171
  %v1400 = vadd.f32 %v827, %v1173
  %v1401 = vadd.f32 %v831, %v1177
  %v1402 = vadd.f32 %v833, %v1179
  %v1403 = vadd.f32 %v835, %v1181
  %v1404 = vadd.f32 %v837, %v1183
  %v1405 = vadd.f32 %v841, %v1187
  %v1406 = vadd.f32 %v843, %v1189
  %v1407 = vadd.f32 %v845, %v1191
  %v1408 = vadd.f32 %v847, %v1193
  %v1409 = vadd.f32 %v851, %v1197
  %v1410 = vadd.f32 %v853, %v1199
  %v1411 = vadd.f32 %v855, %v1201
  %v1412 = vadd.f32 %v857, %v1203
  %v1413 = vadd.f32 %v861, %v1207
  %v1414 = vadd.f32 %v863, %v1209
  %v1415 = vadd.f32 %v865, %v1211
  %v1416 = vadd.f32 %v867, %v1213
  %v1417 = vadd.f32 %v871, %v1217
  %v1418 = vadd.f32 %v873, %v1219
  %v1419 = vadd.f32 %v875, %v1221
  %v1420 = vadd.f32 %v877, %v1223
  %v1421 = vadd.f32 %v881, %v1227
  %v1422 = vadd.f32 %v883, %v1229
  %v1423 = vadd.f32 %v885, %v1231
  %v1424 = vadd.f32 %v887, %v1233
  %v1425 = vadd.f32 %v891, %v1237
  %v1426 = vadd.f32 %v893, %v1239
  %v1427 = vadd.f32 %v895, %v1241
  %v1428 = vadd.f32 %v897, %v1243
  %v1429 = vadd.f32 %v901, %v1247
  %v1430 = vadd.f32 %v903, %v1249
  %v1431 = vadd.f32 %v905, %v1251
  %v1432 = vadd.f32 %v907, %v1253
  %v1433 = vadd.f32 %v911, %v1257
  %v1434 = vadd.f32 %v913, %v1259
  %v1435 = vadd.f32 %v915, %v1261
  %v1436 = vadd.f32 %v917, %v1263
  %v1437 = vadd.f32 %v921, %v1267
  %v1438 = vadd.f32 %v923, %v1269
  %v1439 = vadd.f32 %v925, %v1271
  %v1440 = vadd.f32 %v927, %v1273
  %v1441 = vadd.f32 %v931, %v1277
  %v1442 = vadd.f32 %v933, %v1279
  %v1443 = vadd.f32 %v935, %v1281
  %v1444 = vadd.f32 %v937, %v1283
  %v1445 = vadd.f32 %v941, %v1287
  %v1446 = vadd.f32 %v943, %v1289
  %v1447 = vadd.f32 %v945, %v1291
  %v1448 = vadd.f32 %v947, %v1293
  %v1449 = vadd.f32 %v951, %v1297
  %v1450 = vadd.f32 %v953, %v1299
  %v1451 = vadd.f32 %v955, %v1301
  %v1452 = vadd.f32 %v957, %v1303
  %v1453 = vadd.f32 %v961, %v1307
  %v1454 = vadd.f32 %v963, %v1309
  %v1455 = vadd.f32 %v965, %v1311
  %v1456 = vadd.f32 %v967, %v1313
  %v1457 = vadd.f32 %v971, %v1317
  %v1458 = vadd.f32 %v973, %v1319
  %v1459 = vadd.f32 %v975, %v1321
  %v1460 = vadd.f32 %v977, %v1323
  %v1461 = vadd.f32 %v981, %v1327
  %v1462 = vadd.f32 %v983, %v1329
  %v1463 = vadd.f32 %v985, %v1331
  %v1464 = vadd.f32 %v987, %v1333
  %v1465 = vadd.f32 %v991, %v1337
  %v1466 = vadd.f32 %v993, %v1339
  %v1467 = vadd.f32 %v995, %v1341
  %v1468 = vadd.f32 %v997, %v1343
  %v1469 = vadd.f32 %v1001, %v1347
  %v1470 = vadd.f32 %v1003, %v1349
  %v1471 = vadd.f32 %v1005, %v1351
  %v1472 = vadd.f32 %v1007, %v1353
  %v1473 = vadd.f32 %v1011, %v1357
  %v1474 = vadd.f32 %v1013, %v1359
  %v1475 = vadd.f32 %v1015, %v1361
  %v1476 = vadd.f32 %v1017, %v1363
  %s1477 = scalar_lea.vmem %s1, 96
  %v1478 = vld [vmem:[%s1477] sm:$0xff]
  %v1479 = vld [vmem:[%s1477 + $0x8] sm:$0xff]
  %v1480 = vld [vmem:[%s1477 + $0x10] sm:$0xff]
  %v1481 = vld [vmem:[%s1477 + $0x18] sm:$0xff]
  %v1484 = vunpack.c.l.b16 %v107
  %v1485 = vunpack.c.l.b16 %v108
  %v1486 = vpack.c.b16 %v1485, %v1484
  %v1491 = vunpack.c.l.b16 %v1478
  %v1492 = vunpack.c.h.b16 %v1478
  %v1493 = vunpack.c.l.b16 %v1479
  %v1494 = vunpack.c.h.b16 %v1479
  %v1495 = vunpack.c.l.b16 %v1480
  %v1496 = vunpack.c.h.b16 %v1480
  %v1497 = vunpack.c.l.b16 %v1481
  %v1498 = vunpack.c.h.b16 %v1481
  %v1499 = vpack.c.b16 %v1493, %v1491
  %v1500 = vpack.c.b16 %v1494, %v1492
  %v1501 = vpack.c.b16 %v1497, %v1495
  %v1502 = vpack.c.b16 %v1498, %v1496
  %v1508 = vsel %vm280, %v1486, 0
  %1510 = vmatprep.subr.bf16.mxu0 0
  %1511 = vmatpush1.bf16.msra.mxu0 0
  %1512 = vmatprep.subr.bf16.mxu0 0
  %1513 = vmatpush1.bf16.msra.mxu0 0
  %1514 = vmatprep.subr.bf16.mxu0 0
  %1515 = vmatpush1.bf16.msra.mxu0 0
  %1516 = vmatprep.subr.bf16.mxu0 0
  %1517 = vmatpush1.bf16.msra.mxu0 0
  %1518 = vmatprep.subr.bf16.mxu0 0
  %1519 = vmatpush1.bf16.msra.mxu0 0
  %1520 = vmatprep.subr.bf16.mxu0 0
  %1521 = vmatpush1.bf16.msra.mxu0 0
  %1522 = vmatprep.subr.bf16.mxu0 %v1502
  %1523 = vmatpush1.bf16.msra.mxu0 %v1501
  %1524 = vmatprep.subr.bf16.mxu0 %v1500
  %1525 = vmatpush1.bf16.msra.mxu0 %v1499
  %1526 = vmatprep.subr.bf16.mxu0 0
  %1527 = vmatpush2.bf16.msra.mxu0 0
  %1528 = vmatprep.subr.bf16.mxu0 0
  %1529 = vmatpush2.bf16.msra.mxu0 0
  %1530 = vmatprep.subr.bf16.mxu0 0
  %1531 = vmatpush2.bf16.msra.mxu0 0
  %1532 = vmatprep.subr.bf16.mxu0 0
  %1533 = vmatpush2.bf16.msra.mxu0 0
  %1534 = vmatprep.subr.bf16.mxu0 0
  %1535 = vmatpush2.bf16.msra.mxu0 0
  %1536 = vmatprep.subr.bf16.mxu0 0
  %1537 = vmatpush2.bf16.msra.mxu0 0
  %1538 = vmatprep.subr.bf16.mxu0 0
  %1539 = vmatpush2.bf16.msra.mxu0 0
  %1540 = vmatprep.subr.bf16.mxu0 0
  %1541 = vmatpush2.bf16.msra.mxu0 0
  %1542 = vmatprep.mubr.bf16.mxu0 0
  %1543 = vmatmul.mubr.bf16.gmra.mxu0 %v288
  %v1544 = vpop.f32.mrf.mxu0
  %v1545 = vadd.f32 0.0, %v1544
  %v1546 = vpop.f32.mrf.mxu0
  %v1547 = vadd.f32 0.0, %v1546
  %v1548 = vpop.f32.mrf.mxu0
  %v1549 = vadd.f32 0.0, %v1548
  %v1550 = vpop.f32.mrf.mxu0
  %v1551 = vadd.f32 0.0, %v1550
  %1552 = vmatprep.mubr.bf16.mxu0 0
  %1553 = vmatmul.mubr.bf16.gmra.mxu0 %v291
  %v1554 = vpop.f32.mrf.mxu0
  %v1555 = vadd.f32 0.0, %v1554
  %v1556 = vpop.f32.mrf.mxu0
  %v1557 = vadd.f32 0.0, %v1556
  %v1558 = vpop.f32.mrf.mxu0
  %v1559 = vadd.f32 0.0, %v1558
  %v1560 = vpop.f32.mrf.mxu0
  %v1561 = vadd.f32 0.0, %v1560
  %1562 = vmatprep.mubr.bf16.mxu0 0
  %1563 = vmatmul.mubr.bf16.gmra.mxu0 %v294
  %v1564 = vpop.f32.mrf.mxu0
  %v1565 = vadd.f32 0.0, %v1564
  %v1566 = vpop.f32.mrf.mxu0
  %v1567 = vadd.f32 0.0, %v1566
  %v1568 = vpop.f32.mrf.mxu0
  %v1569 = vadd.f32 0.0, %v1568
  %v1570 = vpop.f32.mrf.mxu0
  %v1571 = vadd.f32 0.0, %v1570
  %1572 = vmatprep.mubr.bf16.mxu0 0
  %1573 = vmatmul.mubr.bf16.gmra.mxu0 %v297
  %v1574 = vpop.f32.mrf.mxu0
  %v1575 = vadd.f32 0.0, %v1574
  %v1576 = vpop.f32.mrf.mxu0
  %v1577 = vadd.f32 0.0, %v1576
  %v1578 = vpop.f32.mrf.mxu0
  %v1579 = vadd.f32 0.0, %v1578
  %v1580 = vpop.f32.mrf.mxu0
  %v1581 = vadd.f32 0.0, %v1580
  %1582 = vmatprep.mubr.bf16.mxu0 0
  %1583 = vmatmul.mubr.bf16.gmra.mxu0 %v300
  %v1584 = vpop.f32.mrf.mxu0
  %v1585 = vadd.f32 0.0, %v1584
  %v1586 = vpop.f32.mrf.mxu0
  %v1587 = vadd.f32 0.0, %v1586
  %v1588 = vpop.f32.mrf.mxu0
  %v1589 = vadd.f32 0.0, %v1588
  %v1590 = vpop.f32.mrf.mxu0
  %v1591 = vadd.f32 0.0, %v1590
  %1592 = vmatprep.mubr.bf16.mxu0 0
  %1593 = vmatmul.mubr.bf16.gmra.mxu0 %v303
  %v1594 = vpop.f32.mrf.mxu0
  %v1595 = vadd.f32 0.0, %v1594
  %v1596 = vpop.f32.mrf.mxu0
  %v1597 = vadd.f32 0.0, %v1596
  %v1598 = vpop.f32.mrf.mxu0
  %v1599 = vadd.f32 0.0, %v1598
  %v1600 = vpop.f32.mrf.mxu0
  %v1601 = vadd.f32 0.0, %v1600
  %1602 = vmatprep.mubr.bf16.mxu0 0
  %1603 = vmatmul.mubr.bf16.gmra.mxu0 %v306
  %v1604 = vpop.f32.mrf.mxu0
  %v1605 = vadd.f32 0.0, %v1604
  %v1606 = vpop.f32.mrf.mxu0
  %v1607 = vadd.f32 0.0, %v1606
  %v1608 = vpop.f32.mrf.mxu0
  %v1609 = vadd.f32 0.0, %v1608
  %v1610 = vpop.f32.mrf.mxu0
  %v1611 = vadd.f32 0.0, %v1610
  %1612 = vmatprep.mubr.bf16.mxu0 0
  %1613 = vmatmul.mubr.bf16.gmra.mxu0 %v309
  %v1614 = vpop.f32.mrf.mxu0
  %v1615 = vadd.f32 0.0, %v1614
  %v1616 = vpop.f32.mrf.mxu0
  %v1617 = vadd.f32 0.0, %v1616
  %v1618 = vpop.f32.mrf.mxu0
  %v1619 = vadd.f32 0.0, %v1618
  %v1620 = vpop.f32.mrf.mxu0
  %v1621 = vadd.f32 0.0, %v1620
  %1622 = vmatprep.mubr.bf16.mxu0 0
  %1623 = vmatmul.mubr.bf16.gmra.mxu0 %v312
  %v1624 = vpop.f32.mrf.mxu0
  %v1625 = vadd.f32 0.0, %v1624
  %v1626 = vpop.f32.mrf.mxu0
  %v1627 = vadd.f32 0.0, %v1626
  %v1628 = vpop.f32.mrf.mxu0
  %v1629 = vadd.f32 0.0, %v1628
  %v1630 = vpop.f32.mrf.mxu0
  %v1631 = vadd.f32 0.0, %v1630
  %1632 = vmatprep.mubr.bf16.mxu0 0
  %1633 = vmatmul.mubr.bf16.gmra.mxu0 %v315
  %v1634 = vpop.f32.mrf.mxu0
  %v1635 = vadd.f32 0.0, %v1634
  %v1636 = vpop.f32.mrf.mxu0
  %v1637 = vadd.f32 0.0, %v1636
  %v1638 = vpop.f32.mrf.mxu0
  %v1639 = vadd.f32 0.0, %v1638
  %v1640 = vpop.f32.mrf.mxu0
  %v1641 = vadd.f32 0.0, %v1640
  %1642 = vmatprep.mubr.bf16.mxu0 0
  %1643 = vmatmul.mubr.bf16.gmra.mxu0 %v318
  %v1644 = vpop.f32.mrf.mxu0
  %v1645 = vadd.f32 0.0, %v1644
  %v1646 = vpop.f32.mrf.mxu0
  %v1647 = vadd.f32 0.0, %v1646
  %v1648 = vpop.f32.mrf.mxu0
  %v1649 = vadd.f32 0.0, %v1648
  %v1650 = vpop.f32.mrf.mxu0
  %v1651 = vadd.f32 0.0, %v1650
  %1652 = vmatprep.mubr.bf16.mxu0 0
  %1653 = vmatmul.mubr.bf16.gmra.mxu0 %v321
  %v1654 = vpop.f32.mrf.mxu0
  %v1655 = vadd.f32 0.0, %v1654
  %v1656 = vpop.f32.mrf.mxu0
  %v1657 = vadd.f32 0.0, %v1656
  %v1658 = vpop.f32.mrf.mxu0
  %v1659 = vadd.f32 0.0, %v1658
  %v1660 = vpop.f32.mrf.mxu0
  %v1661 = vadd.f32 0.0, %v1660
  %1662 = vmatprep.mubr.bf16.mxu0 0
  %1663 = vmatmul.mubr.bf16.gmra.mxu0 %v324
  %v1664 = vpop.f32.mrf.mxu0
  %v1665 = vadd.f32 0.0, %v1664
  %v1666 = vpop.f32.mrf.mxu0
  %v1667 = vadd.f32 0.0, %v1666
  %v1668 = vpop.f32.mrf.mxu0
  %v1669 = vadd.f32 0.0, %v1668
  %v1670 = vpop.f32.mrf.mxu0
  %v1671 = vadd.f32 0.0, %v1670
  %1672 = vmatprep.mubr.bf16.mxu0 0
  %1673 = vmatmul.mubr.bf16.gmra.mxu0 %v327
  %v1674 = vpop.f32.mrf.mxu0
  %v1675 = vadd.f32 0.0, %v1674
  %v1676 = vpop.f32.mrf.mxu0
  %v1677 = vadd.f32 0.0, %v1676
  %v1678 = vpop.f32.mrf.mxu0
  %v1679 = vadd.f32 0.0, %v1678
  %v1680 = vpop.f32.mrf.mxu0
  %v1681 = vadd.f32 0.0, %v1680
  %1682 = vmatprep.mubr.bf16.mxu0 0
  %1683 = vmatmul.mubr.bf16.gmra.mxu0 %v330
  %v1684 = vpop.f32.mrf.mxu0
  %v1685 = vadd.f32 0.0, %v1684
  %v1686 = vpop.f32.mrf.mxu0
  %v1687 = vadd.f32 0.0, %v1686
  %v1688 = vpop.f32.mrf.mxu0
  %v1689 = vadd.f32 0.0, %v1688
  %v1690 = vpop.f32.mrf.mxu0
  %v1691 = vadd.f32 0.0, %v1690
  %1692 = vmatprep.mubr.bf16.mxu0 0
  %1693 = vmatmul.mubr.bf16.gmra.mxu0 %v333
  %v1694 = vpop.f32.mrf.mxu0
  %v1695 = vadd.f32 0.0, %v1694
  %v1696 = vpop.f32.mrf.mxu0
  %v1697 = vadd.f32 0.0, %v1696
  %v1698 = vpop.f32.mrf.mxu0
  %v1699 = vadd.f32 0.0, %v1698
  %v1700 = vpop.f32.mrf.mxu0
  %v1701 = vadd.f32 0.0, %v1700
  %1702 = vmatprep.mubr.bf16.mxu0 0
  %1703 = vmatmul.mubr.bf16.gmra.mxu0 %v336
  %v1704 = vpop.f32.mrf.mxu0
  %v1705 = vadd.f32 0.0, %v1704
  %v1706 = vpop.f32.mrf.mxu0
  %v1707 = vadd.f32 0.0, %v1706
  %v1708 = vpop.f32.mrf.mxu0
  %v1709 = vadd.f32 0.0, %v1708
  %v1710 = vpop.f32.mrf.mxu0
  %v1711 = vadd.f32 0.0, %v1710
  %1712 = vmatprep.mubr.bf16.mxu0 0
  %1713 = vmatmul.mubr.bf16.gmra.mxu0 %v339
  %v1714 = vpop.f32.mrf.mxu0
  %v1715 = vadd.f32 0.0, %v1714
  %v1716 = vpop.f32.mrf.mxu0
  %v1717 = vadd.f32 0.0, %v1716
  %v1718 = vpop.f32.mrf.mxu0
  %v1719 = vadd.f32 0.0, %v1718
  %v1720 = vpop.f32.mrf.mxu0
  %v1721 = vadd.f32 0.0, %v1720
  %1722 = vmatprep.mubr.bf16.mxu0 0
  %1723 = vmatmul.mubr.bf16.gmra.mxu0 %v342
  %v1724 = vpop.f32.mrf.mxu0
  %v1725 = vadd.f32 0.0, %v1724
  %v1726 = vpop.f32.mrf.mxu0
  %v1727 = vadd.f32 0.0, %v1726
  %v1728 = vpop.f32.mrf.mxu0
  %v1729 = vadd.f32 0.0, %v1728
  %v1730 = vpop.f32.mrf.mxu0
  %v1731 = vadd.f32 0.0, %v1730
  %1732 = vmatprep.mubr.bf16.mxu0 0
  %1733 = vmatmul.mubr.bf16.gmra.mxu0 %v345
  %v1734 = vpop.f32.mrf.mxu0
  %v1735 = vadd.f32 0.0, %v1734
  %v1736 = vpop.f32.mrf.mxu0
  %v1737 = vadd.f32 0.0, %v1736
  %v1738 = vpop.f32.mrf.mxu0
  %v1739 = vadd.f32 0.0, %v1738
  %v1740 = vpop.f32.mrf.mxu0
  %v1741 = vadd.f32 0.0, %v1740
  %1742 = vmatprep.mubr.bf16.mxu0 0
  %1743 = vmatmul.mubr.bf16.gmra.mxu0 %v348
  %v1744 = vpop.f32.mrf.mxu0
  %v1745 = vadd.f32 0.0, %v1744
  %v1746 = vpop.f32.mrf.mxu0
  %v1747 = vadd.f32 0.0, %v1746
  %v1748 = vpop.f32.mrf.mxu0
  %v1749 = vadd.f32 0.0, %v1748
  %v1750 = vpop.f32.mrf.mxu0
  %v1751 = vadd.f32 0.0, %v1750
  %1752 = vmatprep.mubr.bf16.mxu0 0
  %1753 = vmatmul.mubr.bf16.gmra.mxu0 %v351
  %v1754 = vpop.f32.mrf.mxu0
  %v1755 = vadd.f32 0.0, %v1754
  %v1756 = vpop.f32.mrf.mxu0
  %v1757 = vadd.f32 0.0, %v1756
  %v1758 = vpop.f32.mrf.mxu0
  %v1759 = vadd.f32 0.0, %v1758
  %v1760 = vpop.f32.mrf.mxu0
  %v1761 = vadd.f32 0.0, %v1760
  %1762 = vmatprep.mubr.bf16.mxu0 0
  %1763 = vmatmul.mubr.bf16.gmra.mxu0 %v354
  %v1764 = vpop.f32.mrf.mxu0
  %v1765 = vadd.f32 0.0, %v1764
  %v1766 = vpop.f32.mrf.mxu0
  %v1767 = vadd.f32 0.0, %v1766
  %v1768 = vpop.f32.mrf.mxu0
  %v1769 = vadd.f32 0.0, %v1768
  %v1770 = vpop.f32.mrf.mxu0
  %v1771 = vadd.f32 0.0, %v1770
  %1772 = vmatprep.mubr.bf16.mxu0 0
  %1773 = vmatmul.mubr.bf16.gmra.mxu0 %v357
  %v1774 = vpop.f32.mrf.mxu0
  %v1775 = vadd.f32 0.0, %v1774
  %v1776 = vpop.f32.mrf.mxu0
  %v1777 = vadd.f32 0.0, %v1776
  %v1778 = vpop.f32.mrf.mxu0
  %v1779 = vadd.f32 0.0, %v1778
  %v1780 = vpop.f32.mrf.mxu0
  %v1781 = vadd.f32 0.0, %v1780
  %1782 = vmatprep.mubr.bf16.mxu0 0
  %1783 = vmatmul.mubr.bf16.gmra.mxu0 %v360
  %v1784 = vpop.f32.mrf.mxu0
  %v1785 = vadd.f32 0.0, %v1784
  %v1786 = vpop.f32.mrf.mxu0
  %v1787 = vadd.f32 0.0, %v1786
  %v1788 = vpop.f32.mrf.mxu0
  %v1789 = vadd.f32 0.0, %v1788
  %v1790 = vpop.f32.mrf.mxu0
  %v1791 = vadd.f32 0.0, %v1790
  %1792 = vmatprep.mubr.bf16.mxu0 0
  %1793 = vmatmul.mubr.bf16.gmra.mxu0 %v363
  %v1794 = vpop.f32.mrf.mxu0
  %v1795 = vadd.f32 0.0, %v1794
  %v1796 = vpop.f32.mrf.mxu0
  %v1797 = vadd.f32 0.0, %v1796
  %v1798 = vpop.f32.mrf.mxu0
  %v1799 = vadd.f32 0.0, %v1798
  %v1800 = vpop.f32.mrf.mxu0
  %v1801 = vadd.f32 0.0, %v1800
  %1802 = vmatprep.mubr.bf16.mxu0 0
  %1803 = vmatmul.mubr.bf16.gmra.mxu0 %v1050
  %v1804 = vpop.f32.mrf.mxu0
  %v1805 = vadd.f32 0.0, %v1804
  %v1806 = vpop.f32.mrf.mxu0
  %v1807 = vadd.f32 0.0, %v1806
  %v1808 = vpop.f32.mrf.mxu0
  %v1809 = vadd.f32 0.0, %v1808
  %v1810 = vpop.f32.mrf.mxu0
  %v1811 = vadd.f32 0.0, %v1810
  %1812 = vmatprep.mubr.bf16.mxu0 0
  %1813 = vmatmul.mubr.bf16.gmra.mxu0 %v1508
  %v1814 = vpop.f32.mrf.mxu0
  %v1815 = vadd.f32 0.0, %v1814
  %v1816 = vpop.f32.mrf.mxu0
  %v1817 = vadd.f32 0.0, %v1816
  %v1818 = vpop.f32.mrf.mxu0
  %v1819 = vadd.f32 0.0, %v1818
  %v1820 = vpop.f32.mrf.mxu0
  %v1821 = vadd.f32 0.0, %v1820
  %1822 = vdwg.mxu0
  %v1823 = vadd.f32 %v1365, %v1545
  %v1824 = vadd.f32 %v1366, %v1547
  %v1825 = vadd.f32 %v1367, %v1549
  %v1826 = vadd.f32 %v1368, %v1551
  %v1827 = vadd.f32 %v1369, %v1555
  %v1828 = vadd.f32 %v1370, %v1557
  %v1829 = vadd.f32 %v1371, %v1559
  %v1830 = vadd.f32 %v1372, %v1561
  %v1831 = vadd.f32 %v1373, %v1565
  %v1832 = vadd.f32 %v1374, %v1567
  %v1833 = vadd.f32 %v1375, %v1569
  %v1834 = vadd.f32 %v1376, %v1571
  %v1835 = vadd.f32 %v1377, %v1575
  %v1836 = vadd.f32 %v1378, %v1577
  %v1837 = vadd.f32 %v1379, %v1579
  %v1838 = vadd.f32 %v1380, %v1581
  %v1839 = vadd.f32 %v1381, %v1585
  %v1840 = vadd.f32 %v1382, %v1587
  %v1841 = vadd.f32 %v1383, %v1589
  %v1842 = vadd.f32 %v1384, %v1591
  %v1843 = vadd.f32 %v1385, %v1595
  %v1844 = vadd.f32 %v1386, %v1597
  %v1845 = vadd.f32 %v1387, %v1599
  %v1846 = vadd.f32 %v1388, %v1601
  %v1847 = vadd.f32 %v1389, %v1605
  %v1848 = vadd.f32 %v1390, %v1607
  %v1849 = vadd.f32 %v1391, %v1609
  %v1850 = vadd.f32 %v1392, %v1611
  %v1851 = vadd.f32 %v1393, %v1615
  %v1852 = vadd.f32 %v1394, %v1617
  %v1853 = vadd.f32 %v1395, %v1619
  %v1854 = vadd.f32 %v1396, %v1621
  %v1855 = vadd.f32 %v1397, %v1625
  %v1856 = vadd.f32 %v1398, %v1627
  %v1857 = vadd.f32 %v1399, %v1629
  %v1858 = vadd.f32 %v1400, %v1631
  %v1859 = vadd.f32 %v1401, %v1635
  %v1860 = vadd.f32 %v1402, %v1637
  %v1861 = vadd.f32 %v1403, %v1639
  %v1862 = vadd.f32 %v1404, %v1641
  %v1863 = vadd.f32 %v1405, %v1645
  %v1864 = vadd.f32 %v1406, %v1647
  %v1865 = vadd.f32 %v1407, %v1649
  %v1866 = vadd.f32 %v1408, %v1651
  %v1867 = vadd.f32 %v1409, %v1655
  %v1868 = vadd.f32 %v1410, %v1657
  %v1869 = vadd.f32 %v1411, %v1659
  %v1870 = vadd.f32 %v1412, %v1661
  %v1871 = vadd.f32 %v1413, %v1665
  %v1872 = vadd.f32 %v1414, %v1667
  %v1873 = vadd.f32 %v1415, %v1669
  %v1874 = vadd.f32 %v1416, %v1671
  %v1875 = vadd.f32 %v1417, %v1675
  %v1876 = vadd.f32 %v1418, %v1677
  %v1877 = vadd.f32 %v1419, %v1679
  %v1878 = vadd.f32 %v1420, %v1681
  %v1879 = vadd.f32 %v1421, %v1685
  %v1880 = vadd.f32 %v1422, %v1687
  %v1881 = vadd.f32 %v1423, %v1689
  %v1882 = vadd.f32 %v1424, %v1691
  %v1883 = vadd.f32 %v1425, %v1695
  %v1884 = vadd.f32 %v1426, %v1697
  %v1885 = vadd.f32 %v1427, %v1699
  %v1886 = vadd.f32 %v1428, %v1701
  %v1887 = vadd.f32 %v1429, %v1705
  %v1888 = vadd.f32 %v1430, %v1707
  %v1889 = vadd.f32 %v1431, %v1709
  %v1890 = vadd.f32 %v1432, %v1711
  %v1891 = vadd.f32 %v1433, %v1715
  %v1892 = vadd.f32 %v1434, %v1717
  %v1893 = vadd.f32 %v1435, %v1719
  %v1894 = vadd.f32 %v1436, %v1721
  %v1895 = vadd.f32 %v1437, %v1725
  %v1896 = vadd.f32 %v1438, %v1727
  %v1897 = vadd.f32 %v1439, %v1729
  %v1898 = vadd.f32 %v1440, %v1731
  %v1899 = vadd.f32 %v1441, %v1735
  %v1900 = vadd.f32 %v1442, %v1737
  %v1901 = vadd.f32 %v1443, %v1739
  %v1902 = vadd.f32 %v1444, %v1741
  %v1903 = vadd.f32 %v1445, %v1745
  %v1904 = vadd.f32 %v1446, %v1747
  %v1905 = vadd.f32 %v1447, %v1749
  %v1906 = vadd.f32 %v1448, %v1751
  %v1907 = vadd.f32 %v1449, %v1755
  %v1908 = vadd.f32 %v1450, %v1757
  %v1909 = vadd.f32 %v1451, %v1759
  %v1910 = vadd.f32 %v1452, %v1761
  %v1911 = vadd.f32 %v1453, %v1765
  %v1912 = vadd.f32 %v1454, %v1767
  %v1913 = vadd.f32 %v1455, %v1769
  %v1914 = vadd.f32 %v1456, %v1771
  %v1915 = vadd.f32 %v1457, %v1775
  %v1916 = vadd.f32 %v1458, %v1777
  %v1917 = vadd.f32 %v1459, %v1779
  %v1918 = vadd.f32 %v1460, %v1781
  %v1919 = vadd.f32 %v1461, %v1785
  %v1920 = vadd.f32 %v1462, %v1787
  %v1921 = vadd.f32 %v1463, %v1789
  %v1922 = vadd.f32 %v1464, %v1791
  %v1923 = vadd.f32 %v1465, %v1795
  %v1924 = vadd.f32 %v1466, %v1797
  %v1925 = vadd.f32 %v1467, %v1799
  %v1926 = vadd.f32 %v1468, %v1801
  %v1927 = vadd.f32 %v1469, %v1805
  %v1928 = vadd.f32 %v1470, %v1807
  %v1929 = vadd.f32 %v1471, %v1809
  %v1930 = vadd.f32 %v1472, %v1811
  %v1931 = vadd.f32 %v1473, %v1815
  %v1932 = vadd.f32 %v1474, %v1817
  %v1933 = vadd.f32 %v1475, %v1819
  %v1934 = vadd.f32 %v1476, %v1821
  %s1935 = scalar_lea.vmem %s1, 128
  %v1936 = vld [vmem:[%s1935] sm:$0xff]
  %v1937 = vld [vmem:[%s1935 + $0x8] sm:$0xff]
  %v1938 = vld [vmem:[%s1935 + $0x10] sm:$0xff]
  %v1939 = vld [vmem:[%s1935 + $0x18] sm:$0xff]
  %v1942 = vunpack.c.l.b16 %v109
  %v1943 = vunpack.c.l.b16 %v110
  %v1944 = vpack.c.b16 %v1943, %v1942
  %v1949 = vunpack.c.l.b16 %v1936
  %v1950 = vunpack.c.h.b16 %v1936
  %v1951 = vunpack.c.l.b16 %v1937
  %v1952 = vunpack.c.h.b16 %v1937
  %v1953 = vunpack.c.l.b16 %v1938
  %v1954 = vunpack.c.h.b16 %v1938
  %v1955 = vunpack.c.l.b16 %v1939
  %v1956 = vunpack.c.h.b16 %v1939
  %v1957 = vpack.c.b16 %v1951, %v1949
  %v1958 = vpack.c.b16 %v1952, %v1950
  %v1959 = vpack.c.b16 %v1955, %v1953
  %v1960 = vpack.c.b16 %v1956, %v1954
  %v1966 = vsel %vm280, %v1944, 0
  %1968 = vmatprep.subr.bf16.mxu0 0
  %1969 = vmatpush1.bf16.msra.mxu0 0
  %1970 = vmatprep.subr.bf16.mxu0 0
  %1971 = vmatpush1.bf16.msra.mxu0 0
  %1972 = vmatprep.subr.bf16.mxu0 0
  %1973 = vmatpush1.bf16.msra.mxu0 0
  %1974 = vmatprep.subr.bf16.mxu0 0
  %1975 = vmatpush1.bf16.msra.mxu0 0
  %1976 = vmatprep.subr.bf16.mxu0 0
  %1977 = vmatpush1.bf16.msra.mxu0 0
  %1978 = vmatprep.subr.bf16.mxu0 0
  %1979 = vmatpush1.bf16.msra.mxu0 0
  %1980 = vmatprep.subr.bf16.mxu0 %v1960
  %1981 = vmatpush1.bf16.msra.mxu0 %v1959
  %1982 = vmatprep.subr.bf16.mxu0 %v1958
  %1983 = vmatpush1.bf16.msra.mxu0 %v1957
  %1984 = vmatprep.subr.bf16.mxu0 0
  %1985 = vmatpush2.bf16.msra.mxu0 0
  %1986 = vmatprep.subr.bf16.mxu0 0
  %1987 = vmatpush2.bf16.msra.mxu0 0
  %1988 = vmatprep.subr.bf16.mxu0 0
  %1989 = vmatpush2.bf16.msra.mxu0 0
  %1990 = vmatprep.subr.bf16.mxu0 0
  %1991 = vmatpush2.bf16.msra.mxu0 0
  %1992 = vmatprep.subr.bf16.mxu0 0
  %1993 = vmatpush2.bf16.msra.mxu0 0
  %1994 = vmatprep.subr.bf16.mxu0 0
  %1995 = vmatpush2.bf16.msra.mxu0 0
  %1996 = vmatprep.subr.bf16.mxu0 0
  %1997 = vmatpush2.bf16.msra.mxu0 0
  %1998 = vmatprep.subr.bf16.mxu0 0
  %1999 = vmatpush2.bf16.msra.mxu0 0
  %2000 = vmatprep.mubr.bf16.mxu0 0
  %2001 = vmatmul.mubr.bf16.gmra.mxu0 %v291
  %v2002 = vpop.f32.mrf.mxu0
  %v2003 = vadd.f32 0.0, %v2002
  %v2004 = vpop.f32.mrf.mxu0
  %v2005 = vadd.f32 0.0, %v2004
  %v2006 = vpop.f32.mrf.mxu0
  %v2007 = vadd.f32 0.0, %v2006
  %v2008 = vpop.f32.mrf.mxu0
  %v2009 = vadd.f32 0.0, %v2008
  %2010 = vmatprep.mubr.bf16.mxu0 0
  %2011 = vmatmul.mubr.bf16.gmra.mxu0 %v294
  %v2012 = vpop.f32.mrf.mxu0
  %v2013 = vadd.f32 0.0, %v2012
  %v2014 = vpop.f32.mrf.mxu0
  %v2015 = vadd.f32 0.0, %v2014
  %v2016 = vpop.f32.mrf.mxu0
  %v2017 = vadd.f32 0.0, %v2016
  %v2018 = vpop.f32.mrf.mxu0
  %v2019 = vadd.f32 0.0, %v2018
  %2020 = vmatprep.mubr.bf16.mxu0 0
  %2021 = vmatmul.mubr.bf16.gmra.mxu0 %v297
  %v2022 = vpop.f32.mrf.mxu0
  %v2023 = vadd.f32 0.0, %v2022
  %v2024 = vpop.f32.mrf.mxu0
  %v2025 = vadd.f32 0.0, %v2024
  %v2026 = vpop.f32.mrf.mxu0
  %v2027 = vadd.f32 0.0, %v2026
  %v2028 = vpop.f32.mrf.mxu0
  %v2029 = vadd.f32 0.0, %v2028
  %2030 = vmatprep.mubr.bf16.mxu0 0
  %2031 = vmatmul.mubr.bf16.gmra.mxu0 %v300
  %v2032 = vpop.f32.mrf.mxu0
  %v2033 = vadd.f32 0.0, %v2032
  %v2034 = vpop.f32.mrf.mxu0
  %v2035 = vadd.f32 0.0, %v2034
  %v2036 = vpop.f32.mrf.mxu0
  %v2037 = vadd.f32 0.0, %v2036
  %v2038 = vpop.f32.mrf.mxu0
  %v2039 = vadd.f32 0.0, %v2038
  %2040 = vmatprep.mubr.bf16.mxu0 0
  %2041 = vmatmul.mubr.bf16.gmra.mxu0 %v303
  %v2042 = vpop.f32.mrf.mxu0
  %v2043 = vadd.f32 0.0, %v2042
  %v2044 = vpop.f32.mrf.mxu0
  %v2045 = vadd.f32 0.0, %v2044
  %v2046 = vpop.f32.mrf.mxu0
  %v2047 = vadd.f32 0.0, %v2046
  %v2048 = vpop.f32.mrf.mxu0
  %v2049 = vadd.f32 0.0, %v2048
  %2050 = vmatprep.mubr.bf16.mxu0 0
  %2051 = vmatmul.mubr.bf16.gmra.mxu0 %v306
  %v2052 = vpop.f32.mrf.mxu0
  %v2053 = vadd.f32 0.0, %v2052
  %v2054 = vpop.f32.mrf.mxu0
  %v2055 = vadd.f32 0.0, %v2054
  %v2056 = vpop.f32.mrf.mxu0
  %v2057 = vadd.f32 0.0, %v2056
  %v2058 = vpop.f32.mrf.mxu0
  %v2059 = vadd.f32 0.0, %v2058
  %2060 = vmatprep.mubr.bf16.mxu0 0
  %2061 = vmatmul.mubr.bf16.gmra.mxu0 %v309
  %v2062 = vpop.f32.mrf.mxu0
  %v2063 = vadd.f32 0.0, %v2062
  %v2064 = vpop.f32.mrf.mxu0
  %v2065 = vadd.f32 0.0, %v2064
  %v2066 = vpop.f32.mrf.mxu0
  %v2067 = vadd.f32 0.0, %v2066
  %v2068 = vpop.f32.mrf.mxu0
  %v2069 = vadd.f32 0.0, %v2068
  %2070 = vmatprep.mubr.bf16.mxu0 0
  %2071 = vmatmul.mubr.bf16.gmra.mxu0 %v312
  %v2072 = vpop.f32.mrf.mxu0
  %v2073 = vadd.f32 0.0, %v2072
  %v2074 = vpop.f32.mrf.mxu0
  %v2075 = vadd.f32 0.0, %v2074
  %v2076 = vpop.f32.mrf.mxu0
  %v2077 = vadd.f32 0.0, %v2076
  %v2078 = vpop.f32.mrf.mxu0
  %v2079 = vadd.f32 0.0, %v2078
  %2080 = vmatprep.mubr.bf16.mxu0 0
  %2081 = vmatmul.mubr.bf16.gmra.mxu0 %v315
  %v2082 = vpop.f32.mrf.mxu0
  %v2083 = vadd.f32 0.0, %v2082
  %v2084 = vpop.f32.mrf.mxu0
  %v2085 = vadd.f32 0.0, %v2084
  %v2086 = vpop.f32.mrf.mxu0
  %v2087 = vadd.f32 0.0, %v2086
  %v2088 = vpop.f32.mrf.mxu0
  %v2089 = vadd.f32 0.0, %v2088
  %2090 = vmatprep.mubr.bf16.mxu0 0
  %2091 = vmatmul.mubr.bf16.gmra.mxu0 %v318
  %v2092 = vpop.f32.mrf.mxu0
  %v2093 = vadd.f32 0.0, %v2092
  %v2094 = vpop.f32.mrf.mxu0
  %v2095 = vadd.f32 0.0, %v2094
  %v2096 = vpop.f32.mrf.mxu0
  %v2097 = vadd.f32 0.0, %v2096
  %v2098 = vpop.f32.mrf.mxu0
  %v2099 = vadd.f32 0.0, %v2098
  %2100 = vmatprep.mubr.bf16.mxu0 0
  %2101 = vmatmul.mubr.bf16.gmra.mxu0 %v321
  %v2102 = vpop.f32.mrf.mxu0
  %v2103 = vadd.f32 0.0, %v2102
  %v2104 = vpop.f32.mrf.mxu0
  %v2105 = vadd.f32 0.0, %v2104
  %v2106 = vpop.f32.mrf.mxu0
  %v2107 = vadd.f32 0.0, %v2106
  %v2108 = vpop.f32.mrf.mxu0
  %v2109 = vadd.f32 0.0, %v2108
  %2110 = vmatprep.mubr.bf16.mxu0 0
  %2111 = vmatmul.mubr.bf16.gmra.mxu0 %v324
  %v2112 = vpop.f32.mrf.mxu0
  %v2113 = vadd.f32 0.0, %v2112
  %v2114 = vpop.f32.mrf.mxu0
  %v2115 = vadd.f32 0.0, %v2114
  %v2116 = vpop.f32.mrf.mxu0
  %v2117 = vadd.f32 0.0, %v2116
  %v2118 = vpop.f32.mrf.mxu0
  %v2119 = vadd.f32 0.0, %v2118
  %2120 = vmatprep.mubr.bf16.mxu0 0
  %2121 = vmatmul.mubr.bf16.gmra.mxu0 %v327
  %v2122 = vpop.f32.mrf.mxu0
  %v2123 = vadd.f32 0.0, %v2122
  %v2124 = vpop.f32.mrf.mxu0
  %v2125 = vadd.f32 0.0, %v2124
  %v2126 = vpop.f32.mrf.mxu0
  %v2127 = vadd.f32 0.0, %v2126
  %v2128 = vpop.f32.mrf.mxu0
  %v2129 = vadd.f32 0.0, %v2128
  %2130 = vmatprep.mubr.bf16.mxu0 0
  %2131 = vmatmul.mubr.bf16.gmra.mxu0 %v330
  %v2132 = vpop.f32.mrf.mxu0
  %v2133 = vadd.f32 0.0, %v2132
  %v2134 = vpop.f32.mrf.mxu0
  %v2135 = vadd.f32 0.0, %v2134
  %v2136 = vpop.f32.mrf.mxu0
  %v2137 = vadd.f32 0.0, %v2136
  %v2138 = vpop.f32.mrf.mxu0
  %v2139 = vadd.f32 0.0, %v2138
  %2140 = vmatprep.mubr.bf16.mxu0 0
  %2141 = vmatmul.mubr.bf16.gmra.mxu0 %v333
  %v2142 = vpop.f32.mrf.mxu0
  %v2143 = vadd.f32 0.0, %v2142
  %v2144 = vpop.f32.mrf.mxu0
  %v2145 = vadd.f32 0.0, %v2144
  %v2146 = vpop.f32.mrf.mxu0
  %v2147 = vadd.f32 0.0, %v2146
  %v2148 = vpop.f32.mrf.mxu0
  %v2149 = vadd.f32 0.0, %v2148
  %2150 = vmatprep.mubr.bf16.mxu0 0
  %2151 = vmatmul.mubr.bf16.gmra.mxu0 %v336
  %v2152 = vpop.f32.mrf.mxu0
  %v2153 = vadd.f32 0.0, %v2152
  %v2154 = vpop.f32.mrf.mxu0
  %v2155 = vadd.f32 0.0, %v2154
  %v2156 = vpop.f32.mrf.mxu0
  %v2157 = vadd.f32 0.0, %v2156
  %v2158 = vpop.f32.mrf.mxu0
  %v2159 = vadd.f32 0.0, %v2158
  %2160 = vmatprep.mubr.bf16.mxu0 0
  %2161 = vmatmul.mubr.bf16.gmra.mxu0 %v339
  %v2162 = vpop.f32.mrf.mxu0
  %v2163 = vadd.f32 0.0, %v2162
  %v2164 = vpop.f32.mrf.mxu0
  %v2165 = vadd.f32 0.0, %v2164
  %v2166 = vpop.f32.mrf.mxu0
  %v2167 = vadd.f32 0.0, %v2166
  %v2168 = vpop.f32.mrf.mxu0
  %v2169 = vadd.f32 0.0, %v2168
  %2170 = vmatprep.mubr.bf16.mxu0 0
  %2171 = vmatmul.mubr.bf16.gmra.mxu0 %v342
  %v2172 = vpop.f32.mrf.mxu0
  %v2173 = vadd.f32 0.0, %v2172
  %v2174 = vpop.f32.mrf.mxu0
  %v2175 = vadd.f32 0.0, %v2174
  %v2176 = vpop.f32.mrf.mxu0
  %v2177 = vadd.f32 0.0, %v2176
  %v2178 = vpop.f32.mrf.mxu0
  %v2179 = vadd.f32 0.0, %v2178
  %2180 = vmatprep.mubr.bf16.mxu0 0
  %2181 = vmatmul.mubr.bf16.gmra.mxu0 %v345
  %v2182 = vpop.f32.mrf.mxu0
  %v2183 = vadd.f32 0.0, %v2182
  %v2184 = vpop.f32.mrf.mxu0
  %v2185 = vadd.f32 0.0, %v2184
  %v2186 = vpop.f32.mrf.mxu0
  %v2187 = vadd.f32 0.0, %v2186
  %v2188 = vpop.f32.mrf.mxu0
  %v2189 = vadd.f32 0.0, %v2188
  %2190 = vmatprep.mubr.bf16.mxu0 0
  %2191 = vmatmul.mubr.bf16.gmra.mxu0 %v348
  %v2192 = vpop.f32.mrf.mxu0
  %v2193 = vadd.f32 0.0, %v2192
  %v2194 = vpop.f32.mrf.mxu0
  %v2195 = vadd.f32 0.0, %v2194
  %v2196 = vpop.f32.mrf.mxu0
  %v2197 = vadd.f32 0.0, %v2196
  %v2198 = vpop.f32.mrf.mxu0
  %v2199 = vadd.f32 0.0, %v2198
  %2200 = vmatprep.mubr.bf16.mxu0 0
  %2201 = vmatmul.mubr.bf16.gmra.mxu0 %v351
  %v2202 = vpop.f32.mrf.mxu0
  %v2203 = vadd.f32 0.0, %v2202
  %v2204 = vpop.f32.mrf.mxu0
  %v2205 = vadd.f32 0.0, %v2204
  %v2206 = vpop.f32.mrf.mxu0
  %v2207 = vadd.f32 0.0, %v2206
  %v2208 = vpop.f32.mrf.mxu0
  %v2209 = vadd.f32 0.0, %v2208
  %2210 = vmatprep.mubr.bf16.mxu0 0
  %2211 = vmatmul.mubr.bf16.gmra.mxu0 %v354
  %v2212 = vpop.f32.mrf.mxu0
  %v2213 = vadd.f32 0.0, %v2212
  %v2214 = vpop.f32.mrf.mxu0
  %v2215 = vadd.f32 0.0, %v2214
  %v2216 = vpop.f32.mrf.mxu0
  %v2217 = vadd.f32 0.0, %v2216
  %v2218 = vpop.f32.mrf.mxu0
  %v2219 = vadd.f32 0.0, %v2218
  %2220 = vmatprep.mubr.bf16.mxu0 0
  %2221 = vmatmul.mubr.bf16.gmra.mxu0 %v357
  %v2222 = vpop.f32.mrf.mxu0
  %v2223 = vadd.f32 0.0, %v2222
  %v2224 = vpop.f32.mrf.mxu0
  %v2225 = vadd.f32 0.0, %v2224
  %v2226 = vpop.f32.mrf.mxu0
  %v2227 = vadd.f32 0.0, %v2226
  %v2228 = vpop.f32.mrf.mxu0
  %v2229 = vadd.f32 0.0, %v2228
  %2230 = vmatprep.mubr.bf16.mxu0 0
  %2231 = vmatmul.mubr.bf16.gmra.mxu0 %v360
  %v2232 = vpop.f32.mrf.mxu0
  %v2233 = vadd.f32 0.0, %v2232
  %v2234 = vpop.f32.mrf.mxu0
  %v2235 = vadd.f32 0.0, %v2234
  %v2236 = vpop.f32.mrf.mxu0
  %v2237 = vadd.f32 0.0, %v2236
  %v2238 = vpop.f32.mrf.mxu0
  %v2239 = vadd.f32 0.0, %v2238
  %2240 = vmatprep.mubr.bf16.mxu0 0
  %2241 = vmatmul.mubr.bf16.gmra.mxu0 %v363
  %v2242 = vpop.f32.mrf.mxu0
  %v2243 = vadd.f32 0.0, %v2242
  %v2244 = vpop.f32.mrf.mxu0
  %v2245 = vadd.f32 0.0, %v2244
  %v2246 = vpop.f32.mrf.mxu0
  %v2247 = vadd.f32 0.0, %v2246
  %v2248 = vpop.f32.mrf.mxu0
  %v2249 = vadd.f32 0.0, %v2248
  %2250 = vmatprep.mubr.bf16.mxu0 0
  %2251 = vmatmul.mubr.bf16.gmra.mxu0 %v1050
  %v2252 = vpop.f32.mrf.mxu0
  %v2253 = vadd.f32 0.0, %v2252
  %v2254 = vpop.f32.mrf.mxu0
  %v2255 = vadd.f32 0.0, %v2254
  %v2256 = vpop.f32.mrf.mxu0
  %v2257 = vadd.f32 0.0, %v2256
  %v2258 = vpop.f32.mrf.mxu0
  %v2259 = vadd.f32 0.0, %v2258
  %2260 = vmatprep.mubr.bf16.mxu0 0
  %2261 = vmatmul.mubr.bf16.gmra.mxu0 %v1508
  %v2262 = vpop.f32.mrf.mxu0
  %v2263 = vadd.f32 0.0, %v2262
  %v2264 = vpop.f32.mrf.mxu0
  %v2265 = vadd.f32 0.0, %v2264
  %v2266 = vpop.f32.mrf.mxu0
  %v2267 = vadd.f32 0.0, %v2266
  %v2268 = vpop.f32.mrf.mxu0
  %v2269 = vadd.f32 0.0, %v2268
  %2270 = vmatprep.mubr.bf16.mxu0 0
  %2271 = vmatmul.mubr.bf16.gmra.mxu0 %v1966
  %v2272 = vpop.f32.mrf.mxu0
  %v2273 = vadd.f32 0.0, %v2272
  %v2274 = vpop.f32.mrf.mxu0
  %v2275 = vadd.f32 0.0, %v2274
  %v2276 = vpop.f32.mrf.mxu0
  %v2277 = vadd.f32 0.0, %v2276
  %v2278 = vpop.f32.mrf.mxu0
  %v2279 = vadd.f32 0.0, %v2278
  %2280 = vdwg.mxu0
  %v2281 = vadd.f32 %v1823, %v2003
  %v2282 = vadd.f32 %v1824, %v2005
  %v2283 = vadd.f32 %v1825, %v2007
  %v2284 = vadd.f32 %v1826, %v2009
  %v2285 = vadd.f32 %v1827, %v2013
  %v2286 = vadd.f32 %v1828, %v2015
  %v2287 = vadd.f32 %v1829, %v2017
  %v2288 = vadd.f32 %v1830, %v2019
  %v2289 = vadd.f32 %v1831, %v2023
  %v2290 = vadd.f32 %v1832, %v2025
  %v2291 = vadd.f32 %v1833, %v2027
  %v2292 = vadd.f32 %v1834, %v2029
  %v2293 = vadd.f32 %v1835, %v2033
  %v2294 = vadd.f32 %v1836, %v2035
  %v2295 = vadd.f32 %v1837, %v2037
  %v2296 = vadd.f32 %v1838, %v2039
  %v2297 = vadd.f32 %v1839, %v2043
  %v2298 = vadd.f32 %v1840, %v2045
  %v2299 = vadd.f32 %v1841, %v2047
  %v2300 = vadd.f32 %v1842, %v2049
  %v2301 = vadd.f32 %v1843, %v2053
  %v2302 = vadd.f32 %v1844, %v2055
  %v2303 = vadd.f32 %v1845, %v2057
  %v2304 = vadd.f32 %v1846, %v2059
  %v2305 = vadd.f32 %v1847, %v2063
  %v2306 = vadd.f32 %v1848, %v2065
  %v2307 = vadd.f32 %v1849, %v2067
  %v2308 = vadd.f32 %v1850, %v2069
  %v2309 = vadd.f32 %v1851, %v2073
  %v2310 = vadd.f32 %v1852, %v2075
  %v2311 = vadd.f32 %v1853, %v2077
  %v2312 = vadd.f32 %v1854, %v2079
  %v2313 = vadd.f32 %v1855, %v2083
  %v2314 = vadd.f32 %v1856, %v2085
  %v2315 = vadd.f32 %v1857, %v2087
  %v2316 = vadd.f32 %v1858, %v2089
  %v2317 = vadd.f32 %v1859, %v2093
  %v2318 = vadd.f32 %v1860, %v2095
  %v2319 = vadd.f32 %v1861, %v2097
  %v2320 = vadd.f32 %v1862, %v2099
  %v2321 = vadd.f32 %v1863, %v2103
  %v2322 = vadd.f32 %v1864, %v2105
  %v2323 = vadd.f32 %v1865, %v2107
  %v2324 = vadd.f32 %v1866, %v2109
  %v2325 = vadd.f32 %v1867, %v2113
  %v2326 = vadd.f32 %v1868, %v2115
  %v2327 = vadd.f32 %v1869, %v2117
  %v2328 = vadd.f32 %v1870, %v2119
  %v2329 = vadd.f32 %v1871, %v2123
  %v2330 = vadd.f32 %v1872, %v2125
  %v2331 = vadd.f32 %v1873, %v2127
  %v2332 = vadd.f32 %v1874, %v2129
  %v2333 = vadd.f32 %v1875, %v2133
  %v2334 = vadd.f32 %v1876, %v2135
  %v2335 = vadd.f32 %v1877, %v2137
  %v2336 = vadd.f32 %v1878, %v2139
  %v2337 = vadd.f32 %v1879, %v2143
  %v2338 = vadd.f32 %v1880, %v2145
  %v2339 = vadd.f32 %v1881, %v2147
  %v2340 = vadd.f32 %v1882, %v2149
  %v2341 = vadd.f32 %v1883, %v2153
  %v2342 = vadd.f32 %v1884, %v2155
  %v2343 = vadd.f32 %v1885, %v2157
  %v2344 = vadd.f32 %v1886, %v2159
  %v2345 = vadd.f32 %v1887, %v2163
  %v2346 = vadd.f32 %v1888, %v2165
  %v2347 = vadd.f32 %v1889, %v2167
  %v2348 = vadd.f32 %v1890, %v2169
  %v2349 = vadd.f32 %v1891, %v2173
  %v2350 = vadd.f32 %v1892, %v2175
  %v2351 = vadd.f32 %v1893, %v2177
  %v2352 = vadd.f32 %v1894, %v2179
  %v2353 = vadd.f32 %v1895, %v2183
  %v2354 = vadd.f32 %v1896, %v2185
  %v2355 = vadd.f32 %v1897, %v2187
  %v2356 = vadd.f32 %v1898, %v2189
  %v2357 = vadd.f32 %v1899, %v2193
  %v2358 = vadd.f32 %v1900, %v2195
  %v2359 = vadd.f32 %v1901, %v2197
  %v2360 = vadd.f32 %v1902, %v2199
  %v2361 = vadd.f32 %v1903, %v2203
  %v2362 = vadd.f32 %v1904, %v2205
  %v2363 = vadd.f32 %v1905, %v2207
  %v2364 = vadd.f32 %v1906, %v2209
  %v2365 = vadd.f32 %v1907, %v2213
  %v2366 = vadd.f32 %v1908, %v2215
  %v2367 = vadd.f32 %v1909, %v2217
  %v2368 = vadd.f32 %v1910, %v2219
  %v2369 = vadd.f32 %v1911, %v2223
  %v2370 = vadd.f32 %v1912, %v2225
  %v2371 = vadd.f32 %v1913, %v2227
  %v2372 = vadd.f32 %v1914, %v2229
  %v2373 = vadd.f32 %v1915, %v2233
  %v2374 = vadd.f32 %v1916, %v2235
  %v2375 = vadd.f32 %v1917, %v2237
  %v2376 = vadd.f32 %v1918, %v2239
  %v2377 = vadd.f32 %v1919, %v2243
  %v2378 = vadd.f32 %v1920, %v2245
  %v2379 = vadd.f32 %v1921, %v2247
  %v2380 = vadd.f32 %v1922, %v2249
  %v2381 = vadd.f32 %v1923, %v2253
  %v2382 = vadd.f32 %v1924, %v2255
  %v2383 = vadd.f32 %v1925, %v2257
  %v2384 = vadd.f32 %v1926, %v2259
  %v2385 = vadd.f32 %v1927, %v2263
  %v2386 = vadd.f32 %v1928, %v2265
  %v2387 = vadd.f32 %v1929, %v2267
  %v2388 = vadd.f32 %v1930, %v2269
  %v2389 = vadd.f32 %v1931, %v2273
  %v2390 = vadd.f32 %v1932, %v2275
  %v2391 = vadd.f32 %v1933, %v2277
  %v2392 = vadd.f32 %v1934, %v2279
  %v2393 = vld [vmem:[%s2] sm:$0x3]
  %v2395 = vlaneseq
  %v2396 = vshrl.u32 %v2395, 7
  %v2397 = vsub.s32 0, %v2396
  %v2398 = vrot.slane %v2393, %v2397
  %v2399 = vlaneseq
  %v2400 = vshrl.u32 %v2399, 7
  %v2401 = vsub.s32 1, %v2400
  %v2402 = vrot.slane %v2393, %v2401
  %v2405 = vadd.f32 %v2281, %v2398
  %v2406 = vadd.f32 %v2282, %v2402
  %v2407 = vadd.f32 %v2283, %v2398
  %v2408 = vadd.f32 %v2284, %v2402
  %v2409 = vadd.f32 %v2285, %v2398
  %v2410 = vadd.f32 %v2286, %v2402
  %v2411 = vadd.f32 %v2287, %v2398
  %v2412 = vadd.f32 %v2288, %v2402
  %v2413 = vadd.f32 %v2289, %v2398
  %v2414 = vadd.f32 %v2290, %v2402
  %v2415 = vadd.f32 %v2291, %v2398
  %v2416 = vadd.f32 %v2292, %v2402
  %v2417 = vadd.f32 %v2293, %v2398
  %v2418 = vadd.f32 %v2294, %v2402
  %v2419 = vadd.f32 %v2295, %v2398
  %v2420 = vadd.f32 %v2296, %v2402
  %v2421 = vadd.f32 %v2297, %v2398
  %v2422 = vadd.f32 %v2298, %v2402
  %v2423 = vadd.f32 %v2299, %v2398
  %v2424 = vadd.f32 %v2300, %v2402
  %v2425 = vadd.f32 %v2301, %v2398
  %v2426 = vadd.f32 %v2302, %v2402
  %v2427 = vadd.f32 %v2303, %v2398
  %v2428 = vadd.f32 %v2304, %v2402
  %v2429 = vadd.f32 %v2305, %v2398
  %v2430 = vadd.f32 %v2306, %v2402
  %v2431 = vadd.f32 %v2307, %v2398
  %v2432 = vadd.f32 %v2308, %v2402
  %v2433 = vadd.f32 %v2309, %v2398
  %v2434 = vadd.f32 %v2310, %v2402
  %v2435 = vadd.f32 %v2311, %v2398
  %v2436 = vadd.f32 %v2312, %v2402
  %v2437 = vadd.f32 %v2313, %v2398
  %v2438 = vadd.f32 %v2314, %v2402
  %v2439 = vadd.f32 %v2315, %v2398
  %v2440 = vadd.f32 %v2316, %v2402
  %v2441 = vadd.f32 %v2317, %v2398
  %v2442 = vadd.f32 %v2318, %v2402
  %v2443 = vadd.f32 %v2319, %v2398
  %v2444 = vadd.f32 %v2320, %v2402
  %v2445 = vadd.f32 %v2321, %v2398
  %v2446 = vadd.f32 %v2322, %v2402
  %v2447 = vadd.f32 %v2323, %v2398
  %v2448 = vadd.f32 %v2324, %v2402
  %v2449 = vadd.f32 %v2325, %v2398
  %v2450 = vadd.f32 %v2326, %v2402
  %v2451 = vadd.f32 %v2327, %v2398
  %v2452 = vadd.f32 %v2328, %v2402
  %v2453 = vadd.f32 %v2329, %v2398
  %v2454 = vadd.f32 %v2330, %v2402
  %v2455 = vadd.f32 %v2331, %v2398
  %v2456 = vadd.f32 %v2332, %v2402
  %v2457 = vadd.f32 %v2333, %v2398
  %v2458 = vadd.f32 %v2334, %v2402
  %v2459 = vadd.f32 %v2335, %v2398
  %v2460 = vadd.f32 %v2336, %v2402
  %v2461 = vadd.f32 %v2337, %v2398
  %v2462 = vadd.f32 %v2338, %v2402
  %v2463 = vadd.f32 %v2339, %v2398
  %v2464 = vadd.f32 %v2340, %v2402
  %v2465 = vadd.f32 %v2341, %v2398
  %v2466 = vadd.f32 %v2342, %v2402
  %v2467 = vadd.f32 %v2343, %v2398
  %v2468 = vadd.f32 %v2344, %v2402
  %v2469 = vadd.f32 %v2345, %v2398
  %v2470 = vadd.f32 %v2346, %v2402
  %v2471 = vadd.f32 %v2347, %v2398
  %v2472 = vadd.f32 %v2348, %v2402
  %v2473 = vadd.f32 %v2349, %v2398
  %v2474 = vadd.f32 %v2350, %v2402
  %v2475 = vadd.f32 %v2351, %v2398
  %v2476 = vadd.f32 %v2352, %v2402
  %v2477 = vadd.f32 %v2353, %v2398
  %v2478 = vadd.f32 %v2354, %v2402
  %v2479 = vadd.f32 %v2355, %v2398
  %v2480 = vadd.f32 %v2356, %v2402
  %v2481 = vadd.f32 %v2357, %v2398
  %v2482 = vadd.f32 %v2358, %v2402
  %v2483 = vadd.f32 %v2359, %v2398
  %v2484 = vadd.f32 %v2360, %v2402
  %v2485 = vadd.f32 %v2361, %v2398
  %v2486 = vadd.f32 %v2362, %v2402
  %v2487 = vadd.f32 %v2363, %v2398
  %v2488 = vadd.f32 %v2364, %v2402
  %v2489 = vadd.f32 %v2365, %v2398
  %v2490 = vadd.f32 %v2366, %v2402
  %v2491 = vadd.f32 %v2367, %v2398
  %v2492 = vadd.f32 %v2368, %v2402
  %v2493 = vadd.f32 %v2369, %v2398
  %v2494 = vadd.f32 %v2370, %v2402
  %v2495 = vadd.f32 %v2371, %v2398
  %v2496 = vadd.f32 %v2372, %v2402
  %v2497 = vadd.f32 %v2373, %v2398
  %v2498 = vadd.f32 %v2374, %v2402
  %v2499 = vadd.f32 %v2375, %v2398
  %v2500 = vadd.f32 %v2376, %v2402
  %v2501 = vadd.f32 %v2377, %v2398
  %v2502 = vadd.f32 %v2378, %v2402
  %v2503 = vadd.f32 %v2379, %v2398
  %v2504 = vadd.f32 %v2380, %v2402
  %v2505 = vadd.f32 %v2381, %v2398
  %v2506 = vadd.f32 %v2382, %v2402
  %v2507 = vadd.f32 %v2383, %v2398
  %v2508 = vadd.f32 %v2384, %v2402
  %v2509 = vadd.f32 %v2385, %v2398
  %v2510 = vadd.f32 %v2386, %v2402
  %v2511 = vadd.f32 %v2387, %v2398
  %v2512 = vadd.f32 %v2388, %v2402
  %v2513 = vadd.f32 %v2389, %v2398
  %v2514 = vadd.f32 %v2390, %v2402
  %v2515 = vadd.f32 %v2391, %v2398
  %v2516 = vadd.f32 %v2392, %v2402
  %v2517 = vtanh.pop %v2405
  %v2518 = vtanh.pop %v2406
  %v2519 = vtanh.pop %v2407
  %v2520 = vtanh.pop %v2408
  %v2521 = vtanh.pop %v2409
  %v2522 = vtanh.pop %v2410
  %v2523 = vtanh.pop %v2411
  %v2524 = vtanh.pop %v2412
  %v2525 = vtanh.pop %v2413
  %v2526 = vtanh.pop %v2414
  %v2527 = vtanh.pop %v2415
  %v2528 = vtanh.pop %v2416
  %v2529 = vtanh.pop %v2417
  %v2530 = vtanh.pop %v2418
  %v2531 = vtanh.pop %v2419
  %v2532 = vtanh.pop %v2420
  %v2533 = vtanh.pop %v2421
  %v2534 = vtanh.pop %v2422
  %v2535 = vtanh.pop %v2423
  %v2536 = vtanh.pop %v2424
  %v2537 = vtanh.pop %v2425
  %v2538 = vtanh.pop %v2426
  %v2539 = vtanh.pop %v2427
  %v2540 = vtanh.pop %v2428
  %v2541 = vtanh.pop %v2429
  %v2542 = vtanh.pop %v2430
  %v2543 = vtanh.pop %v2431
  %v2544 = vtanh.pop %v2432
  %v2545 = vtanh.pop %v2433
  %v2546 = vtanh.pop %v2434
  %v2547 = vtanh.pop %v2435
  %v2548 = vtanh.pop %v2436
  %v2549 = vtanh.pop %v2437
  %v2550 = vtanh.pop %v2438
  %v2551 = vtanh.pop %v2439
  %v2552 = vtanh.pop %v2440
  %v2553 = vtanh.pop %v2441
  %v2554 = vtanh.pop %v2442
  %v2555 = vtanh.pop %v2443
  %v2556 = vtanh.pop %v2444
  %v2557 = vtanh.pop %v2445
  %v2558 = vtanh.pop %v2446
  %v2559 = vtanh.pop %v2447
  %v2560 = vtanh.pop %v2448
  %v2561 = vtanh.pop %v2449
  %v2562 = vtanh.pop %v2450
  %v2563 = vtanh.pop %v2451
  %v2564 = vtanh.pop %v2452
  %v2565 = vtanh.pop %v2453
  %v2566 = vtanh.pop %v2454
  %v2567 = vtanh.pop %v2455
  %v2568 = vtanh.pop %v2456
  %v2569 = vtanh.pop %v2457
  %v2570 = vtanh.pop %v2458
  %v2571 = vtanh.pop %v2459
  %v2572 = vtanh.pop %v2460
  %v2573 = vtanh.pop %v2461
  %v2574 = vtanh.pop %v2462
  %v2575 = vtanh.pop %v2463
  %v2576 = vtanh.pop %v2464
  %v2577 = vtanh.pop %v2465
  %v2578 = vtanh.pop %v2466
  %v2579 = vtanh.pop %v2467
  %v2580 = vtanh.pop %v2468
  %v2581 = vtanh.pop %v2469
  %v2582 = vtanh.pop %v2470
  %v2583 = vtanh.pop %v2471
  %v2584 = vtanh.pop %v2472
  %v2585 = vtanh.pop %v2473
  %v2586 = vtanh.pop %v2474
  %v2587 = vtanh.pop %v2475
  %v2588 = vtanh.pop %v2476
  %v2589 = vtanh.pop %v2477
  %v2590 = vtanh.pop %v2478
  %v2591 = vtanh.pop %v2479
  %v2592 = vtanh.pop %v2480
  %v2593 = vtanh.pop %v2481
  %v2594 = vtanh.pop %v2482
  %v2595 = vtanh.pop %v2483
  %v2596 = vtanh.pop %v2484
  %v2597 = vtanh.pop %v2485
  %v2598 = vtanh.pop %v2486
  %v2599 = vtanh.pop %v2487
  %v2600 = vtanh.pop %v2488
  %v2601 = vtanh.pop %v2489
  %v2602 = vtanh.pop %v2490
  %v2603 = vtanh.pop %v2491
  %v2604 = vtanh.pop %v2492
  %v2605 = vtanh.pop %v2493
  %v2606 = vtanh.pop %v2494
  %v2607 = vtanh.pop %v2495
  %v2608 = vtanh.pop %v2496
  %v2609 = vtanh.pop %v2497
  %v2610 = vtanh.pop %v2498
  %v2611 = vtanh.pop %v2499
  %v2612 = vtanh.pop %v2500
  %v2613 = vtanh.pop %v2501
  %v2614 = vtanh.pop %v2502
  %v2615 = vtanh.pop %v2503
  %v2616 = vtanh.pop %v2504
  %v2617 = vtanh.pop %v2505
  %v2618 = vtanh.pop %v2506
  %v2619 = vtanh.pop %v2507
  %v2620 = vtanh.pop %v2508
  %v2621 = vtanh.pop %v2509
  %v2622 = vtanh.pop %v2510
  %v2623 = vtanh.pop %v2511
  %v2624 = vtanh.pop %v2512
  %v2625 = vtanh.pop %v2513
  %v2626 = vtanh.pop %v2514
  %v2627 = vtanh.pop %v2515
  %v2628 = vtanh.pop %v2516
  %v2629 = vadd.f32 %v2517, %v2521
  %v2630 = vadd.f32 %v2518, %v2522
  %v2631 = vadd.f32 %v2519, %v2523
  %v2632 = vadd.f32 %v2520, %v2524
  %v2633 = vadd.f32 %v2521, %v2525
  %v2634 = vadd.f32 %v2522, %v2526
  %v2635 = vadd.f32 %v2523, %v2527
  %v2636 = vadd.f32 %v2524, %v2528
  %v2637 = vadd.f32 %v2525, %v2529
  %v2638 = vadd.f32 %v2526, %v2530
  %v2639 = vadd.f32 %v2527, %v2531
  %v2640 = vadd.f32 %v2528, %v2532
  %v2641 = vadd.f32 %v2529, %v2533
  %v2642 = vadd.f32 %v2530, %v2534
  %v2643 = vadd.f32 %v2531, %v2535
  %v2644 = vadd.f32 %v2532, %v2536
  %v2645 = vadd.f32 %v2533, %v2537
  %v2646 = vadd.f32 %v2534, %v2538
  %v2647 = vadd.f32 %v2535, %v2539
  %v2648 = vadd.f32 %v2536, %v2540
  %v2649 = vadd.f32 %v2537, %v2541
  %v2650 = vadd.f32 %v2538, %v2542
  %v2651 = vadd.f32 %v2539, %v2543
  %v2652 = vadd.f32 %v2540, %v2544
  %v2653 = vadd.f32 %v2541, %v2545
  %v2654 = vadd.f32 %v2542, %v2546
  %v2655 = vadd.f32 %v2543, %v2547
  %v2656 = vadd.f32 %v2544, %v2548
  %v2657 = vadd.f32 %v2545, %v2549
  %v2658 = vadd.f32 %v2546, %v2550
  %v2659 = vadd.f32 %v2547, %v2551
  %v2660 = vadd.f32 %v2548, %v2552
  %v2661 = vadd.f32 %v2549, %v2553
  %v2662 = vadd.f32 %v2550, %v2554
  %v2663 = vadd.f32 %v2551, %v2555
  %v2664 = vadd.f32 %v2552, %v2556
  %v2665 = vadd.f32 %v2553, %v2557
  %v2666 = vadd.f32 %v2554, %v2558
  %v2667 = vadd.f32 %v2555, %v2559
  %v2668 = vadd.f32 %v2556, %v2560
  %v2669 = vadd.f32 %v2557, %v2561
  %v2670 = vadd.f32 %v2558, %v2562
  %v2671 = vadd.f32 %v2559, %v2563
  %v2672 = vadd.f32 %v2560, %v2564
  %v2673 = vadd.f32 %v2561, %v2565
  %v2674 = vadd.f32 %v2562, %v2566
  %v2675 = vadd.f32 %v2563, %v2567
  %v2676 = vadd.f32 %v2564, %v2568
  %v2677 = vadd.f32 %v2565, %v2569
  %v2678 = vadd.f32 %v2566, %v2570
  %v2679 = vadd.f32 %v2567, %v2571
  %v2680 = vadd.f32 %v2568, %v2572
  %v2681 = vadd.f32 %v2569, %v2573
  %v2682 = vadd.f32 %v2570, %v2574
  %v2683 = vadd.f32 %v2571, %v2575
  %v2684 = vadd.f32 %v2572, %v2576
  %v2685 = vadd.f32 %v2573, %v2577
  %v2686 = vadd.f32 %v2574, %v2578
  %v2687 = vadd.f32 %v2575, %v2579
  %v2688 = vadd.f32 %v2576, %v2580
  %v2689 = vadd.f32 %v2577, %v2581
  %v2690 = vadd.f32 %v2578, %v2582
  %v2691 = vadd.f32 %v2579, %v2583
  %v2692 = vadd.f32 %v2580, %v2584
  %v2693 = vadd.f32 %v2581, %v2585
  %v2694 = vadd.f32 %v2582, %v2586
  %v2695 = vadd.f32 %v2583, %v2587
  %v2696 = vadd.f32 %v2584, %v2588
  %v2697 = vadd.f32 %v2585, %v2589
  %v2698 = vadd.f32 %v2586, %v2590
  %v2699 = vadd.f32 %v2587, %v2591
  %v2700 = vadd.f32 %v2588, %v2592
  %v2701 = vadd.f32 %v2589, %v2593
  %v2702 = vadd.f32 %v2590, %v2594
  %v2703 = vadd.f32 %v2591, %v2595
  %v2704 = vadd.f32 %v2592, %v2596
  %v2705 = vadd.f32 %v2593, %v2597
  %v2706 = vadd.f32 %v2594, %v2598
  %v2707 = vadd.f32 %v2595, %v2599
  %v2708 = vadd.f32 %v2596, %v2600
  %v2709 = vadd.f32 %v2597, %v2601
  %v2710 = vadd.f32 %v2598, %v2602
  %v2711 = vadd.f32 %v2599, %v2603
  %v2712 = vadd.f32 %v2600, %v2604
  %v2713 = vadd.f32 %v2601, %v2605
  %v2714 = vadd.f32 %v2602, %v2606
  %v2715 = vadd.f32 %v2603, %v2607
  %v2716 = vadd.f32 %v2604, %v2608
  %v2717 = vadd.f32 %v2605, %v2609
  %v2718 = vadd.f32 %v2606, %v2610
  %v2719 = vadd.f32 %v2607, %v2611
  %v2720 = vadd.f32 %v2608, %v2612
  %v2721 = vadd.f32 %v2609, %v2613
  %v2722 = vadd.f32 %v2610, %v2614
  %v2723 = vadd.f32 %v2611, %v2615
  %v2724 = vadd.f32 %v2612, %v2616
  %v2725 = vadd.f32 %v2613, %v2617
  %v2726 = vadd.f32 %v2614, %v2618
  %v2727 = vadd.f32 %v2615, %v2619
  %v2728 = vadd.f32 %v2616, %v2620
  %v2729 = vadd.f32 %v2617, %v2621
  %v2730 = vadd.f32 %v2618, %v2622
  %v2731 = vadd.f32 %v2619, %v2623
  %v2732 = vadd.f32 %v2620, %v2624
  %v2733 = vadd.f32 %v2621, %v2625
  %v2734 = vadd.f32 %v2622, %v2626
  %v2735 = vadd.f32 %v2623, %v2627
  %v2736 = vadd.f32 %v2624, %v2628
  %v2737 = vpack.c.bf16 %v2631, %v2629
  %v2738 = vpack.c.bf16 %v2632, %v2630
  %v2739 = vpack.c.bf16 %v2635, %v2633
  %v2740 = vpack.c.bf16 %v2636, %v2634
  %v2741 = vpack.c.bf16 %v2639, %v2637
  %v2742 = vpack.c.bf16 %v2640, %v2638
  %v2743 = vpack.c.bf16 %v2643, %v2641
  %v2744 = vpack.c.bf16 %v2644, %v2642
  %v2745 = vpack.c.bf16 %v2647, %v2645
  %v2746 = vpack.c.bf16 %v2648, %v2646
  %v2747 = vpack.c.bf16 %v2651, %v2649
  %v2748 = vpack.c.bf16 %v2652, %v2650
  %v2749 = vpack.c.bf16 %v2655, %v2653
  %v2750 = vpack.c.bf16 %v2656, %v2654
  %v2751 = vpack.c.bf16 %v2659, %v2657
  %v2752 = vpack.c.bf16 %v2660, %v2658
  %v2753 = vpack.c.bf16 %v2663, %v2661
  %v2754 = vpack.c.bf16 %v2664, %v2662
  %v2755 = vpack.c.bf16 %v2667, %v2665
  %v2756 = vpack.c.bf16 %v2668, %v2666
  %v2757 = vpack.c.bf16 %v2671, %v2669
  %v2758 = vpack.c.bf16 %v2672, %v2670
  %v2759 = vpack.c.bf16 %v2675, %v2673
  %v2760 = vpack.c.bf16 %v2676, %v2674
  %v2761 = vpack.c.bf16 %v2679, %v2677
  %v2762 = vpack.c.bf16 %v2680, %v2678
  %v2763 = vpack.c.bf16 %v2683, %v2681
  %v2764 = vpack.c.bf16 %v2684, %v2682
  %v2765 = vpack.c.bf16 %v2687, %v2685
  %v2766 = vpack.c.bf16 %v2688, %v2686
  %v2767 = vpack.c.bf16 %v2691, %v2689
  %v2768 = vpack.c.bf16 %v2692, %v2690
  %v2769 = vpack.c.bf16 %v2695, %v2693
  %v2770 = vpack.c.bf16 %v2696, %v2694
  %v2771 = vpack.c.bf16 %v2699, %v2697
  %v2772 = vpack.c.bf16 %v2700, %v2698
  %v2773 = vpack.c.bf16 %v2703, %v2701
  %v2774 = vpack.c.bf16 %v2704, %v2702
  %v2775 = vpack.c.bf16 %v2707, %v2705
  %v2776 = vpack.c.bf16 %v2708, %v2706
  %v2777 = vpack.c.bf16 %v2711, %v2709
  %v2778 = vpack.c.bf16 %v2712, %v2710
  %v2779 = vpack.c.bf16 %v2715, %v2713
  %v2780 = vpack.c.bf16 %v2716, %v2714
  %v2781 = vpack.c.bf16 %v2719, %v2717
  %v2782 = vpack.c.bf16 %v2720, %v2718
  %v2783 = vpack.c.bf16 %v2723, %v2721
  %v2784 = vpack.c.bf16 %v2724, %v2722
  %v2785 = vpack.c.bf16 %v2727, %v2725
  %v2786 = vpack.c.bf16 %v2728, %v2726
  %v2787 = vpack.c.bf16 %v2731, %v2729
  %v2788 = vpack.c.bf16 %v2732, %v2730
  %v2789 = vpack.c.bf16 %v2735, %v2733
  %v2790 = vpack.c.bf16 %v2736, %v2734
  %v2791 = vld [vmem:[%s3] sm:$0xff]
  %v2792 = vld [vmem:[%s3 + $0x8] sm:$0xff]
  %v2793 = vld [vmem:[%s3 + $0x10] sm:$0xff]
  %v2794 = vld [vmem:[%s3 + $0x18] sm:$0xff]
  %v2795 = vld [vmem:[%s3 + $0x20] sm:$0xff]
  %v2796 = vld [vmem:[%s3 + $0x28] sm:$0xff]
  %v2797 = vld [vmem:[%s3 + $0x30] sm:$0xff]
  %v2798 = vld [vmem:[%s3 + $0x38] sm:$0xff]
  %v2799 = vld [vmem:[%s3 + $0x40] sm:$0xff]
  %v2800 = vld [vmem:[%s3 + $0x48] sm:$0xff]
  %v2801 = vld [vmem:[%s3 + $0x50] sm:$0xff]
  %v2802 = vld [vmem:[%s3 + $0x58] sm:$0xff]
  %v2803 = vld [vmem:[%s3 + $0x60] sm:$0xff]
  %v2804 = vld [vmem:[%s3 + $0x68] sm:$0xff]
  %v2805 = vld [vmem:[%s3 + $0x70] sm:$0xff]
  %v2806 = vld [vmem:[%s3 + $0x78] sm:$0xff]
  %v2807 = vld [vmem:[%s3 + $0x80] sm:$0xff]
  %v2808 = vld [vmem:[%s3 + $0x88] sm:$0xff]
  %v2809 = vld [vmem:[%s3 + $0x90] sm:$0xff]
  %v2810 = vld [vmem:[%s3 + $0x98] sm:$0xff]
  %v2811 = vld [vmem:[%s3 + $0xa0] sm:$0xff]
  %s2812 = scalar_lea.vmem %s3, 168
  %v2813 = vld [vmem:[%s2812] sm:$0xff]
  %v2814 = vld [vmem:[%s2812 + $0x8] sm:$0xff]
  %v2815 = vld [vmem:[%s2812 + $0x10] sm:$0xff]
  %v2816 = vld [vmem:[%s2812 + $0x18] sm:$0xff]
  %v2817 = vld [vmem:[%s2812 + $0x20] sm:$0xff]
  %v2818 = vld [vmem:[%s2812 + $0x28] sm:$0xff]
  %v2819 = vld [vmem:[%s2812 + $0x30] sm:$0xff]
  %v2820 = vld [vmem:[%s2812 + $0x38] sm:$0xff]
  %v2821 = vld [vmem:[%s2812 + $0x40] sm:$0xff]
  %v2822 = vld [vmem:[%s2812 + $0x48] sm:$0xff]
  %v2823 = vld [vmem:[%s2812 + $0x50] sm:$0xff]
  %v2824 = vld [vmem:[%s2812 + $0x58] sm:$0xff]
  %v2825 = vld [vmem:[%s2812 + $0x60] sm:$0xff]
  %v2826 = vld [vmem:[%s2812 + $0x68] sm:$0xff]
  %v2827 = vld [vmem:[%s2812 + $0x70] sm:$0xff]
  %v2828 = vld [vmem:[%s2812 + $0x78] sm:$0xff]
  %v2829 = vld [vmem:[%s2812 + $0x80] sm:$0xff]
  %v2830 = vld [vmem:[%s2812 + $0x88] sm:$0xff]
  %v2831 = vld [vmem:[%s2812 + $0x90] sm:$0xff]
  %v2832 = vld [vmem:[%s2812 + $0x98] sm:$0xff]
  %v2833 = vld [vmem:[%s2812 + $0xa0] sm:$0xff]
  %v2855 = vunpack.c.l.b16 %v2813
  %v2856 = vunpack.c.h.b16 %v2813
  %v2857 = vunpack.c.l.b16 %v2814
  %v2858 = vunpack.c.h.b16 %v2814
  %v2859 = vunpack.c.l.b16 %v2815
  %v2860 = vunpack.c.h.b16 %v2815
  %v2861 = vunpack.c.l.b16 %v2816
  %v2862 = vunpack.c.h.b16 %v2816
  %v2863 = vunpack.c.l.b16 %v2817
  %v2864 = vunpack.c.h.b16 %v2817
  %v2865 = vunpack.c.l.b16 %v2818
  %v2866 = vunpack.c.h.b16 %v2818
  %v2867 = vunpack.c.l.b16 %v2819
  %v2868 = vunpack.c.h.b16 %v2819
  %v2869 = vunpack.c.l.b16 %v2820
  %v2870 = vunpack.c.h.b16 %v2820
  %v2871 = vunpack.c.l.b16 %v2821
  %v2872 = vunpack.c.h.b16 %v2821
  %v2873 = vunpack.c.l.b16 %v2822
  %v2874 = vunpack.c.h.b16 %v2822
  %v2875 = vunpack.c.l.b16 %v2823
  %v2876 = vunpack.c.h.b16 %v2823
  %v2877 = vunpack.c.l.b16 %v2824
  %v2878 = vunpack.c.h.b16 %v2824
  %v2879 = vunpack.c.l.b16 %v2825
  %v2880 = vunpack.c.h.b16 %v2825
  %v2881 = vunpack.c.l.b16 %v2826
  %v2882 = vunpack.c.h.b16 %v2826
  %v2883 = vunpack.c.l.b16 %v2827
  %v2884 = vunpack.c.h.b16 %v2827
  %v2885 = vunpack.c.l.b16 %v2828
  %v2886 = vunpack.c.h.b16 %v2828
  %v2887 = vunpack.c.l.b16 %v2829
  %v2888 = vunpack.c.h.b16 %v2829
  %v2889 = vunpack.c.l.b16 %v2830
  %v2890 = vunpack.c.h.b16 %v2830
  %v2891 = vunpack.c.l.b16 %v2831
  %v2892 = vunpack.c.h.b16 %v2831
  %v2893 = vunpack.c.l.b16 %v2832
  %v2894 = vunpack.c.h.b16 %v2832
  %v2895 = vunpack.c.l.b16 %v2833
  %v2896 = vunpack.c.h.b16 %v2833
  %v2897 = vpack.c.b16 %v2857, %v2855
  %v2898 = vpack.c.b16 %v2858, %v2856
  %v2899 = vpack.c.b16 %v2861, %v2859
  %v2900 = vpack.c.b16 %v2862, %v2860
  %v2901 = vpack.c.b16 %v2865, %v2863
  %v2902 = vpack.c.b16 %v2866, %v2864
  %v2903 = vpack.c.b16 %v2869, %v2867
  %v2904 = vpack.c.b16 %v2870, %v2868
  %v2905 = vpack.c.b16 %v2873, %v2871
  %v2906 = vpack.c.b16 %v2874, %v2872
  %v2907 = vpack.c.b16 %v2877, %v2875
  %v2908 = vpack.c.b16 %v2878, %v2876
  %v2909 = vpack.c.b16 %v2881, %v2879
  %v2910 = vpack.c.b16 %v2882, %v2880
  %v2911 = vpack.c.b16 %v2885, %v2883
  %v2912 = vpack.c.b16 %v2886, %v2884
  %v2913 = vpack.c.b16 %v2889, %v2887
  %v2914 = vpack.c.b16 %v2890, %v2888
  %v2915 = vpack.c.b16 %v2893, %v2891
  %v2916 = vpack.c.b16 %v2894, %v2892
  %v2917 = vpack.c.b16 %v2895, %v2895
  %v2918 = vpack.c.b16 %v2896, %v2896
  %vm2939 = vcmask 326656
  %v2941 = vsel %vm2939, %v2742, 0
  %v2944 = vsel %vm2939, %v2744, 0
  %v2947 = vsel %vm2939, %v2746, 0
  %v2950 = vsel %vm2939, %v2748, 0
  %v2953 = vsel %vm2939, %v2750, 0
  %v2956 = vsel %vm2939, %v2752, 0
  %v2959 = vsel %vm2939, %v2754, 0
  %v2962 = vsel %vm2939, %v2756, 0
  %v2965 = vsel %vm2939, %v2758, 0
  %v2968 = vsel %vm2939, %v2760, 0
  %v2971 = vsel %vm2939, %v2762, 0
  %v2974 = vsel %vm2939, %v2764, 0
  %v2977 = vsel %vm2939, %v2766, 0
  %v2980 = vsel %vm2939, %v2768, 0
  %v2983 = vsel %vm2939, %v2770, 0
  %v2986 = vsel %vm2939, %v2772, 0
  %v2989 = vsel %vm2939, %v2774, 0
  %v2992 = vsel %vm2939, %v2776, 0
  %v2995 = vsel %vm2939, %v2778, 0
  %vm2997 = vcmask 1043456
  %v2999 = vsel %vm2997, %v2917, 0
  %v3002 = vsel %vm2997, %v2918, 0
  %3004 = vmatprep.subr.bf16.mxu0 %v2912
  %3005 = vmatpush1.bf16.msra.mxu0 %v2911
  %3006 = vmatprep.subr.bf16.mxu0 %v2910
  %3007 = vmatpush1.bf16.msra.mxu0 %v2909
  %3008 = vmatprep.subr.bf16.mxu0 %v2908
  %3009 = vmatpush1.bf16.msra.mxu0 %v2907
  %3010 = vmatprep.subr.bf16.mxu0 %v2906
  %3011 = vmatpush1.bf16.msra.mxu0 %v2905
  %3012 = vmatprep.subr.bf16.mxu0 %v2904
  %3013 = vmatpush1.bf16.msra.mxu0 %v2903
  %3014 = vmatprep.subr.bf16.mxu0 %v2902
  %3015 = vmatpush1.bf16.msra.mxu0 %v2901
  %3016 = vmatprep.subr.bf16.mxu0 %v2900
  %3017 = vmatpush1.bf16.msra.mxu0 %v2899
  %3018 = vmatprep.subr.bf16.mxu0 %v2898
  %3019 = vmatpush1.bf16.msra.mxu0 %v2897
  %3020 = vmatprep.subr.bf16.mxu0 0
  %3021 = vmatpush2.bf16.msra.mxu0 0
  %3022 = vmatprep.subr.bf16.mxu0 0
  %3023 = vmatpush2.bf16.msra.mxu0 0
  %3024 = vmatprep.subr.bf16.mxu0 0
  %3025 = vmatpush2.bf16.msra.mxu0 0
  %3026 = vmatprep.subr.bf16.mxu0 0
  %3027 = vmatpush2.bf16.msra.mxu0 0
  %3028 = vmatprep.subr.bf16.mxu0 0
  %3029 = vmatpush2.bf16.msra.mxu0 0
  %3030 = vmatprep.subr.bf16.mxu0 %v3002
  %3031 = vmatpush2.bf16.msra.mxu0 %v2999
  %3032 = vmatprep.subr.bf16.mxu0 %v2916
  %3033 = vmatpush2.bf16.msra.mxu0 %v2915
  %3034 = vmatprep.subr.bf16.mxu0 %v2914
  %3035 = vmatpush2.bf16.msra.mxu0 %v2913
  %3036 = vmatprep.mubr.bf16.mxu0 %v2941
  %3037 = vmatmul.mubr.bf16.gmra.mxu0 %v2741
  %v3038 = vpop.f32.mrf.mxu0
  %v3039 = vadd.f32 0.0, %v3038
  %v3040 = vpop.f32.mrf.mxu0
  %v3041 = vadd.f32 0.0, %v3040
  %v3042 = vpop.f32.mrf.mxu0
  %v3043 = vadd.f32 0.0, %v3042
  %v3044 = vpop.f32.mrf.mxu0
  %v3045 = vadd.f32 0.0, %v3044
  %3046 = vmatprep.mubr.bf16.mxu0 %v2944
  %3047 = vmatmul.mubr.bf16.gmra.mxu0 %v2743
  %v3048 = vpop.f32.mrf.mxu0
  %v3049 = vpop.f32.mrf.mxu0
  %v3050 = vpop.f32.mrf.mxu0
  %v3051 = vpop.f32.mrf.mxu0
  %3052 = vmatprep.mubr.bf16.mxu0 %v2947
  %3053 = vmatmul.mubr.bf16.gmra.mxu0 %v2745
  %v3054 = vpop.f32.mrf.mxu0
  %v3055 = vadd.f32 0.0, %v3054
  %v3056 = vpop.f32.mrf.mxu0
  %v3057 = vadd.f32 0.0, %v3056
  %v3058 = vpop.f32.mrf.mxu0
  %v3059 = vadd.f32 0.0, %v3058
  %v3060 = vpop.f32.mrf.mxu0
  %v3061 = vadd.f32 0.0, %v3060
  %3062 = vmatprep.mubr.bf16.mxu0 %v2950
  %3063 = vmatmul.mubr.bf16.gmra.mxu0 %v2747
  %v3064 = vpop.f32.mrf.mxu0
  %v3065 = vpop.f32.mrf.mxu0
  %v3066 = vpop.f32.mrf.mxu0
  %v3067 = vpop.f32.mrf.mxu0
  %3068 = vmatprep.mubr.bf16.mxu0 %v2953
  %3069 = vmatmul.mubr.bf16.gmra.mxu0 %v2749
  %v3070 = vpop.f32.mrf.mxu0
  %v3071 = vadd.f32 0.0, %v3070
  %v3072 = vpop.f32.mrf.mxu0
  %v3073 = vadd.f32 0.0, %v3072
  %v3074 = vpop.f32.mrf.mxu0
  %v3075 = vadd.f32 0.0, %v3074
  %v3076 = vpop.f32.mrf.mxu0
  %v3077 = vadd.f32 0.0, %v3076
  %3078 = vmatprep.mubr.bf16.mxu0 %v2956
  %3079 = vmatmul.mubr.bf16.gmra.mxu0 %v2751
  %v3080 = vpop.f32.mrf.mxu0
  %v3081 = vpop.f32.mrf.mxu0
  %v3082 = vpop.f32.mrf.mxu0
  %v3083 = vpop.f32.mrf.mxu0
  %3084 = vmatprep.mubr.bf16.mxu0 %v2959
  %3085 = vmatmul.mubr.bf16.gmra.mxu0 %v2753
  %v3086 = vpop.f32.mrf.mxu0
  %v3087 = vadd.f32 0.0, %v3086
  %v3088 = vpop.f32.mrf.mxu0
  %v3089 = vadd.f32 0.0, %v3088
  %v3090 = vpop.f32.mrf.mxu0
  %v3091 = vadd.f32 0.0, %v3090
  %v3092 = vpop.f32.mrf.mxu0
  %v3093 = vadd.f32 0.0, %v3092
  %3094 = vmatprep.mubr.bf16.mxu0 %v2962
  %3095 = vmatmul.mubr.bf16.gmra.mxu0 %v2755
  %v3096 = vpop.f32.mrf.mxu0
  %v3097 = vpop.f32.mrf.mxu0
  %v3098 = vpop.f32.mrf.mxu0
  %v3099 = vpop.f32.mrf.mxu0
  %3100 = vmatprep.mubr.bf16.mxu0 %v2965
  %3101 = vmatmul.mubr.bf16.gmra.mxu0 %v2757
  %v3102 = vpop.f32.mrf.mxu0
  %v3103 = vadd.f32 0.0, %v3102
  %v3104 = vpop.f32.mrf.mxu0
  %v3105 = vadd.f32 0.0, %v3104
  %v3106 = vpop.f32.mrf.mxu0
  %v3107 = vadd.f32 0.0, %v3106
  %v3108 = vpop.f32.mrf.mxu0
  %v3109 = vadd.f32 0.0, %v3108
  %3110 = vmatprep.mubr.bf16.mxu0 %v2968
  %3111 = vmatmul.mubr.bf16.gmra.mxu0 %v2759
  %v3112 = vpop.f32.mrf.mxu0
  %v3113 = vpop.f32.mrf.mxu0
  %v3114 = vpop.f32.mrf.mxu0
  %v3115 = vpop.f32.mrf.mxu0
  %3116 = vmatprep.mubr.bf16.mxu0 %v2971
  %3117 = vmatmul.mubr.bf16.gmra.mxu0 %v2761
  %v3118 = vpop.f32.mrf.mxu0
  %v3119 = vadd.f32 0.0, %v3118
  %v3120 = vpop.f32.mrf.mxu0
  %v3121 = vadd.f32 0.0, %v3120
  %v3122 = vpop.f32.mrf.mxu0
  %v3123 = vadd.f32 0.0, %v3122
  %v3124 = vpop.f32.mrf.mxu0
  %v3125 = vadd.f32 0.0, %v3124
  %3126 = vmatprep.mubr.bf16.mxu0 %v2974
  %3127 = vmatmul.mubr.bf16.gmra.mxu0 %v2763
  %v3128 = vpop.f32.mrf.mxu0
  %v3129 = vpop.f32.mrf.mxu0
  %v3130 = vpop.f32.mrf.mxu0
  %v3131 = vpop.f32.mrf.mxu0
  %3132 = vmatprep.mubr.bf16.mxu0 %v2977
  %3133 = vmatmul.mubr.bf16.gmra.mxu0 %v2765
  %v3134 = vpop.f32.mrf.mxu0
  %v3135 = vadd.f32 0.0, %v3134
  %v3136 = vpop.f32.mrf.mxu0
  %v3137 = vadd.f32 0.0, %v3136
  %v3138 = vpop.f32.mrf.mxu0
  %v3139 = vadd.f32 0.0, %v3138
  %v3140 = vpop.f32.mrf.mxu0
  %v3141 = vadd.f32 0.0, %v3140
  %3142 = vmatprep.mubr.bf16.mxu0 %v2980
  %3143 = vmatmul.mubr.bf16.gmra.mxu0 %v2767
  %v3144 = vpop.f32.mrf.mxu0
  %v3145 = vpop.f32.mrf.mxu0
  %v3146 = vpop.f32.mrf.mxu0
  %v3147 = vpop.f32.mrf.mxu0
  %3148 = vmatprep.mubr.bf16.mxu0 %v2983
  %3149 = vmatmul.mubr.bf16.gmra.mxu0 %v2769
  %v3150 = vpop.f32.mrf.mxu0
  %v3151 = vadd.f32 0.0, %v3150
  %v3152 = vpop.f32.mrf.mxu0
  %v3153 = vadd.f32 0.0, %v3152
  %v3154 = vpop.f32.mrf.mxu0
  %v3155 = vadd.f32 0.0, %v3154
  %v3156 = vpop.f32.mrf.mxu0
  %v3157 = vadd.f32 0.0, %v3156
  %3158 = vmatprep.mubr.bf16.mxu0 %v2986
  %3159 = vmatmul.mubr.bf16.gmra.mxu0 %v2771
  %v3160 = vpop.f32.mrf.mxu0
  %v3161 = vpop.f32.mrf.mxu0
  %v3162 = vpop.f32.mrf.mxu0
  %v3163 = vpop.f32.mrf.mxu0
  %3164 = vmatprep.mubr.bf16.mxu0 %v2989
  %3165 = vmatmul.mubr.bf16.gmra.mxu0 %v2773
  %v3166 = vpop.f32.mrf.mxu0
  %v3167 = vadd.f32 0.0, %v3166
  %v3168 = vpop.f32.mrf.mxu0
  %v3169 = vadd.f32 0.0, %v3168
  %v3170 = vpop.f32.mrf.mxu0
  %v3171 = vadd.f32 0.0, %v3170
  %v3172 = vpop.f32.mrf.mxu0
  %v3173 = vadd.f32 0.0, %v3172
  %3174 = vmatprep.mubr.bf16.mxu0 %v2992
  %3175 = vmatmul.mubr.bf16.gmra.mxu0 %v2775
  %v3176 = vpop.f32.mrf.mxu0
  %v3177 = vpop.f32.mrf.mxu0
  %v3178 = vpop.f32.mrf.mxu0
  %v3179 = vpop.f32.mrf.mxu0
  %3180 = vmatprep.mubr.bf16.mxu0 %v2995
  %3181 = vmatmul.mubr.bf16.gmra.mxu0 %v2777
  %v3182 = vpop.f32.mrf.mxu0
  %v3183 = vadd.f32 0.0, %v3182
  %v3184 = vpop.f32.mrf.mxu0
  %v3185 = vadd.f32 0.0, %v3184
  %v3186 = vpop.f32.mrf.mxu0
  %v3187 = vadd.f32 0.0, %v3186
  %v3188 = vpop.f32.mrf.mxu0
  %v3189 = vadd.f32 0.0, %v3188
  %3190 = vdwg.mxu0
  %v3212 = vunpack.c.l.b16 %v2791
  %v3213 = vunpack.c.h.b16 %v2791
  %v3214 = vunpack.c.l.b16 %v2792
  %v3215 = vunpack.c.h.b16 %v2792
  %v3216 = vunpack.c.l.b16 %v2793
  %v3217 = vunpack.c.h.b16 %v2793
  %v3218 = vunpack.c.l.b16 %v2794
  %v3219 = vunpack.c.h.b16 %v2794
  %v3220 = vunpack.c.l.b16 %v2795
  %v3221 = vunpack.c.h.b16 %v2795
  %v3222 = vunpack.c.l.b16 %v2796
  %v3223 = vunpack.c.h.b16 %v2796
  %v3224 = vunpack.c.l.b16 %v2797
  %v3225 = vunpack.c.h.b16 %v2797
  %v3226 = vunpack.c.l.b16 %v2798
  %v3227 = vunpack.c.h.b16 %v2798
  %v3228 = vunpack.c.l.b16 %v2799
  %v3229 = vunpack.c.h.b16 %v2799
  %v3230 = vunpack.c.l.b16 %v2800
  %v3231 = vunpack.c.h.b16 %v2800
  %v3232 = vunpack.c.l.b16 %v2801
  %v3233 = vunpack.c.h.b16 %v2801
  %v3234 = vunpack.c.l.b16 %v2802
  %v3235 = vunpack.c.h.b16 %v2802
  %v3236 = vunpack.c.l.b16 %v2803
  %v3237 = vunpack.c.h.b16 %v2803
  %v3238 = vunpack.c.l.b16 %v2804
  %v3239 = vunpack.c.h.b16 %v2804
  %v3240 = vunpack.c.l.b16 %v2805
  %v3241 = vunpack.c.h.b16 %v2805
  %v3242 = vunpack.c.l.b16 %v2806
  %v3243 = vunpack.c.h.b16 %v2806
  %v3244 = vunpack.c.l.b16 %v2807
  %v3245 = vunpack.c.h.b16 %v2807
  %v3246 = vunpack.c.l.b16 %v2808
  %v3247 = vunpack.c.h.b16 %v2808
  %v3248 = vunpack.c.l.b16 %v2809
  %v3249 = vunpack.c.h.b16 %v2809
  %v3250 = vunpack.c.l.b16 %v2810
  %v3251 = vunpack.c.h.b16 %v2810
  %v3252 = vunpack.c.l.b16 %v2811
  %v3253 = vunpack.c.h.b16 %v2811
  %v3254 = vpack.c.b16 %v3214, %v3212
  %v3255 = vpack.c.b16 %v3215, %v3213
  %v3256 = vpack.c.b16 %v3218, %v3216
  %v3257 = vpack.c.b16 %v3219, %v3217
  %v3258 = vpack.c.b16 %v3222, %v3220
  %v3259 = vpack.c.b16 %v3223, %v3221
  %v3260 = vpack.c.b16 %v3226, %v3224
  %v3261 = vpack.c.b16 %v3227, %v3225
  %v3262 = vpack.c.b16 %v3230, %v3228
  %v3263 = vpack.c.b16 %v3231, %v3229
  %v3264 = vpack.c.b16 %v3234, %v3232
  %v3265 = vpack.c.b16 %v3235, %v3233
  %v3266 = vpack.c.b16 %v3238, %v3236
  %v3267 = vpack.c.b16 %v3239, %v3237
  %v3268 = vpack.c.b16 %v3242, %v3240
  %v3269 = vpack.c.b16 %v3243, %v3241
  %v3270 = vpack.c.b16 %v3246, %v3244
  %v3271 = vpack.c.b16 %v3247, %v3245
  %v3272 = vpack.c.b16 %v3250, %v3248
  %v3273 = vpack.c.b16 %v3251, %v3249
  %v3274 = vpack.c.b16 %v3252, %v3252
  %v3275 = vpack.c.b16 %v3253, %v3253
  %v3297 = vsel %vm2939, %v2738, 0
  %v3300 = vsel %vm2939, %v2740, 0
  %v3303 = vsel %vm2997, %v3274, 0
  %v3306 = vsel %vm2997, %v3275, 0
  %3308 = vmatprep.subr.bf16.mxu0 %v3269
  %3309 = vmatpush1.bf16.msra.mxu0 %v3268
  %3310 = vmatprep.subr.bf16.mxu0 %v3267
  %3311 = vmatpush1.bf16.msra.mxu0 %v3266
  %3312 = vmatprep.subr.bf16.mxu0 %v3265
  %3313 = vmatpush1.bf16.msra.mxu0 %v3264
  %3314 = vmatprep.subr.bf16.mxu0 %v3263
  %3315 = vmatpush1.bf16.msra.mxu0 %v3262
  %3316 = vmatprep.subr.bf16.mxu0 %v3261
  %3317 = vmatpush1.bf16.msra.mxu0 %v3260
  %3318 = vmatprep.subr.bf16.mxu0 %v3259
  %3319 = vmatpush1.bf16.msra.mxu0 %v3258
  %3320 = vmatprep.subr.bf16.mxu0 %v3257
  %3321 = vmatpush1.bf16.msra.mxu0 %v3256
  %3322 = vmatprep.subr.bf16.mxu0 %v3255
  %3323 = vmatpush1.bf16.msra.mxu0 %v3254
  %3324 = vmatprep.subr.bf16.mxu0 0
  %3325 = vmatpush2.bf16.msra.mxu0 0
  %3326 = vmatprep.subr.bf16.mxu0 0
  %3327 = vmatpush2.bf16.msra.mxu0 0
  %3328 = vmatprep.subr.bf16.mxu0 0
  %3329 = vmatpush2.bf16.msra.mxu0 0
  %3330 = vmatprep.subr.bf16.mxu0 0
  %3331 = vmatpush2.bf16.msra.mxu0 0
  %3332 = vmatprep.subr.bf16.mxu0 0
  %3333 = vmatpush2.bf16.msra.mxu0 0
  %3334 = vmatprep.subr.bf16.mxu0 %v3306
  %3335 = vmatpush2.bf16.msra.mxu0 %v3303
  %3336 = vmatprep.subr.bf16.mxu0 %v3273
  %3337 = vmatpush2.bf16.msra.mxu0 %v3272
  %3338 = vmatprep.subr.bf16.mxu0 %v3271
  %3339 = vmatpush2.bf16.msra.mxu0 %v3270
  %3340 = vmatprep.mubr.bf16.mxu0 %v3297
  %3341 = vmatmul.mubr.bf16.gmra.mxu0 %v2737
  %v3342 = vpop.f32.mrf.mxu0
  %v3343 = vadd.f32 %v3039, %v3342
  %v3344 = vpop.f32.mrf.mxu0
  %v3345 = vadd.f32 %v3041, %v3344
  %v3346 = vpop.f32.mrf.mxu0
  %v3347 = vadd.f32 %v3043, %v3346
  %v3348 = vpop.f32.mrf.mxu0
  %v3349 = vadd.f32 %v3045, %v3348
  %3350 = vmatprep.mubr.bf16.mxu0 %v3300
  %3351 = vmatmul.mubr.bf16.gmra.mxu0 %v2739
  %v3352 = vpop.f32.mrf.mxu0
  %v3353 = vpop.f32.mrf.mxu0
  %v3354 = vpop.f32.mrf.mxu0
  %v3355 = vpop.f32.mrf.mxu0
  %3356 = vmatprep.mubr.bf16.mxu0 %v2941
  %3357 = vmatmul.mubr.bf16.gmra.mxu0 %v2741
  %v3358 = vpop.f32.mrf.mxu0
  %v3359 = vadd.f32 %v3055, %v3358
  %v3360 = vpop.f32.mrf.mxu0
  %v3361 = vadd.f32 %v3057, %v3360
  %v3362 = vpop.f32.mrf.mxu0
  %v3363 = vadd.f32 %v3059, %v3362
  %v3364 = vpop.f32.mrf.mxu0
  %v3365 = vadd.f32 %v3061, %v3364
  %3366 = vmatprep.mubr.bf16.mxu0 %v2944
  %3367 = vmatmul.mubr.bf16.gmra.mxu0 %v2743
  %v3368 = vpop.f32.mrf.mxu0
  %v3369 = vpop.f32.mrf.mxu0
  %v3370 = vpop.f32.mrf.mxu0
  %v3371 = vpop.f32.mrf.mxu0
  %3372 = vmatprep.mubr.bf16.mxu0 %v2947
  %3373 = vmatmul.mubr.bf16.gmra.mxu0 %v2745
  %v3374 = vpop.f32.mrf.mxu0
  %v3375 = vadd.f32 %v3071, %v3374
  %v3376 = vpop.f32.mrf.mxu0
  %v3377 = vadd.f32 %v3073, %v3376
  %v3378 = vpop.f32.mrf.mxu0
  %v3379 = vadd.f32 %v3075, %v3378
  %v3380 = vpop.f32.mrf.mxu0
  %v3381 = vadd.f32 %v3077, %v3380
  %3382 = vmatprep.mubr.bf16.mxu0 %v2950
  %3383 = vmatmul.mubr.bf16.gmra.mxu0 %v2747
  %v3384 = vpop.f32.mrf.mxu0
  %v3385 = vpop.f32.mrf.mxu0
  %v3386 = vpop.f32.mrf.mxu0
  %v3387 = vpop.f32.mrf.mxu0
  %3388 = vmatprep.mubr.bf16.mxu0 %v2953
  %3389 = vmatmul.mubr.bf16.gmra.mxu0 %v2749
  %v3390 = vpop.f32.mrf.mxu0
  %v3391 = vadd.f32 %v3087, %v3390
  %v3392 = vpop.f32.mrf.mxu0
  %v3393 = vadd.f32 %v3089, %v3392
  %v3394 = vpop.f32.mrf.mxu0
  %v3395 = vadd.f32 %v3091, %v3394
  %v3396 = vpop.f32.mrf.mxu0
  %v3397 = vadd.f32 %v3093, %v3396
  %3398 = vmatprep.mubr.bf16.mxu0 %v2956
  %3399 = vmatmul.mubr.bf16.gmra.mxu0 %v2751
  %v3400 = vpop.f32.mrf.mxu0
  %v3401 = vpop.f32.mrf.mxu0
  %v3402 = vpop.f32.mrf.mxu0
  %v3403 = vpop.f32.mrf.mxu0
  %3404 = vmatprep.mubr.bf16.mxu0 %v2959
  %3405 = vmatmul.mubr.bf16.gmra.mxu0 %v2753
  %v3406 = vpop.f32.mrf.mxu0
  %v3407 = vadd.f32 %v3103, %v3406
  %v3408 = vpop.f32.mrf.mxu0
  %v3409 = vadd.f32 %v3105, %v3408
  %v3410 = vpop.f32.mrf.mxu0
  %v3411 = vadd.f32 %v3107, %v3410
  %v3412 = vpop.f32.mrf.mxu0
  %v3413 = vadd.f32 %v3109, %v3412
  %3414 = vmatprep.mubr.bf16.mxu0 %v2962
  %3415 = vmatmul.mubr.bf16.gmra.mxu0 %v2755
  %v3416 = vpop.f32.mrf.mxu0
  %v3417 = vpop.f32.mrf.mxu0
  %v3418 = vpop.f32.mrf.mxu0
  %v3419 = vpop.f32.mrf.mxu0
  %3420 = vmatprep.mubr.bf16.mxu0 %v2965
  %3421 = vmatmul.mubr.bf16.gmra.mxu0 %v2757
  %v3422 = vpop.f32.mrf.mxu0
  %v3423 = vadd.f32 %v3119, %v3422
  %v3424 = vpop.f32.mrf.mxu0
  %v3425 = vadd.f32 %v3121, %v3424
  %v3426 = vpop.f32.mrf.mxu0
  %v3427 = vadd.f32 %v3123, %v3426
  %v3428 = vpop.f32.mrf.mxu0
  %v3429 = vadd.f32 %v3125, %v3428
  %3430 = vmatprep.mubr.bf16.mxu0 %v2968
  %3431 = vmatmul.mubr.bf16.gmra.mxu0 %v2759
  %v3432 = vpop.f32.mrf.mxu0
  %v3433 = vpop.f32.mrf.mxu0
  %v3434 = vpop.f32.mrf.mxu0
  %v3435 = vpop.f32.mrf.mxu0
  %3436 = vmatprep.mubr.bf16.mxu0 %v2971
  %3437 = vmatmul.mubr.bf16.gmra.mxu0 %v2761
  %v3438 = vpop.f32.mrf.mxu0
  %v3439 = vadd.f32 %v3135, %v3438
  %v3440 = vpop.f32.mrf.mxu0
  %v3441 = vadd.f32 %v3137, %v3440
  %v3442 = vpop.f32.mrf.mxu0
  %v3443 = vadd.f32 %v3139, %v3442
  %v3444 = vpop.f32.mrf.mxu0
  %v3445 = vadd.f32 %v3141, %v3444
  %3446 = vmatprep.mubr.bf16.mxu0 %v2974
  %3447 = vmatmul.mubr.bf16.gmra.mxu0 %v2763
  %v3448 = vpop.f32.mrf.mxu0
  %v3449 = vpop.f32.mrf.mxu0
  %v3450 = vpop.f32.mrf.mxu0
  %v3451 = vpop.f32.mrf.mxu0
  %3452 = vmatprep.mubr.bf16.mxu0 %v2977
  %3453 = vmatmul.mubr.bf16.gmra.mxu0 %v2765
  %v3454 = vpop.f32.mrf.mxu0
  %v3455 = vadd.f32 %v3151, %v3454
  %v3456 = vpop.f32.mrf.mxu0
  %v3457 = vadd.f32 %v3153, %v3456
  %v3458 = vpop.f32.mrf.mxu0
  %v3459 = vadd.f32 %v3155, %v3458
  %v3460 = vpop.f32.mrf.mxu0
  %v3461 = vadd.f32 %v3157, %v3460
  %3462 = vmatprep.mubr.bf16.mxu0 %v2980
  %3463 = vmatmul.mubr.bf16.gmra.mxu0 %v2767
  %v3464 = vpop.f32.mrf.mxu0
  %v3465 = vpop.f32.mrf.mxu0
  %v3466 = vpop.f32.mrf.mxu0
  %v3467 = vpop.f32.mrf.mxu0
  %3468 = vmatprep.mubr.bf16.mxu0 %v2983
  %3469 = vmatmul.mubr.bf16.gmra.mxu0 %v2769
  %v3470 = vpop.f32.mrf.mxu0
  %v3471 = vadd.f32 %v3167, %v3470
  %v3472 = vpop.f32.mrf.mxu0
  %v3473 = vadd.f32 %v3169, %v3472
  %v3474 = vpop.f32.mrf.mxu0
  %v3475 = vadd.f32 %v3171, %v3474
  %v3476 = vpop.f32.mrf.mxu0
  %v3477 = vadd.f32 %v3173, %v3476
  %3478 = vmatprep.mubr.bf16.mxu0 %v2986
  %3479 = vmatmul.mubr.bf16.gmra.mxu0 %v2771
  %v3480 = vpop.f32.mrf.mxu0
  %v3481 = vpop.f32.mrf.mxu0
  %v3482 = vpop.f32.mrf.mxu0
  %v3483 = vpop.f32.mrf.mxu0
  %3484 = vmatprep.mubr.bf16.mxu0 %v2989
  %3485 = vmatmul.mubr.bf16.gmra.mxu0 %v2773
  %v3486 = vpop.f32.mrf.mxu0
  %v3487 = vadd.f32 %v3183, %v3486
  %v3488 = vpop.f32.mrf.mxu0
  %v3489 = vadd.f32 %v3185, %v3488
  %v3490 = vpop.f32.mrf.mxu0
  %v3491 = vadd.f32 %v3187, %v3490
  %v3492 = vpop.f32.mrf.mxu0
  %v3493 = vadd.f32 %v3189, %v3492
  %3494 = vdwg.mxu0
  %s3495 = scalar_lea.vmem %s3, 336
  %v3496 = vld [vmem:[%s3495] sm:$0xff]
  %v3497 = vld [vmem:[%s3495 + $0x8] sm:$0xff]
  %v3498 = vld [vmem:[%s3495 + $0x10] sm:$0xff]
  %v3499 = vld [vmem:[%s3495 + $0x18] sm:$0xff]
  %v3500 = vld [vmem:[%s3495 + $0x20] sm:$0xff]
  %v3501 = vld [vmem:[%s3495 + $0x28] sm:$0xff]
  %v3502 = vld [vmem:[%s3495 + $0x30] sm:$0xff]
  %v3503 = vld [vmem:[%s3495 + $0x38] sm:$0xff]
  %v3504 = vld [vmem:[%s3495 + $0x40] sm:$0xff]
  %v3505 = vld [vmem:[%s3495 + $0x48] sm:$0xff]
  %v3506 = vld [vmem:[%s3495 + $0x50] sm:$0xff]
  %v3507 = vld [vmem:[%s3495 + $0x58] sm:$0xff]
  %v3508 = vld [vmem:[%s3495 + $0x60] sm:$0xff]
  %v3509 = vld [vmem:[%s3495 + $0x68] sm:$0xff]
  %v3510 = vld [vmem:[%s3495 + $0x70] sm:$0xff]
  %v3511 = vld [vmem:[%s3495 + $0x78] sm:$0xff]
  %v3512 = vld [vmem:[%s3495 + $0x80] sm:$0xff]
  %v3513 = vld [vmem:[%s3495 + $0x88] sm:$0xff]
  %v3514 = vld [vmem:[%s3495 + $0x90] sm:$0xff]
  %v3515 = vld [vmem:[%s3495 + $0x98] sm:$0xff]
  %v3516 = vld [vmem:[%s3495 + $0xa0] sm:$0xff]
  %v3538 = vunpack.c.l.b16 %v3496
  %v3539 = vunpack.c.h.b16 %v3496
  %v3540 = vunpack.c.l.b16 %v3497
  %v3541 = vunpack.c.h.b16 %v3497
  %v3542 = vunpack.c.l.b16 %v3498
  %v3543 = vunpack.c.h.b16 %v3498
  %v3544 = vunpack.c.l.b16 %v3499
  %v3545 = vunpack.c.h.b16 %v3499
  %v3546 = vunpack.c.l.b16 %v3500
  %v3547 = vunpack.c.h.b16 %v3500
  %v3548 = vunpack.c.l.b16 %v3501
  %v3549 = vunpack.c.h.b16 %v3501
  %v3550 = vunpack.c.l.b16 %v3502
  %v3551 = vunpack.c.h.b16 %v3502
  %v3552 = vunpack.c.l.b16 %v3503
  %v3553 = vunpack.c.h.b16 %v3503
  %v3554 = vunpack.c.l.b16 %v3504
  %v3555 = vunpack.c.h.b16 %v3504
  %v3556 = vunpack.c.l.b16 %v3505
  %v3557 = vunpack.c.h.b16 %v3505
  %v3558 = vunpack.c.l.b16 %v3506
  %v3559 = vunpack.c.h.b16 %v3506
  %v3560 = vunpack.c.l.b16 %v3507
  %v3561 = vunpack.c.h.b16 %v3507
  %v3562 = vunpack.c.l.b16 %v3508
  %v3563 = vunpack.c.h.b16 %v3508
  %v3564 = vunpack.c.l.b16 %v3509
  %v3565 = vunpack.c.h.b16 %v3509
  %v3566 = vunpack.c.l.b16 %v3510
  %v3567 = vunpack.c.h.b16 %v3510
  %v3568 = vunpack.c.l.b16 %v3511
  %v3569 = vunpack.c.h.b16 %v3511
  %v3570 = vunpack.c.l.b16 %v3512
  %v3571 = vunpack.c.h.b16 %v3512
  %v3572 = vunpack.c.l.b16 %v3513
  %v3573 = vunpack.c.h.b16 %v3513
  %v3574 = vunpack.c.l.b16 %v3514
  %v3575 = vunpack.c.h.b16 %v3514
  %v3576 = vunpack.c.l.b16 %v3515
  %v3577 = vunpack.c.h.b16 %v3515
  %v3578 = vunpack.c.l.b16 %v3516
  %v3579 = vunpack.c.h.b16 %v3516
  %v3580 = vpack.c.b16 %v3540, %v3538
  %v3581 = vpack.c.b16 %v3541, %v3539
  %v3582 = vpack.c.b16 %v3544, %v3542
  %v3583 = vpack.c.b16 %v3545, %v3543
  %v3584 = vpack.c.b16 %v3548, %v3546
  %v3585 = vpack.c.b16 %v3549, %v3547
  %v3586 = vpack.c.b16 %v3552, %v3550
  %v3587 = vpack.c.b16 %v3553, %v3551
  %v3588 = vpack.c.b16 %v3556, %v3554
  %v3589 = vpack.c.b16 %v3557, %v3555
  %v3590 = vpack.c.b16 %v3560, %v3558
  %v3591 = vpack.c.b16 %v3561, %v3559
  %v3592 = vpack.c.b16 %v3564, %v3562
  %v3593 = vpack.c.b16 %v3565, %v3563
  %v3594 = vpack.c.b16 %v3568, %v3566
  %v3595 = vpack.c.b16 %v3569, %v3567
  %v3596 = vpack.c.b16 %v3572, %v3570
  %v3597 = vpack.c.b16 %v3573, %v3571
  %v3598 = vpack.c.b16 %v3576, %v3574
  %v3599 = vpack.c.b16 %v3577, %v3575
  %v3600 = vpack.c.b16 %v3578, %v3578
  %v3601 = vpack.c.b16 %v3579, %v3579
  %v3623 = vsel %vm2939, %v2780, 0
  %v3626 = vsel %vm2939, %v2782, 0
  %v3629 = vsel %vm2997, %v3600, 0
  %v3632 = vsel %vm2997, %v3601, 0
  %3634 = vmatprep.subr.bf16.mxu0 %v3595
  %3635 = vmatpush1.bf16.msra.mxu0 %v3594
  %3636 = vmatprep.subr.bf16.mxu0 %v3593
  %3637 = vmatpush1.bf16.msra.mxu0 %v3592
  %3638 = vmatprep.subr.bf16.mxu0 %v3591
  %3639 = vmatpush1.bf16.msra.mxu0 %v3590
  %3640 = vmatprep.subr.bf16.mxu0 %v3589
  %3641 = vmatpush1.bf16.msra.mxu0 %v3588
  %3642 = vmatprep.subr.bf16.mxu0 %v3587
  %3643 = vmatpush1.bf16.msra.mxu0 %v3586
  %3644 = vmatprep.subr.bf16.mxu0 %v3585
  %3645 = vmatpush1.bf16.msra.mxu0 %v3584
  %3646 = vmatprep.subr.bf16.mxu0 %v3583
  %3647 = vmatpush1.bf16.msra.mxu0 %v3582
  %3648 = vmatprep.subr.bf16.mxu0 %v3581
  %3649 = vmatpush1.bf16.msra.mxu0 %v3580
  %3650 = vmatprep.subr.bf16.mxu0 0
  %3651 = vmatpush2.bf16.msra.mxu0 0
  %3652 = vmatprep.subr.bf16.mxu0 0
  %3653 = vmatpush2.bf16.msra.mxu0 0
  %3654 = vmatprep.subr.bf16.mxu0 0
  %3655 = vmatpush2.bf16.msra.mxu0 0
  %3656 = vmatprep.subr.bf16.mxu0 0
  %3657 = vmatpush2.bf16.msra.mxu0 0
  %3658 = vmatprep.subr.bf16.mxu0 0
  %3659 = vmatpush2.bf16.msra.mxu0 0
  %3660 = vmatprep.subr.bf16.mxu0 %v3632
  %3661 = vmatpush2.bf16.msra.mxu0 %v3629
  %3662 = vmatprep.subr.bf16.mxu0 %v3599
  %3663 = vmatpush2.bf16.msra.mxu0 %v3598
  %3664 = vmatprep.subr.bf16.mxu0 %v3597
  %3665 = vmatpush2.bf16.msra.mxu0 %v3596
  %3666 = vmatprep.mubr.bf16.mxu0 %v2947
  %3667 = vmatmul.mubr.bf16.gmra.mxu0 %v2745
  %v3668 = vpop.f32.mrf.mxu0
  %v3669 = vadd.f32 0.0, %v3668
  %v3670 = vpop.f32.mrf.mxu0
  %v3671 = vadd.f32 0.0, %v3670
  %v3672 = vpop.f32.mrf.mxu0
  %v3673 = vadd.f32 0.0, %v3672
  %v3674 = vpop.f32.mrf.mxu0
  %v3675 = vadd.f32 0.0, %v3674
  %3676 = vmatprep.mubr.bf16.mxu0 %v2950
  %3677 = vmatmul.mubr.bf16.gmra.mxu0 %v2747
  %v3678 = vpop.f32.mrf.mxu0
  %v3679 = vpop.f32.mrf.mxu0
  %v3680 = vpop.f32.mrf.mxu0
  %v3681 = vpop.f32.mrf.mxu0
  %3682 = vmatprep.mubr.bf16.mxu0 %v2953
  %3683 = vmatmul.mubr.bf16.gmra.mxu0 %v2749
  %v3684 = vpop.f32.mrf.mxu0
  %v3685 = vadd.f32 0.0, %v3684
  %v3686 = vpop.f32.mrf.mxu0
  %v3687 = vadd.f32 0.0, %v3686
  %v3688 = vpop.f32.mrf.mxu0
  %v3689 = vadd.f32 0.0, %v3688
  %v3690 = vpop.f32.mrf.mxu0
  %v3691 = vadd.f32 0.0, %v3690
  %3692 = vmatprep.mubr.bf16.mxu0 %v2956
  %3693 = vmatmul.mubr.bf16.gmra.mxu0 %v2751
  %v3694 = vpop.f32.mrf.mxu0
  %v3695 = vpop.f32.mrf.mxu0
  %v3696 = vpop.f32.mrf.mxu0
  %v3697 = vpop.f32.mrf.mxu0
  %3698 = vmatprep.mubr.bf16.mxu0 %v2959
  %3699 = vmatmul.mubr.bf16.gmra.mxu0 %v2753
  %v3700 = vpop.f32.mrf.mxu0
  %v3701 = vadd.f32 0.0, %v3700
  %v3702 = vpop.f32.mrf.mxu0
  %v3703 = vadd.f32 0.0, %v3702
  %v3704 = vpop.f32.mrf.mxu0
  %v3705 = vadd.f32 0.0, %v3704
  %v3706 = vpop.f32.mrf.mxu0
  %v3707 = vadd.f32 0.0, %v3706
  %3708 = vmatprep.mubr.bf16.mxu0 %v2962
  %3709 = vmatmul.mubr.bf16.gmra.mxu0 %v2755
  %v3710 = vpop.f32.mrf.mxu0
  %v3711 = vpop.f32.mrf.mxu0
  %v3712 = vpop.f32.mrf.mxu0
  %v3713 = vpop.f32.mrf.mxu0
  %3714 = vmatprep.mubr.bf16.mxu0 %v2965
  %3715 = vmatmul.mubr.bf16.gmra.mxu0 %v2757
  %v3716 = vpop.f32.mrf.mxu0
  %v3717 = vadd.f32 0.0, %v3716
  %v3718 = vpop.f32.mrf.mxu0
  %v3719 = vadd.f32 0.0, %v3718
  %v3720 = vpop.f32.mrf.mxu0
  %v3721 = vadd.f32 0.0, %v3720
  %v3722 = vpop.f32.mrf.mxu0
  %v3723 = vadd.f32 0.0, %v3722
  %3724 = vmatprep.mubr.bf16.mxu0 %v2968
  %3725 = vmatmul.mubr.bf16.gmra.mxu0 %v2759
  %v3726 = vpop.f32.mrf.mxu0
  %v3727 = vpop.f32.mrf.mxu0
  %v3728 = vpop.f32.mrf.mxu0
  %v3729 = vpop.f32.mrf.mxu0
  %3730 = vmatprep.mubr.bf16.mxu0 %v2971
  %3731 = vmatmul.mubr.bf16.gmra.mxu0 %v2761
  %v3732 = vpop.f32.mrf.mxu0
  %v3733 = vadd.f32 0.0, %v3732
  %v3734 = vpop.f32.mrf.mxu0
  %v3735 = vadd.f32 0.0, %v3734
  %v3736 = vpop.f32.mrf.mxu0
  %v3737 = vadd.f32 0.0, %v3736
  %v3738 = vpop.f32.mrf.mxu0
  %v3739 = vadd.f32 0.0, %v3738
  %3740 = vmatprep.mubr.bf16.mxu0 %v2974
  %3741 = vmatmul.mubr.bf16.gmra.mxu0 %v2763
  %v3742 = vpop.f32.mrf.mxu0
  %v3743 = vpop.f32.mrf.mxu0
  %v3744 = vpop.f32.mrf.mxu0
  %v3745 = vpop.f32.mrf.mxu0
  %3746 = vmatprep.mubr.bf16.mxu0 %v2977
  %3747 = vmatmul.mubr.bf16.gmra.mxu0 %v2765
  %v3748 = vpop.f32.mrf.mxu0
  %v3749 = vadd.f32 0.0, %v3748
  %v3750 = vpop.f32.mrf.mxu0
  %v3751 = vadd.f32 0.0, %v3750
  %v3752 = vpop.f32.mrf.mxu0
  %v3753 = vadd.f32 0.0, %v3752
  %v3754 = vpop.f32.mrf.mxu0
  %v3755 = vadd.f32 0.0, %v3754
  %3756 = vmatprep.mubr.bf16.mxu0 %v2980
  %3757 = vmatmul.mubr.bf16.gmra.mxu0 %v2767
  %v3758 = vpop.f32.mrf.mxu0
  %v3759 = vpop.f32.mrf.mxu0
  %v3760 = vpop.f32.mrf.mxu0
  %v3761 = vpop.f32.mrf.mxu0
  %3762 = vmatprep.mubr.bf16.mxu0 %v2983
  %3763 = vmatmul.mubr.bf16.gmra.mxu0 %v2769
  %v3764 = vpop.f32.mrf.mxu0
  %v3765 = vadd.f32 0.0, %v3764
  %v3766 = vpop.f32.mrf.mxu0
  %v3767 = vadd.f32 0.0, %v3766
  %v3768 = vpop.f32.mrf.mxu0
  %v3769 = vadd.f32 0.0, %v3768
  %v3770 = vpop.f32.mrf.mxu0
  %v3771 = vadd.f32 0.0, %v3770
  %3772 = vmatprep.mubr.bf16.mxu0 %v2986
  %3773 = vmatmul.mubr.bf16.gmra.mxu0 %v2771
  %v3774 = vpop.f32.mrf.mxu0
  %v3775 = vpop.f32.mrf.mxu0
  %v3776 = vpop.f32.mrf.mxu0
  %v3777 = vpop.f32.mrf.mxu0
  %3778 = vmatprep.mubr.bf16.mxu0 %v2989
  %3779 = vmatmul.mubr.bf16.gmra.mxu0 %v2773
  %v3780 = vpop.f32.mrf.mxu0
  %v3781 = vadd.f32 0.0, %v3780
  %v3782 = vpop.f32.mrf.mxu0
  %v3783 = vadd.f32 0.0, %v3782
  %v3784 = vpop.f32.mrf.mxu0
  %v3785 = vadd.f32 0.0, %v3784
  %v3786 = vpop.f32.mrf.mxu0
  %v3787 = vadd.f32 0.0, %v3786
  %3788 = vmatprep.mubr.bf16.mxu0 %v2992
  %3789 = vmatmul.mubr.bf16.gmra.mxu0 %v2775
  %v3790 = vpop.f32.mrf.mxu0
  %v3791 = vpop.f32.mrf.mxu0
  %v3792 = vpop.f32.mrf.mxu0
  %v3793 = vpop.f32.mrf.mxu0
  %3794 = vmatprep.mubr.bf16.mxu0 %v2995
  %3795 = vmatmul.mubr.bf16.gmra.mxu0 %v2777
  %v3796 = vpop.f32.mrf.mxu0
  %v3797 = vadd.f32 0.0, %v3796
  %v3798 = vpop.f32.mrf.mxu0
  %v3799 = vadd.f32 0.0, %v3798
  %v3800 = vpop.f32.mrf.mxu0
  %v3801 = vadd.f32 0.0, %v3800
  %v3802 = vpop.f32.mrf.mxu0
  %v3803 = vadd.f32 0.0, %v3802
  %3804 = vmatprep.mubr.bf16.mxu0 %v3623
  %3805 = vmatmul.mubr.bf16.gmra.mxu0 %v2779
  %v3806 = vpop.f32.mrf.mxu0
  %v3807 = vpop.f32.mrf.mxu0
  %v3808 = vpop.f32.mrf.mxu0
  %v3809 = vpop.f32.mrf.mxu0
  %3810 = vmatprep.mubr.bf16.mxu0 %v3626
  %3811 = vmatmul.mubr.bf16.gmra.mxu0 %v2781
  %v3812 = vpop.f32.mrf.mxu0
  %v3813 = vadd.f32 0.0, %v3812
  %v3814 = vpop.f32.mrf.mxu0
  %v3815 = vadd.f32 0.0, %v3814
  %v3816 = vpop.f32.mrf.mxu0
  %v3817 = vadd.f32 0.0, %v3816
  %v3818 = vpop.f32.mrf.mxu0
  %v3819 = vadd.f32 0.0, %v3818
  %3820 = vdwg.mxu0
  %v3821 = vadd.f32 %v3343, %v3669
  %v3822 = vadd.f32 %v3345, %v3671
  %v3823 = vadd.f32 %v3347, %v3673
  %v3824 = vadd.f32 %v3349, %v3675
  %v3825 = vadd.f32 %v3359, %v3685
  %v3826 = vadd.f32 %v3361, %v3687
  %v3827 = vadd.f32 %v3363, %v3689
  %v3828 = vadd.f32 %v3365, %v3691
  %v3829 = vadd.f32 %v3375, %v3701
  %v3830 = vadd.f32 %v3377, %v3703
  %v3831 = vadd.f32 %v3379, %v3705
  %v3832 = vadd.f32 %v3381, %v3707
  %v3833 = vadd.f32 %v3391, %v3717
  %v3834 = vadd.f32 %v3393, %v3719
  %v3835 = vadd.f32 %v3395, %v3721
  %v3836 = vadd.f32 %v3397, %v3723
  %v3837 = vadd.f32 %v3407, %v3733
  %v3838 = vadd.f32 %v3409, %v3735
  %v3839 = vadd.f32 %v3411, %v3737
  %v3840 = vadd.f32 %v3413, %v3739
  %v3841 = vadd.f32 %v3423, %v3749
  %v3842 = vadd.f32 %v3425, %v3751
  %v3843 = vadd.f32 %v3427, %v3753
  %v3844 = vadd.f32 %v3429, %v3755
  %v3845 = vadd.f32 %v3439, %v3765
  %v3846 = vadd.f32 %v3441, %v3767
  %v3847 = vadd.f32 %v3443, %v3769
  %v3848 = vadd.f32 %v3445, %v3771
  %v3849 = vadd.f32 %v3455, %v3781
  %v3850 = vadd.f32 %v3457, %v3783
  %v3851 = vadd.f32 %v3459, %v3785
  %v3852 = vadd.f32 %v3461, %v3787
  %v3853 = vadd.f32 %v3471, %v3797
  %v3854 = vadd.f32 %v3473, %v3799
  %v3855 = vadd.f32 %v3475, %v3801
  %v3856 = vadd.f32 %v3477, %v3803
  %v3857 = vadd.f32 %v3487, %v3813
  %v3858 = vadd.f32 %v3489, %v3815
  %v3859 = vadd.f32 %v3491, %v3817
  %v3860 = vadd.f32 %v3493, %v3819
  %s3861 = scalar_lea.vmem %s3, 504
  %v3862 = vld [vmem:[%s3861] sm:$0xff]
  %v3863 = vld [vmem:[%s3861 + $0x8] sm:$0xff]
  %v3864 = vld [vmem:[%s3861 + $0x10] sm:$0xff]
  %v3865 = vld [vmem:[%s3861 + $0x18] sm:$0xff]
  %v3866 = vld [vmem:[%s3861 + $0x20] sm:$0xff]
  %v3867 = vld [vmem:[%s3861 + $0x28] sm:$0xff]
  %v3868 = vld [vmem:[%s3861 + $0x30] sm:$0xff]
  %v3869 = vld [vmem:[%s3861 + $0x38] sm:$0xff]
  %v3870 = vld [vmem:[%s3861 + $0x40] sm:$0xff]
  %v3871 = vld [vmem:[%s3861 + $0x48] sm:$0xff]
  %v3872 = vld [vmem:[%s3861 + $0x50] sm:$0xff]
  %v3873 = vld [vmem:[%s3861 + $0x58] sm:$0xff]
  %v3874 = vld [vmem:[%s3861 + $0x60] sm:$0xff]
  %v3875 = vld [vmem:[%s3861 + $0x68] sm:$0xff]
  %v3876 = vld [vmem:[%s3861 + $0x70] sm:$0xff]
  %v3877 = vld [vmem:[%s3861 + $0x78] sm:$0xff]
  %v3878 = vld [vmem:[%s3861 + $0x80] sm:$0xff]
  %v3879 = vld [vmem:[%s3861 + $0x88] sm:$0xff]
  %v3880 = vld [vmem:[%s3861 + $0x90] sm:$0xff]
  %v3881 = vld [vmem:[%s3861 + $0x98] sm:$0xff]
  %v3882 = vld [vmem:[%s3861 + $0xa0] sm:$0xff]
  %v3904 = vunpack.c.l.b16 %v3862
  %v3905 = vunpack.c.h.b16 %v3862
  %v3906 = vunpack.c.l.b16 %v3863
  %v3907 = vunpack.c.h.b16 %v3863
  %v3908 = vunpack.c.l.b16 %v3864
  %v3909 = vunpack.c.h.b16 %v3864
  %v3910 = vunpack.c.l.b16 %v3865
  %v3911 = vunpack.c.h.b16 %v3865
  %v3912 = vunpack.c.l.b16 %v3866
  %v3913 = vunpack.c.h.b16 %v3866
  %v3914 = vunpack.c.l.b16 %v3867
  %v3915 = vunpack.c.h.b16 %v3867
  %v3916 = vunpack.c.l.b16 %v3868
  %v3917 = vunpack.c.h.b16 %v3868
  %v3918 = vunpack.c.l.b16 %v3869
  %v3919 = vunpack.c.h.b16 %v3869
  %v3920 = vunpack.c.l.b16 %v3870
  %v3921 = vunpack.c.h.b16 %v3870
  %v3922 = vunpack.c.l.b16 %v3871
  %v3923 = vunpack.c.h.b16 %v3871
  %v3924 = vunpack.c.l.b16 %v3872
  %v3925 = vunpack.c.h.b16 %v3872
  %v3926 = vunpack.c.l.b16 %v3873
  %v3927 = vunpack.c.h.b16 %v3873
  %v3928 = vunpack.c.l.b16 %v3874
  %v3929 = vunpack.c.h.b16 %v3874
  %v3930 = vunpack.c.l.b16 %v3875
  %v3931 = vunpack.c.h.b16 %v3875
  %v3932 = vunpack.c.l.b16 %v3876
  %v3933 = vunpack.c.h.b16 %v3876
  %v3934 = vunpack.c.l.b16 %v3877
  %v3935 = vunpack.c.h.b16 %v3877
  %v3936 = vunpack.c.l.b16 %v3878
  %v3937 = vunpack.c.h.b16 %v3878
  %v3938 = vunpack.c.l.b16 %v3879
  %v3939 = vunpack.c.h.b16 %v3879
  %v3940 = vunpack.c.l.b16 %v3880
  %v3941 = vunpack.c.h.b16 %v3880
  %v3942 = vunpack.c.l.b16 %v3881
  %v3943 = vunpack.c.h.b16 %v3881
  %v3944 = vunpack.c.l.b16 %v3882
  %v3945 = vunpack.c.h.b16 %v3882
  %v3946 = vpack.c.b16 %v3906, %v3904
  %v3947 = vpack.c.b16 %v3907, %v3905
  %v3948 = vpack.c.b16 %v3910, %v3908
  %v3949 = vpack.c.b16 %v3911, %v3909
  %v3950 = vpack.c.b16 %v3914, %v3912
  %v3951 = vpack.c.b16 %v3915, %v3913
  %v3952 = vpack.c.b16 %v3918, %v3916
  %v3953 = vpack.c.b16 %v3919, %v3917
  %v3954 = vpack.c.b16 %v3922, %v3920
  %v3955 = vpack.c.b16 %v3923, %v3921
  %v3956 = vpack.c.b16 %v3926, %v3924
  %v3957 = vpack.c.b16 %v3927, %v3925
  %v3958 = vpack.c.b16 %v3930, %v3928
  %v3959 = vpack.c.b16 %v3931, %v3929
  %v3960 = vpack.c.b16 %v3934, %v3932
  %v3961 = vpack.c.b16 %v3935, %v3933
  %v3962 = vpack.c.b16 %v3938, %v3936
  %v3963 = vpack.c.b16 %v3939, %v3937
  %v3964 = vpack.c.b16 %v3942, %v3940
  %v3965 = vpack.c.b16 %v3943, %v3941
  %v3966 = vpack.c.b16 %v3944, %v3944
  %v3967 = vpack.c.b16 %v3945, %v3945
  %v3989 = vsel %vm2939, %v2784, 0
  %v3992 = vsel %vm2939, %v2786, 0
  %v3995 = vsel %vm2997, %v3966, 0
  %v3998 = vsel %vm2997, %v3967, 0
  %4000 = vmatprep.subr.bf16.mxu0 %v3961
  %4001 = vmatpush1.bf16.msra.mxu0 %v3960
  %4002 = vmatprep.subr.bf16.mxu0 %v3959
  %4003 = vmatpush1.bf16.msra.mxu0 %v3958
  %4004 = vmatprep.subr.bf16.mxu0 %v3957
  %4005 = vmatpush1.bf16.msra.mxu0 %v3956
  %4006 = vmatprep.subr.bf16.mxu0 %v3955
  %4007 = vmatpush1.bf16.msra.mxu0 %v3954
  %4008 = vmatprep.subr.bf16.mxu0 %v3953
  %4009 = vmatpush1.bf16.msra.mxu0 %v3952
  %4010 = vmatprep.subr.bf16.mxu0 %v3951
  %4011 = vmatpush1.bf16.msra.mxu0 %v3950
  %4012 = vmatprep.subr.bf16.mxu0 %v3949
  %4013 = vmatpush1.bf16.msra.mxu0 %v3948
  %4014 = vmatprep.subr.bf16.mxu0 %v3947
  %4015 = vmatpush1.bf16.msra.mxu0 %v3946
  %4016 = vmatprep.subr.bf16.mxu0 0
  %4017 = vmatpush2.bf16.msra.mxu0 0
  %4018 = vmatprep.subr.bf16.mxu0 0
  %4019 = vmatpush2.bf16.msra.mxu0 0
  %4020 = vmatprep.subr.bf16.mxu0 0
  %4021 = vmatpush2.bf16.msra.mxu0 0
  %4022 = vmatprep.subr.bf16.mxu0 0
  %4023 = vmatpush2.bf16.msra.mxu0 0
  %4024 = vmatprep.subr.bf16.mxu0 0
  %4025 = vmatpush2.bf16.msra.mxu0 0
  %4026 = vmatprep.subr.bf16.mxu0 %v3998
  %4027 = vmatpush2.bf16.msra.mxu0 %v3995
  %4028 = vmatprep.subr.bf16.mxu0 %v3965
  %4029 = vmatpush2.bf16.msra.mxu0 %v3964
  %4030 = vmatprep.subr.bf16.mxu0 %v3963
  %4031 = vmatpush2.bf16.msra.mxu0 %v3962
  %4032 = vmatprep.mubr.bf16.mxu0 %v2953
  %4033 = vmatmul.mubr.bf16.gmra.mxu0 %v2749
  %v4034 = vpop.f32.mrf.mxu0
  %v4035 = vadd.f32 0.0, %v4034
  %v4036 = vpop.f32.mrf.mxu0
  %v4037 = vadd.f32 0.0, %v4036
  %v4038 = vpop.f32.mrf.mxu0
  %v4039 = vadd.f32 0.0, %v4038
  %v4040 = vpop.f32.mrf.mxu0
  %v4041 = vadd.f32 0.0, %v4040
  %4042 = vmatprep.mubr.bf16.mxu0 %v2956
  %4043 = vmatmul.mubr.bf16.gmra.mxu0 %v2751
  %v4044 = vpop.f32.mrf.mxu0
  %v4045 = vpop.f32.mrf.mxu0
  %v4046 = vpop.f32.mrf.mxu0
  %v4047 = vpop.f32.mrf.mxu0
  %4048 = vmatprep.mubr.bf16.mxu0 %v2959
  %4049 = vmatmul.mubr.bf16.gmra.mxu0 %v2753
  %v4050 = vpop.f32.mrf.mxu0
  %v4051 = vadd.f32 0.0, %v4050
  %v4052 = vpop.f32.mrf.mxu0
  %v4053 = vadd.f32 0.0, %v4052
  %v4054 = vpop.f32.mrf.mxu0
  %v4055 = vadd.f32 0.0, %v4054
  %v4056 = vpop.f32.mrf.mxu0
  %v4057 = vadd.f32 0.0, %v4056
  %4058 = vmatprep.mubr.bf16.mxu0 %v2962
  %4059 = vmatmul.mubr.bf16.gmra.mxu0 %v2755
  %v4060 = vpop.f32.mrf.mxu0
  %v4061 = vpop.f32.mrf.mxu0
  %v4062 = vpop.f32.mrf.mxu0
  %v4063 = vpop.f32.mrf.mxu0
  %4064 = vmatprep.mubr.bf16.mxu0 %v2965
  %4065 = vmatmul.mubr.bf16.gmra.mxu0 %v2757
  %v4066 = vpop.f32.mrf.mxu0
  %v4067 = vadd.f32 0.0, %v4066
  %v4068 = vpop.f32.mrf.mxu0
  %v4069 = vadd.f32 0.0, %v4068
  %v4070 = vpop.f32.mrf.mxu0
  %v4071 = vadd.f32 0.0, %v4070
  %v4072 = vpop.f32.mrf.mxu0
  %v4073 = vadd.f32 0.0, %v4072
  %4074 = vmatprep.mubr.bf16.mxu0 %v2968
  %4075 = vmatmul.mubr.bf16.gmra.mxu0 %v2759
  %v4076 = vpop.f32.mrf.mxu0
  %v4077 = vpop.f32.mrf.mxu0
  %v4078 = vpop.f32.mrf.mxu0
  %v4079 = vpop.f32.mrf.mxu0
  %4080 = vmatprep.mubr.bf16.mxu0 %v2971
  %4081 = vmatmul.mubr.bf16.gmra.mxu0 %v2761
  %v4082 = vpop.f32.mrf.mxu0
  %v4083 = vadd.f32 0.0, %v4082
  %v4084 = vpop.f32.mrf.mxu0
  %v4085 = vadd.f32 0.0, %v4084
  %v4086 = vpop.f32.mrf.mxu0
  %v4087 = vadd.f32 0.0, %v4086
  %v4088 = vpop.f32.mrf.mxu0
  %v4089 = vadd.f32 0.0, %v4088
  %4090 = vmatprep.mubr.bf16.mxu0 %v2974
  %4091 = vmatmul.mubr.bf16.gmra.mxu0 %v2763
  %v4092 = vpop.f32.mrf.mxu0
  %v4093 = vpop.f32.mrf.mxu0
  %v4094 = vpop.f32.mrf.mxu0
  %v4095 = vpop.f32.mrf.mxu0
  %4096 = vmatprep.mubr.bf16.mxu0 %v2977
  %4097 = vmatmul.mubr.bf16.gmra.mxu0 %v2765
  %v4098 = vpop.f32.mrf.mxu0
  %v4099 = vadd.f32 0.0, %v4098
  %v4100 = vpop.f32.mrf.mxu0
  %v4101 = vadd.f32 0.0, %v4100
  %v4102 = vpop.f32.mrf.mxu0
  %v4103 = vadd.f32 0.0, %v4102
  %v4104 = vpop.f32.mrf.mxu0
  %v4105 = vadd.f32 0.0, %v4104
  %4106 = vmatprep.mubr.bf16.mxu0 %v2980
  %4107 = vmatmul.mubr.bf16.gmra.mxu0 %v2767
  %v4108 = vpop.f32.mrf.mxu0
  %v4109 = vpop.f32.mrf.mxu0
  %v4110 = vpop.f32.mrf.mxu0
  %v4111 = vpop.f32.mrf.mxu0
  %4112 = vmatprep.mubr.bf16.mxu0 %v2983
  %4113 = vmatmul.mubr.bf16.gmra.mxu0 %v2769
  %v4114 = vpop.f32.mrf.mxu0
  %v4115 = vadd.f32 0.0, %v4114
  %v4116 = vpop.f32.mrf.mxu0
  %v4117 = vadd.f32 0.0, %v4116
  %v4118 = vpop.f32.mrf.mxu0
  %v4119 = vadd.f32 0.0, %v4118
  %v4120 = vpop.f32.mrf.mxu0
  %v4121 = vadd.f32 0.0, %v4120
  %4122 = vmatprep.mubr.bf16.mxu0 %v2986
  %4123 = vmatmul.mubr.bf16.gmra.mxu0 %v2771
  %v4124 = vpop.f32.mrf.mxu0
  %v4125 = vpop.f32.mrf.mxu0
  %v4126 = vpop.f32.mrf.mxu0
  %v4127 = vpop.f32.mrf.mxu0
  %4128 = vmatprep.mubr.bf16.mxu0 %v2989
  %4129 = vmatmul.mubr.bf16.gmra.mxu0 %v2773
  %v4130 = vpop.f32.mrf.mxu0
  %v4131 = vadd.f32 0.0, %v4130
  %v4132 = vpop.f32.mrf.mxu0
  %v4133 = vadd.f32 0.0, %v4132
  %v4134 = vpop.f32.mrf.mxu0
  %v4135 = vadd.f32 0.0, %v4134
  %v4136 = vpop.f32.mrf.mxu0
  %v4137 = vadd.f32 0.0, %v4136
  %4138 = vmatprep.mubr.bf16.mxu0 %v2992
  %4139 = vmatmul.mubr.bf16.gmra.mxu0 %v2775
  %v4140 = vpop.f32.mrf.mxu0
  %v4141 = vpop.f32.mrf.mxu0
  %v4142 = vpop.f32.mrf.mxu0
  %v4143 = vpop.f32.mrf.mxu0
  %4144 = vmatprep.mubr.bf16.mxu0 %v2995
  %4145 = vmatmul.mubr.bf16.gmra.mxu0 %v2777
  %v4146 = vpop.f32.mrf.mxu0
  %v4147 = vadd.f32 0.0, %v4146
  %v4148 = vpop.f32.mrf.mxu0
  %v4149 = vadd.f32 0.0, %v4148
  %v4150 = vpop.f32.mrf.mxu0
  %v4151 = vadd.f32 0.0, %v4150
  %v4152 = vpop.f32.mrf.mxu0
  %v4153 = vadd.f32 0.0, %v4152
  %4154 = vmatprep.mubr.bf16.mxu0 %v3623
  %4155 = vmatmul.mubr.bf16.gmra.mxu0 %v2779
  %v4156 = vpop.f32.mrf.mxu0
  %v4157 = vpop.f32.mrf.mxu0
  %v4158 = vpop.f32.mrf.mxu0
  %v4159 = vpop.f32.mrf.mxu0
  %4160 = vmatprep.mubr.bf16.mxu0 %v3626
  %4161 = vmatmul.mubr.bf16.gmra.mxu0 %v2781
  %v4162 = vpop.f32.mrf.mxu0
  %v4163 = vadd.f32 0.0, %v4162
  %v4164 = vpop.f32.mrf.mxu0
  %v4165 = vadd.f32 0.0, %v4164
  %v4166 = vpop.f32.mrf.mxu0
  %v4167 = vadd.f32 0.0, %v4166
  %v4168 = vpop.f32.mrf.mxu0
  %v4169 = vadd.f32 0.0, %v4168
  %4170 = vmatprep.mubr.bf16.mxu0 %v3989
  %4171 = vmatmul.mubr.bf16.gmra.mxu0 %v2783
  %v4172 = vpop.f32.mrf.mxu0
  %v4173 = vpop.f32.mrf.mxu0
  %v4174 = vpop.f32.mrf.mxu0
  %v4175 = vpop.f32.mrf.mxu0
  %4176 = vmatprep.mubr.bf16.mxu0 %v3992
  %4177 = vmatmul.mubr.bf16.gmra.mxu0 %v2785
  %v4178 = vpop.f32.mrf.mxu0
  %v4179 = vadd.f32 0.0, %v4178
  %v4180 = vpop.f32.mrf.mxu0
  %v4181 = vadd.f32 0.0, %v4180
  %v4182 = vpop.f32.mrf.mxu0
  %v4183 = vadd.f32 0.0, %v4182
  %v4184 = vpop.f32.mrf.mxu0
  %v4185 = vadd.f32 0.0, %v4184
  %4186 = vdwg.mxu0
  %v4187 = vadd.f32 %v3821, %v4035
  %v4188 = vadd.f32 %v3822, %v4037
  %v4189 = vadd.f32 %v3823, %v4039
  %v4190 = vadd.f32 %v3824, %v4041
  %v4191 = vadd.f32 %v3825, %v4051
  %v4192 = vadd.f32 %v3826, %v4053
  %v4193 = vadd.f32 %v3827, %v4055
  %v4194 = vadd.f32 %v3828, %v4057
  %v4195 = vadd.f32 %v3829, %v4067
  %v4196 = vadd.f32 %v3830, %v4069
  %v4197 = vadd.f32 %v3831, %v4071
  %v4198 = vadd.f32 %v3832, %v4073
  %v4199 = vadd.f32 %v3833, %v4083
  %v4200 = vadd.f32 %v3834, %v4085
  %v4201 = vadd.f32 %v3835, %v4087
  %v4202 = vadd.f32 %v3836, %v4089
  %v4203 = vadd.f32 %v3837, %v4099
  %v4204 = vadd.f32 %v3838, %v4101
  %v4205 = vadd.f32 %v3839, %v4103
  %v4206 = vadd.f32 %v3840, %v4105
  %v4207 = vadd.f32 %v3841, %v4115
  %v4208 = vadd.f32 %v3842, %v4117
  %v4209 = vadd.f32 %v3843, %v4119
  %v4210 = vadd.f32 %v3844, %v4121
  %v4211 = vadd.f32 %v3845, %v4131
  %v4212 = vadd.f32 %v3846, %v4133
  %v4213 = vadd.f32 %v3847, %v4135
  %v4214 = vadd.f32 %v3848, %v4137
  %v4215 = vadd.f32 %v3849, %v4147
  %v4216 = vadd.f32 %v3850, %v4149
  %v4217 = vadd.f32 %v3851, %v4151
  %v4218 = vadd.f32 %v3852, %v4153
  %v4219 = vadd.f32 %v3853, %v4163
  %v4220 = vadd.f32 %v3854, %v4165
  %v4221 = vadd.f32 %v3855, %v4167
  %v4222 = vadd.f32 %v3856, %v4169
  %v4223 = vadd.f32 %v3857, %v4179
  %v4224 = vadd.f32 %v3858, %v4181
  %v4225 = vadd.f32 %v3859, %v4183
  %v4226 = vadd.f32 %v3860, %v4185
  %s4227 = scalar_lea.vmem %s3, 672
  %v4228 = vld [vmem:[%s4227] sm:$0xff]
  %v4229 = vld [vmem:[%s4227 + $0x8] sm:$0xff]
  %v4230 = vld [vmem:[%s4227 + $0x10] sm:$0xff]
  %v4231 = vld [vmem:[%s4227 + $0x18] sm:$0xff]
  %v4232 = vld [vmem:[%s4227 + $0x20] sm:$0xff]
  %v4233 = vld [vmem:[%s4227 + $0x28] sm:$0xff]
  %v4234 = vld [vmem:[%s4227 + $0x30] sm:$0xff]
  %v4235 = vld [vmem:[%s4227 + $0x38] sm:$0xff]
  %v4236 = vld [vmem:[%s4227 + $0x40] sm:$0xff]
  %v4237 = vld [vmem:[%s4227 + $0x48] sm:$0xff]
  %v4238 = vld [vmem:[%s4227 + $0x50] sm:$0xff]
  %v4239 = vld [vmem:[%s4227 + $0x58] sm:$0xff]
  %v4240 = vld [vmem:[%s4227 + $0x60] sm:$0xff]
  %v4241 = vld [vmem:[%s4227 + $0x68] sm:$0xff]
  %v4242 = vld [vmem:[%s4227 + $0x70] sm:$0xff]
  %v4243 = vld [vmem:[%s4227 + $0x78] sm:$0xff]
  %v4244 = vld [vmem:[%s4227 + $0x80] sm:$0xff]
  %v4245 = vld [vmem:[%s4227 + $0x88] sm:$0xff]
  %v4246 = vld [vmem:[%s4227 + $0x90] sm:$0xff]
  %v4247 = vld [vmem:[%s4227 + $0x98] sm:$0xff]
  %v4248 = vld [vmem:[%s4227 + $0xa0] sm:$0xff]
  %v4270 = vunpack.c.l.b16 %v4228
  %v4271 = vunpack.c.h.b16 %v4228
  %v4272 = vunpack.c.l.b16 %v4229
  %v4273 = vunpack.c.h.b16 %v4229
  %v4274 = vunpack.c.l.b16 %v4230
  %v4275 = vunpack.c.h.b16 %v4230
  %v4276 = vunpack.c.l.b16 %v4231
  %v4277 = vunpack.c.h.b16 %v4231
  %v4278 = vunpack.c.l.b16 %v4232
  %v4279 = vunpack.c.h.b16 %v4232
  %v4280 = vunpack.c.l.b16 %v4233
  %v4281 = vunpack.c.h.b16 %v4233
  %v4282 = vunpack.c.l.b16 %v4234
  %v4283 = vunpack.c.h.b16 %v4234
  %v4284 = vunpack.c.l.b16 %v4235
  %v4285 = vunpack.c.h.b16 %v4235
  %v4286 = vunpack.c.l.b16 %v4236
  %v4287 = vunpack.c.h.b16 %v4236
  %v4288 = vunpack.c.l.b16 %v4237
  %v4289 = vunpack.c.h.b16 %v4237
  %v4290 = vunpack.c.l.b16 %v4238
  %v4291 = vunpack.c.h.b16 %v4238
  %v4292 = vunpack.c.l.b16 %v4239
  %v4293 = vunpack.c.h.b16 %v4239
  %v4294 = vunpack.c.l.b16 %v4240
  %v4295 = vunpack.c.h.b16 %v4240
  %v4296 = vunpack.c.l.b16 %v4241
  %v4297 = vunpack.c.h.b16 %v4241
  %v4298 = vunpack.c.l.b16 %v4242
  %v4299 = vunpack.c.h.b16 %v4242
  %v4300 = vunpack.c.l.b16 %v4243
  %v4301 = vunpack.c.h.b16 %v4243
  %v4302 = vunpack.c.l.b16 %v4244
  %v4303 = vunpack.c.h.b16 %v4244
  %v4304 = vunpack.c.l.b16 %v4245
  %v4305 = vunpack.c.h.b16 %v4245
  %v4306 = vunpack.c.l.b16 %v4246
  %v4307 = vunpack.c.h.b16 %v4246
  %v4308 = vunpack.c.l.b16 %v4247
  %v4309 = vunpack.c.h.b16 %v4247
  %v4310 = vunpack.c.l.b16 %v4248
  %v4311 = vunpack.c.h.b16 %v4248
  %v4312 = vpack.c.b16 %v4272, %v4270
  %v4313 = vpack.c.b16 %v4273, %v4271
  %v4314 = vpack.c.b16 %v4276, %v4274
  %v4315 = vpack.c.b16 %v4277, %v4275
  %v4316 = vpack.c.b16 %v4280, %v4278
  %v4317 = vpack.c.b16 %v4281, %v4279
  %v4318 = vpack.c.b16 %v4284, %v4282
  %v4319 = vpack.c.b16 %v4285, %v4283
  %v4320 = vpack.c.b16 %v4288, %v4286
  %v4321 = vpack.c.b16 %v4289, %v4287
  %v4322 = vpack.c.b16 %v4292, %v4290
  %v4323 = vpack.c.b16 %v4293, %v4291
  %v4324 = vpack.c.b16 %v4296, %v4294
  %v4325 = vpack.c.b16 %v4297, %v4295
  %v4326 = vpack.c.b16 %v4300, %v4298
  %v4327 = vpack.c.b16 %v4301, %v4299
  %v4328 = vpack.c.b16 %v4304, %v4302
  %v4329 = vpack.c.b16 %v4305, %v4303
  %v4330 = vpack.c.b16 %v4308, %v4306
  %v4331 = vpack.c.b16 %v4309, %v4307
  %v4332 = vpack.c.b16 %v4310, %v4310
  %v4333 = vpack.c.b16 %v4311, %v4311
  %v4355 = vsel %vm2939, %v2788, 0
  %v4358 = vsel %vm2939, %v2790, 0
  %v4361 = vsel %vm2997, %v4332, 0
  %v4364 = vsel %vm2997, %v4333, 0
  %4366 = vmatprep.subr.bf16.mxu0 %v4327
  %4367 = vmatpush1.bf16.msra.mxu0 %v4326
  %4368 = vmatprep.subr.bf16.mxu0 %v4325
  %4369 = vmatpush1.bf16.msra.mxu0 %v4324
  %4370 = vmatprep.subr.bf16.mxu0 %v4323
  %4371 = vmatpush1.bf16.msra.mxu0 %v4322
  %4372 = vmatprep.subr.bf16.mxu0 %v4321
  %4373 = vmatpush1.bf16.msra.mxu0 %v4320
  %4374 = vmatprep.subr.bf16.mxu0 %v4319
  %4375 = vmatpush1.bf16.msra.mxu0 %v4318
  %4376 = vmatprep.subr.bf16.mxu0 %v4317
  %4377 = vmatpush1.bf16.msra.mxu0 %v4316
  %4378 = vmatprep.subr.bf16.mxu0 %v4315
  %4379 = vmatpush1.bf16.msra.mxu0 %v4314
  %4380 = vmatprep.subr.bf16.mxu0 %v4313
  %4381 = vmatpush1.bf16.msra.mxu0 %v4312
  %4382 = vmatprep.subr.bf16.mxu0 0
  %4383 = vmatpush2.bf16.msra.mxu0 0
  %4384 = vmatprep.subr.bf16.mxu0 0
  %4385 = vmatpush2.bf16.msra.mxu0 0
  %4386 = vmatprep.subr.bf16.mxu0 0
  %4387 = vmatpush2.bf16.msra.mxu0 0
  %4388 = vmatprep.subr.bf16.mxu0 0
  %4389 = vmatpush2.bf16.msra.mxu0 0
  %4390 = vmatprep.subr.bf16.mxu0 0
  %4391 = vmatpush2.bf16.msra.mxu0 0
  %4392 = vmatprep.subr.bf16.mxu0 %v4364
  %4393 = vmatpush2.bf16.msra.mxu0 %v4361
  %4394 = vmatprep.subr.bf16.mxu0 %v4331
  %4395 = vmatpush2.bf16.msra.mxu0 %v4330
  %4396 = vmatprep.subr.bf16.mxu0 %v4329
  %4397 = vmatpush2.bf16.msra.mxu0 %v4328
  %4398 = vmatprep.mubr.bf16.mxu0 %v2959
  %4399 = vmatmul.mubr.bf16.gmra.mxu0 %v2753
  %v4400 = vpop.f32.mrf.mxu0
  %v4401 = vadd.f32 0.0, %v4400
  %v4402 = vpop.f32.mrf.mxu0
  %v4403 = vadd.f32 0.0, %v4402
  %v4404 = vpop.f32.mrf.mxu0
  %v4405 = vadd.f32 0.0, %v4404
  %v4406 = vpop.f32.mrf.mxu0
  %v4407 = vadd.f32 0.0, %v4406
  %4408 = vmatprep.mubr.bf16.mxu0 %v2962
  %4409 = vmatmul.mubr.bf16.gmra.mxu0 %v2755
  %v4410 = vpop.f32.mrf.mxu0
  %v4411 = vpop.f32.mrf.mxu0
  %v4412 = vpop.f32.mrf.mxu0
  %v4413 = vpop.f32.mrf.mxu0
  %4414 = vmatprep.mubr.bf16.mxu0 %v2965
  %4415 = vmatmul.mubr.bf16.gmra.mxu0 %v2757
  %v4416 = vpop.f32.mrf.mxu0
  %v4417 = vadd.f32 0.0, %v4416
  %v4418 = vpop.f32.mrf.mxu0
  %v4419 = vadd.f32 0.0, %v4418
  %v4420 = vpop.f32.mrf.mxu0
  %v4421 = vadd.f32 0.0, %v4420
  %v4422 = vpop.f32.mrf.mxu0
  %v4423 = vadd.f32 0.0, %v4422
  %4424 = vmatprep.mubr.bf16.mxu0 %v2968
  %4425 = vmatmul.mubr.bf16.gmra.mxu0 %v2759
  %v4426 = vpop.f32.mrf.mxu0
  %v4427 = vpop.f32.mrf.mxu0
  %v4428 = vpop.f32.mrf.mxu0
  %v4429 = vpop.f32.mrf.mxu0
  %4430 = vmatprep.mubr.bf16.mxu0 %v2971
  %4431 = vmatmul.mubr.bf16.gmra.mxu0 %v2761
  %v4432 = vpop.f32.mrf.mxu0
  %v4433 = vadd.f32 0.0, %v4432
  %v4434 = vpop.f32.mrf.mxu0
  %v4435 = vadd.f32 0.0, %v4434
  %v4436 = vpop.f32.mrf.mxu0
  %v4437 = vadd.f32 0.0, %v4436
  %v4438 = vpop.f32.mrf.mxu0
  %v4439 = vadd.f32 0.0, %v4438
  %4440 = vmatprep.mubr.bf16.mxu0 %v2974
  %4441 = vmatmul.mubr.bf16.gmra.mxu0 %v2763
  %v4442 = vpop.f32.mrf.mxu0
  %v4443 = vpop.f32.mrf.mxu0
  %v4444 = vpop.f32.mrf.mxu0
  %v4445 = vpop.f32.mrf.mxu0
  %4446 = vmatprep.mubr.bf16.mxu0 %v2977
  %4447 = vmatmul.mubr.bf16.gmra.mxu0 %v2765
  %v4448 = vpop.f32.mrf.mxu0
  %v4449 = vadd.f32 0.0, %v4448
  %v4450 = vpop.f32.mrf.mxu0
  %v4451 = vadd.f32 0.0, %v4450
  %v4452 = vpop.f32.mrf.mxu0
  %v4453 = vadd.f32 0.0, %v4452
  %v4454 = vpop.f32.mrf.mxu0
  %v4455 = vadd.f32 0.0, %v4454
  %4456 = vmatprep.mubr.bf16.mxu0 %v2980
  %4457 = vmatmul.mubr.bf16.gmra.mxu0 %v2767
  %v4458 = vpop.f32.mrf.mxu0
  %v4459 = vpop.f32.mrf.mxu0
  %v4460 = vpop.f32.mrf.mxu0
  %v4461 = vpop.f32.mrf.mxu0
  %4462 = vmatprep.mubr.bf16.mxu0 %v2983
  %4463 = vmatmul.mubr.bf16.gmra.mxu0 %v2769
  %v4464 = vpop.f32.mrf.mxu0
  %v4465 = vadd.f32 0.0, %v4464
  %v4466 = vpop.f32.mrf.mxu0
  %v4467 = vadd.f32 0.0, %v4466
  %v4468 = vpop.f32.mrf.mxu0
  %v4469 = vadd.f32 0.0, %v4468
  %v4470 = vpop.f32.mrf.mxu0
  %v4471 = vadd.f32 0.0, %v4470
  %4472 = vmatprep.mubr.bf16.mxu0 %v2986
  %4473 = vmatmul.mubr.bf16.gmra.mxu0 %v2771
  %v4474 = vpop.f32.mrf.mxu0
  %v4475 = vpop.f32.mrf.mxu0
  %v4476 = vpop.f32.mrf.mxu0
  %v4477 = vpop.f32.mrf.mxu0
  %4478 = vmatprep.mubr.bf16.mxu0 %v2989
  %4479 = vmatmul.mubr.bf16.gmra.mxu0 %v2773
  %v4480 = vpop.f32.mrf.mxu0
  %v4481 = vadd.f32 0.0, %v4480
  %v4482 = vpop.f32.mrf.mxu0
  %v4483 = vadd.f32 0.0, %v4482
  %v4484 = vpop.f32.mrf.mxu0
  %v4485 = vadd.f32 0.0, %v4484
  %v4486 = vpop.f32.mrf.mxu0
  %v4487 = vadd.f32 0.0, %v4486
  %4488 = vmatprep.mubr.bf16.mxu0 %v2992
  %4489 = vmatmul.mubr.bf16.gmra.mxu0 %v2775
  %v4490 = vpop.f32.mrf.mxu0
  %v4491 = vpop.f32.mrf.mxu0
  %v4492 = vpop.f32.mrf.mxu0
  %v4493 = vpop.f32.mrf.mxu0
  %4494 = vmatprep.mubr.bf16.mxu0 %v2995
  %4495 = vmatmul.mubr.bf16.gmra.mxu0 %v2777
  %v4496 = vpop.f32.mrf.mxu0
  %v4497 = vadd.f32 0.0, %v4496
  %v4498 = vpop.f32.mrf.mxu0
  %v4499 = vadd.f32 0.0, %v4498
  %v4500 = vpop.f32.mrf.mxu0
  %v4501 = vadd.f32 0.0, %v4500
  %v4502 = vpop.f32.mrf.mxu0
  %v4503 = vadd.f32 0.0, %v4502
  %4504 = vmatprep.mubr.bf16.mxu0 %v3623
  %4505 = vmatmul.mubr.bf16.gmra.mxu0 %v2779
  %v4506 = vpop.f32.mrf.mxu0
  %v4507 = vpop.f32.mrf.mxu0
  %v4508 = vpop.f32.mrf.mxu0
  %v4509 = vpop.f32.mrf.mxu0
  %4510 = vmatprep.mubr.bf16.mxu0 %v3626
  %4511 = vmatmul.mubr.bf16.gmra.mxu0 %v2781
  %v4512 = vpop.f32.mrf.mxu0
  %v4513 = vadd.f32 0.0, %v4512
  %v4514 = vpop.f32.mrf.mxu0
  %v4515 = vadd.f32 0.0, %v4514
  %v4516 = vpop.f32.mrf.mxu0
  %v4517 = vadd.f32 0.0, %v4516
  %v4518 = vpop.f32.mrf.mxu0
  %v4519 = vadd.f32 0.0, %v4518
  %4520 = vmatprep.mubr.bf16.mxu0 %v3989
  %4521 = vmatmul.mubr.bf16.gmra.mxu0 %v2783
  %v4522 = vpop.f32.mrf.mxu0
  %v4523 = vpop.f32.mrf.mxu0
  %v4524 = vpop.f32.mrf.mxu0
  %v4525 = vpop.f32.mrf.mxu0
  %4526 = vmatprep.mubr.bf16.mxu0 %v3992
  %4527 = vmatmul.mubr.bf16.gmra.mxu0 %v2785
  %v4528 = vpop.f32.mrf.mxu0
  %v4529 = vadd.f32 0.0, %v4528
  %v4530 = vpop.f32.mrf.mxu0
  %v4531 = vadd.f32 0.0, %v4530
  %v4532 = vpop.f32.mrf.mxu0
  %v4533 = vadd.f32 0.0, %v4532
  %v4534 = vpop.f32.mrf.mxu0
  %v4535 = vadd.f32 0.0, %v4534
  %4536 = vmatprep.mubr.bf16.mxu0 %v4355
  %4537 = vmatmul.mubr.bf16.gmra.mxu0 %v2787
  %v4538 = vpop.f32.mrf.mxu0
  %v4539 = vpop.f32.mrf.mxu0
  %v4540 = vpop.f32.mrf.mxu0
  %v4541 = vpop.f32.mrf.mxu0
  %4542 = vmatprep.mubr.bf16.mxu0 %v4358
  %4543 = vmatmul.mubr.bf16.gmra.mxu0 %v2789
  %v4544 = vpop.f32.mrf.mxu0
  %v4545 = vadd.f32 0.0, %v4544
  %v4546 = vpop.f32.mrf.mxu0
  %v4547 = vadd.f32 0.0, %v4546
  %v4548 = vpop.f32.mrf.mxu0
  %v4549 = vadd.f32 0.0, %v4548
  %v4550 = vpop.f32.mrf.mxu0
  %v4551 = vadd.f32 0.0, %v4550
  %4552 = vdwg.mxu0
  %v4553 = vadd.f32 %v4187, %v4401
  %v4554 = vadd.f32 %v4188, %v4403
  %v4555 = vadd.f32 %v4189, %v4405
  %v4556 = vadd.f32 %v4190, %v4407
  %v4557 = vadd.f32 %v4191, %v4417
  %v4558 = vadd.f32 %v4192, %v4419
  %v4559 = vadd.f32 %v4193, %v4421
  %v4560 = vadd.f32 %v4194, %v4423
  %v4561 = vadd.f32 %v4195, %v4433
  %v4562 = vadd.f32 %v4196, %v4435
  %v4563 = vadd.f32 %v4197, %v4437
  %v4564 = vadd.f32 %v4198, %v4439
  %v4565 = vadd.f32 %v4199, %v4449
  %v4566 = vadd.f32 %v4200, %v4451
  %v4567 = vadd.f32 %v4201, %v4453
  %v4568 = vadd.f32 %v4202, %v4455
  %v4569 = vadd.f32 %v4203, %v4465
  %v4570 = vadd.f32 %v4204, %v4467
  %v4571 = vadd.f32 %v4205, %v4469
  %v4572 = vadd.f32 %v4206, %v4471
  %v4573 = vadd.f32 %v4207, %v4481
  %v4574 = vadd.f32 %v4208, %v4483
  %v4575 = vadd.f32 %v4209, %v4485
  %v4576 = vadd.f32 %v4210, %v4487
  %v4577 = vadd.f32 %v4211, %v4497
  %v4578 = vadd.f32 %v4212, %v4499
  %v4579 = vadd.f32 %v4213, %v4501
  %v4580 = vadd.f32 %v4214, %v4503
  %v4581 = vadd.f32 %v4215, %v4513
  %v4582 = vadd.f32 %v4216, %v4515
  %v4583 = vadd.f32 %v4217, %v4517
  %v4584 = vadd.f32 %v4218, %v4519
  %v4585 = vadd.f32 %v4219, %v4529
  %v4586 = vadd.f32 %v4220, %v4531
  %v4587 = vadd.f32 %v4221, %v4533
  %v4588 = vadd.f32 %v4222, %v4535
  %v4589 = vadd.f32 %v4223, %v4545
  %v4590 = vadd.f32 %v4224, %v4547
  %v4591 = vadd.f32 %v4225, %v4549
  %v4592 = vadd.f32 %v4226, %v4551
  %v4593 = vld [vmem:[%s4] sm:$0x3]
  %v4595 = vlaneseq
  %v4596 = vshrl.u32 %v4595, 7
  %v4597 = vsub.s32 0, %v4596
  %v4598 = vrot.slane %v4593, %v4597
  %v4599 = vlaneseq
  %v4600 = vshrl.u32 %v4599, 7
  %v4601 = vsub.s32 1, %v4600
  %v4602 = vrot.slane %v4593, %v4601
  %v4605 = vadd.f32 %v4553, %v4598
  %v4606 = vadd.f32 %v4554, %v4602
  %v4607 = vadd.f32 %v4555, %v4598
  %v4608 = vadd.f32 %v4556, %v4602
  %v4609 = vadd.f32 %v4557, %v4598
  %v4610 = vadd.f32 %v4558, %v4602
  %v4611 = vadd.f32 %v4559, %v4598
  %v4612 = vadd.f32 %v4560, %v4602
  %v4613 = vadd.f32 %v4561, %v4598
  %v4614 = vadd.f32 %v4562, %v4602
  %v4615 = vadd.f32 %v4563, %v4598
  %v4616 = vadd.f32 %v4564, %v4602
  %v4617 = vadd.f32 %v4565, %v4598
  %v4618 = vadd.f32 %v4566, %v4602
  %v4619 = vadd.f32 %v4567, %v4598
  %v4620 = vadd.f32 %v4568, %v4602
  %v4621 = vadd.f32 %v4569, %v4598
  %v4622 = vadd.f32 %v4570, %v4602
  %v4623 = vadd.f32 %v4571, %v4598
  %v4624 = vadd.f32 %v4572, %v4602
  %v4625 = vadd.f32 %v4573, %v4598
  %v4626 = vadd.f32 %v4574, %v4602
  %v4627 = vadd.f32 %v4575, %v4598
  %v4628 = vadd.f32 %v4576, %v4602
  %v4629 = vadd.f32 %v4577, %v4598
  %v4630 = vadd.f32 %v4578, %v4602
  %v4631 = vadd.f32 %v4579, %v4598
  %v4632 = vadd.f32 %v4580, %v4602
  %v4633 = vadd.f32 %v4581, %v4598
  %v4634 = vadd.f32 %v4582, %v4602
  %v4635 = vadd.f32 %v4583, %v4598
  %v4636 = vadd.f32 %v4584, %v4602
  %v4637 = vadd.f32 %v4585, %v4598
  %v4638 = vadd.f32 %v4586, %v4602
  %v4639 = vadd.f32 %v4587, %v4598
  %v4640 = vadd.f32 %v4588, %v4602
  %v4641 = vadd.f32 %v4589, %v4598
  %v4642 = vadd.f32 %v4590, %v4602
  %v4643 = vadd.f32 %v4591, %v4598
  %v4644 = vadd.f32 %v4592, %v4602
  %v4645 = vtanh.pop %v4605
  %v4646 = vtanh.pop %v4606
  %v4647 = vtanh.pop %v4607
  %v4648 = vtanh.pop %v4608
  %v4649 = vtanh.pop %v4609
  %v4650 = vtanh.pop %v4610
  %v4651 = vtanh.pop %v4611
  %v4652 = vtanh.pop %v4612
  %v4653 = vtanh.pop %v4613
  %v4654 = vtanh.pop %v4614
  %v4655 = vtanh.pop %v4615
  %v4656 = vtanh.pop %v4616
  %v4657 = vtanh.pop %v4617
  %v4658 = vtanh.pop %v4618
  %v4659 = vtanh.pop %v4619
  %v4660 = vtanh.pop %v4620
  %v4661 = vtanh.pop %v4621
  %v4662 = vtanh.pop %v4622
  %v4663 = vtanh.pop %v4623
  %v4664 = vtanh.pop %v4624
  %v4665 = vtanh.pop %v4625
  %v4666 = vtanh.pop %v4626
  %v4667 = vtanh.pop %v4627
  %v4668 = vtanh.pop %v4628
  %v4669 = vtanh.pop %v4629
  %v4670 = vtanh.pop %v4630
  %v4671 = vtanh.pop %v4631
  %v4672 = vtanh.pop %v4632
  %v4673 = vtanh.pop %v4633
  %v4674 = vtanh.pop %v4634
  %v4675 = vtanh.pop %v4635
  %v4676 = vtanh.pop %v4636
  %v4677 = vtanh.pop %v4637
  %v4678 = vtanh.pop %v4638
  %v4679 = vtanh.pop %v4639
  %v4680 = vtanh.pop %v4640
  %v4681 = vtanh.pop %v4641
  %v4682 = vtanh.pop %v4642
  %v4683 = vtanh.pop %v4643
  %v4684 = vtanh.pop %v4644
  %v4685 = vadd.f32 %v4645, %v4649
  %v4686 = vadd.f32 %v4646, %v4650
  %v4687 = vadd.f32 %v4647, %v4651
  %v4688 = vadd.f32 %v4648, %v4652
  %v4689 = vpack.c.bf16 %v4687, %v4685
  %v4690 = vpack.c.bf16 %v4688, %v4686
  %v4691 = vld [vmem:[%s5] sm:$0xf]
  %v4692 = vld [vmem:[%s5 + $0x4] sm:$0xf]
  %v4693 = vld [vmem:[%s5 + $0x8] sm:$0xf]
  %v4694 = vld [vmem:[%s5 + $0xc] sm:$0xf]
  %v4695 = vld [vmem:[%s5 + $0x10] sm:$0xf]
  %v4696 = vld [vmem:[%s5 + $0x14] sm:$0xf]
  %v4697 = vld [vmem:[%s5 + $0x18] sm:$0xf]
  %v4698 = vld [vmem:[%s5 + $0x1c] sm:$0xf]
  %v4699 = vld [vmem:[%s5 + $0x20] sm:$0xf]
  %v4700 = vld [vmem:[%s5 + $0x24] sm:$0xf]
  %v4701 = vld [vmem:[%s5 + $0x28] sm:$0xf]
  %v4702 = vld [vmem:[%s5 + $0x2c] sm:$0xf]
  %v4703 = vld [vmem:[%s5 + $0x30] sm:$0xf]
  %v4704 = vld [vmem:[%s5 + $0x34] sm:$0xf]
  %v4705 = vld [vmem:[%s5 + $0x38] sm:$0xf]
  %v4706 = vld [vmem:[%s5 + $0x3c] sm:$0xf]
  %v4707 = vld [vmem:[%s5 + $0x40] sm:$0xf]
  %v4708 = vld [vmem:[%s5 + $0x44] sm:$0xf]
  %v4709 = vld [vmem:[%s5 + $0x48] sm:$0xf]
  %v4710 = vld [vmem:[%s5 + $0x4c] sm:$0xf]
  %v4711 = vadd.f32 %v4653, %v4657
  %v4712 = vadd.f32 %v4654, %v4658
  %v4713 = vadd.f32 %v4655, %v4659
  %v4714 = vadd.f32 %v4656, %v4660
  %v4715 = vpack.c.bf16 %v4713, %v4711
  %v4716 = vpack.c.bf16 %v4714, %v4712
  %s4717 = scalar_lea.vmem %s5, 80
  %v4718 = vld [vmem:[%s4717] sm:$0xf]
  %v4719 = vld [vmem:[%s4717 + $0x4] sm:$0xf]
  %v4720 = vld [vmem:[%s4717 + $0x8] sm:$0xf]
  %v4721 = vld [vmem:[%s4717 + $0xc] sm:$0xf]
  %v4722 = vld [vmem:[%s4717 + $0x10] sm:$0xf]
  %v4723 = vld [vmem:[%s4717 + $0x14] sm:$0xf]
  %v4724 = vld [vmem:[%s4717 + $0x18] sm:$0xf]
  %v4725 = vld [vmem:[%s4717 + $0x1c] sm:$0xf]
  %v4726 = vld [vmem:[%s4717 + $0x20] sm:$0xf]
  %v4727 = vld [vmem:[%s4717 + $0x24] sm:$0xf]
  %v4728 = vld [vmem:[%s4717 + $0x28] sm:$0xf]
  %v4729 = vld [vmem:[%s4717 + $0x2c] sm:$0xf]
  %v4730 = vld [vmem:[%s4717 + $0x30] sm:$0xf]
  %v4731 = vld [vmem:[%s4717 + $0x34] sm:$0xf]
  %v4732 = vld [vmem:[%s4717 + $0x38] sm:$0xf]
  %v4733 = vld [vmem:[%s4717 + $0x3c] sm:$0xf]
  %v4734 = vld [vmem:[%s4717 + $0x40] sm:$0xf]
  %v4735 = vld [vmem:[%s4717 + $0x44] sm:$0xf]
  %v4736 = vld [vmem:[%s4717 + $0x48] sm:$0xf]
  %v4737 = vld [vmem:[%s4717 + $0x4c] sm:$0xf]
  %v4758 = vunpack.c.l.b16 %v4718
  %v4759 = vunpack.c.l.b16 %v4719
  %v4760 = vunpack.c.l.b16 %v4720
  %v4761 = vunpack.c.l.b16 %v4721
  %v4762 = vunpack.c.l.b16 %v4722
  %v4763 = vunpack.c.l.b16 %v4723
  %v4764 = vunpack.c.l.b16 %v4724
  %v4765 = vunpack.c.l.b16 %v4725
  %v4766 = vunpack.c.l.b16 %v4726
  %v4767 = vunpack.c.l.b16 %v4727
  %v4768 = vunpack.c.l.b16 %v4728
  %v4769 = vunpack.c.l.b16 %v4729
  %v4770 = vunpack.c.l.b16 %v4730
  %v4771 = vunpack.c.l.b16 %v4731
  %v4772 = vunpack.c.l.b16 %v4732
  %v4773 = vunpack.c.l.b16 %v4733
  %v4774 = vunpack.c.l.b16 %v4734
  %v4775 = vunpack.c.l.b16 %v4735
  %v4776 = vunpack.c.l.b16 %v4736
  %v4777 = vunpack.c.l.b16 %v4737
  %v4778 = vpack.c.b16 %v4759, %v4758
  %v4779 = vpack.c.b16 %v4761, %v4760
  %v4780 = vpack.c.b16 %v4763, %v4762
  %v4781 = vpack.c.b16 %v4765, %v4764
  %v4782 = vpack.c.b16 %v4767, %v4766
  %v4783 = vpack.c.b16 %v4769, %v4768
  %v4784 = vpack.c.b16 %v4771, %v4770
  %v4785 = vpack.c.b16 %v4773, %v4772
  %v4786 = vpack.c.b16 %v4775, %v4774
  %v4787 = vpack.c.b16 %v4777, %v4776
  %v4799 = vsel %vm280, %v4716, 0
  %4801 = vmatprep.subr.bf16.mxu0 0
  %4802 = vmatpush1.bf16.msra.mxu0 %v4785
  %4803 = vmatprep.subr.bf16.mxu0 0
  %4804 = vmatpush1.bf16.msra.mxu0 %v4784
  %4805 = vmatprep.subr.bf16.mxu0 0
  %4806 = vmatpush1.bf16.msra.mxu0 %v4783
  %4807 = vmatprep.subr.bf16.mxu0 0
  %4808 = vmatpush1.bf16.msra.mxu0 %v4782
  %4809 = vmatprep.subr.bf16.mxu0 0
  %4810 = vmatpush1.bf16.msra.mxu0 %v4781
  %4811 = vmatprep.subr.bf16.mxu0 0
  %4812 = vmatpush1.bf16.msra.mxu0 %v4780
  %4813 = vmatprep.subr.bf16.mxu0 0
  %4814 = vmatpush1.bf16.msra.mxu0 %v4779
  %4815 = vmatprep.subr.bf16.mxu0 0
  %4816 = vmatpush1.bf16.msra.mxu0 %v4778
  %4817 = vmatprep.subr.bf16.mxu0 0
  %4818 = vmatpush2.bf16.msra.mxu0 0
  %4819 = vmatprep.subr.bf16.mxu0 0
  %4820 = vmatpush2.bf16.msra.mxu0 0
  %4821 = vmatprep.subr.bf16.mxu0 0
  %4822 = vmatpush2.bf16.msra.mxu0 0
  %4823 = vmatprep.subr.bf16.mxu0 0
  %4824 = vmatpush2.bf16.msra.mxu0 0
  %4825 = vmatprep.subr.bf16.mxu0 0
  %4826 = vmatpush2.bf16.msra.mxu0 0
  %4827 = vmatprep.subr.bf16.mxu0 0
  %4828 = vmatpush2.bf16.msra.mxu0 0
  %4829 = vmatprep.subr.bf16.mxu0 0
  %4830 = vmatpush2.bf16.msra.mxu0 %v4787
  %4831 = vmatprep.subr.bf16.mxu0 0
  %4832 = vmatpush2.bf16.msra.mxu0 %v4786
  %4833 = vmatprep.mubr.bf16.mxu0 %v4799
  %4834 = vmatmul.mubr.bf16.gmra.mxu0 %v4715
  %v4835 = vpop.f32.mrf.mxu0
  %v4836 = vadd.f32 0.0, %v4835
  %v4837 = vpop.f32.mrf.mxu0
  %v4838 = vpop.f32.mrf.mxu0
  %v4839 = vadd.f32 0.0, %v4838
  %v4840 = vpop.f32.mrf.mxu0
  %4841 = vdwg.mxu0
  %v4862 = vunpack.c.l.b16 %v4691
  %v4863 = vunpack.c.l.b16 %v4692
  %v4864 = vunpack.c.l.b16 %v4693
  %v4865 = vunpack.c.l.b16 %v4694
  %v4866 = vunpack.c.l.b16 %v4695
  %v4867 = vunpack.c.l.b16 %v4696
  %v4868 = vunpack.c.l.b16 %v4697
  %v4869 = vunpack.c.l.b16 %v4698
  %v4870 = vunpack.c.l.b16 %v4699
  %v4871 = vunpack.c.l.b16 %v4700
  %v4872 = vunpack.c.l.b16 %v4701
  %v4873 = vunpack.c.l.b16 %v4702
  %v4874 = vunpack.c.l.b16 %v4703
  %v4875 = vunpack.c.l.b16 %v4704
  %v4876 = vunpack.c.l.b16 %v4705
  %v4877 = vunpack.c.l.b16 %v4706
  %v4878 = vunpack.c.l.b16 %v4707
  %v4879 = vunpack.c.l.b16 %v4708
  %v4880 = vunpack.c.l.b16 %v4709
  %v4881 = vunpack.c.l.b16 %v4710
  %v4882 = vpack.c.b16 %v4863, %v4862
  %v4883 = vpack.c.b16 %v4865, %v4864
  %v4884 = vpack.c.b16 %v4867, %v4866
  %v4885 = vpack.c.b16 %v4869, %v4868
  %v4886 = vpack.c.b16 %v4871, %v4870
  %v4887 = vpack.c.b16 %v4873, %v4872
  %v4888 = vpack.c.b16 %v4875, %v4874
  %v4889 = vpack.c.b16 %v4877, %v4876
  %v4890 = vpack.c.b16 %v4879, %v4878
  %v4891 = vpack.c.b16 %v4881, %v4880
  %v4903 = vsel %vm280, %v4690, 0
  %4905 = vmatprep.subr.bf16.mxu0 0
  %4906 = vmatpush1.bf16.msra.mxu0 %v4889
  %4907 = vmatprep.subr.bf16.mxu0 0
  %4908 = vmatpush1.bf16.msra.mxu0 %v4888
  %4909 = vmatprep.subr.bf16.mxu0 0
  %4910 = vmatpush1.bf16.msra.mxu0 %v4887
  %4911 = vmatprep.subr.bf16.mxu0 0
  %4912 = vmatpush1.bf16.msra.mxu0 %v4886
  %4913 = vmatprep.subr.bf16.mxu0 0
  %4914 = vmatpush1.bf16.msra.mxu0 %v4885
  %4915 = vmatprep.subr.bf16.mxu0 0
  %4916 = vmatpush1.bf16.msra.mxu0 %v4884
  %4917 = vmatprep.subr.bf16.mxu0 0
  %4918 = vmatpush1.bf16.msra.mxu0 %v4883
  %4919 = vmatprep.subr.bf16.mxu0 0
  %4920 = vmatpush1.bf16.msra.mxu0 %v4882
  %4921 = vmatprep.subr.bf16.mxu0 0
  %4922 = vmatpush2.bf16.msra.mxu0 0
  %4923 = vmatprep.subr.bf16.mxu0 0
  %4924 = vmatpush2.bf16.msra.mxu0 0
  %4925 = vmatprep.subr.bf16.mxu0 0
  %4926 = vmatpush2.bf16.msra.mxu0 0
  %4927 = vmatprep.subr.bf16.mxu0 0
  %4928 = vmatpush2.bf16.msra.mxu0 0
  %4929 = vmatprep.subr.bf16.mxu0 0
  %4930 = vmatpush2.bf16.msra.mxu0 0
  %4931 = vmatprep.subr.bf16.mxu0 0
  %4932 = vmatpush2.bf16.msra.mxu0 0
  %4933 = vmatprep.subr.bf16.mxu0 0
  %4934 = vmatpush2.bf16.msra.mxu0 %v4891
  %4935 = vmatprep.subr.bf16.mxu0 0
  %4936 = vmatpush2.bf16.msra.mxu0 %v4890
  %4937 = vmatprep.mubr.bf16.mxu0 %v4903
  %4938 = vmatmul.mubr.bf16.gmra.mxu0 %v4689
  %v4939 = vpop.f32.mrf.mxu0
  %v4940 = vadd.f32 %v4836, %v4939
  %v4941 = vpop.f32.mrf.mxu0
  %v4942 = vpop.f32.mrf.mxu0
  %v4943 = vadd.f32 %v4839, %v4942
  %v4944 = vpop.f32.mrf.mxu0
  %4945 = vdwg.mxu0
  %v4946 = vadd.f32 %v4661, %v4665
  %v4947 = vadd.f32 %v4662, %v4666
  %v4948 = vadd.f32 %v4663, %v4667
  %v4949 = vadd.f32 %v4664, %v4668
  %v4950 = vpack.c.bf16 %v4948, %v4946
  %v4951 = vpack.c.bf16 %v4949, %v4947
  %s4952 = scalar_lea.vmem %s5, 160
  %v4953 = vld [vmem:[%s4952] sm:$0xf]
  %v4954 = vld [vmem:[%s4952 + $0x4] sm:$0xf]
  %v4955 = vld [vmem:[%s4952 + $0x8] sm:$0xf]
  %v4956 = vld [vmem:[%s4952 + $0xc] sm:$0xf]
  %v4957 = vld [vmem:[%s4952 + $0x10] sm:$0xf]
  %v4958 = vld [vmem:[%s4952 + $0x14] sm:$0xf]
  %v4959 = vld [vmem:[%s4952 + $0x18] sm:$0xf]
  %v4960 = vld [vmem:[%s4952 + $0x1c] sm:$0xf]
  %v4961 = vld [vmem:[%s4952 + $0x20] sm:$0xf]
  %v4962 = vld [vmem:[%s4952 + $0x24] sm:$0xf]
  %v4963 = vld [vmem:[%s4952 + $0x28] sm:$0xf]
  %v4964 = vld [vmem:[%s4952 + $0x2c] sm:$0xf]
  %v4965 = vld [vmem:[%s4952 + $0x30] sm:$0xf]
  %v4966 = vld [vmem:[%s4952 + $0x34] sm:$0xf]
  %v4967 = vld [vmem:[%s4952 + $0x38] sm:$0xf]
  %v4968 = vld [vmem:[%s4952 + $0x3c] sm:$0xf]
  %v4969 = vld [vmem:[%s4952 + $0x40] sm:$0xf]
  %v4970 = vld [vmem:[%s4952 + $0x44] sm:$0xf]
  %v4971 = vld [vmem:[%s4952 + $0x48] sm:$0xf]
  %v4972 = vld [vmem:[%s4952 + $0x4c] sm:$0xf]
  %v4993 = vunpack.c.l.b16 %v4953
  %v4994 = vunpack.c.l.b16 %v4954
  %v4995 = vunpack.c.l.b16 %v4955
  %v4996 = vunpack.c.l.b16 %v4956
  %v4997 = vunpack.c.l.b16 %v4957
  %v4998 = vunpack.c.l.b16 %v4958
  %v4999 = vunpack.c.l.b16 %v4959
  %v5000 = vunpack.c.l.b16 %v4960
  %v5001 = vunpack.c.l.b16 %v4961
  %v5002 = vunpack.c.l.b16 %v4962
  %v5003 = vunpack.c.l.b16 %v4963
  %v5004 = vunpack.c.l.b16 %v4964
  %v5005 = vunpack.c.l.b16 %v4965
  %v5006 = vunpack.c.l.b16 %v4966
  %v5007 = vunpack.c.l.b16 %v4967
  %v5008 = vunpack.c.l.b16 %v4968
  %v5009 = vunpack.c.l.b16 %v4969
  %v5010 = vunpack.c.l.b16 %v4970
  %v5011 = vunpack.c.l.b16 %v4971
  %v5012 = vunpack.c.l.b16 %v4972
  %v5013 = vpack.c.b16 %v4994, %v4993
  %v5014 = vpack.c.b16 %v4996, %v4995
  %v5015 = vpack.c.b16 %v4998, %v4997
  %v5016 = vpack.c.b16 %v5000, %v4999
  %v5017 = vpack.c.b16 %v5002, %v5001
  %v5018 = vpack.c.b16 %v5004, %v5003
  %v5019 = vpack.c.b16 %v5006, %v5005
  %v5020 = vpack.c.b16 %v5008, %v5007
  %v5021 = vpack.c.b16 %v5010, %v5009
  %v5022 = vpack.c.b16 %v5012, %v5011
  %v5034 = vsel %vm280, %v4951, 0
  %5036 = vmatprep.subr.bf16.mxu0 0
  %5037 = vmatpush1.bf16.msra.mxu0 %v5020
  %5038 = vmatprep.subr.bf16.mxu0 0
  %5039 = vmatpush1.bf16.msra.mxu0 %v5019
  %5040 = vmatprep.subr.bf16.mxu0 0
  %5041 = vmatpush1.bf16.msra.mxu0 %v5018
  %5042 = vmatprep.subr.bf16.mxu0 0
  %5043 = vmatpush1.bf16.msra.mxu0 %v5017
  %5044 = vmatprep.subr.bf16.mxu0 0
  %5045 = vmatpush1.bf16.msra.mxu0 %v5016
  %5046 = vmatprep.subr.bf16.mxu0 0
  %5047 = vmatpush1.bf16.msra.mxu0 %v5015
  %5048 = vmatprep.subr.bf16.mxu0 0
  %5049 = vmatpush1.bf16.msra.mxu0 %v5014
  %5050 = vmatprep.subr.bf16.mxu0 0
  %5051 = vmatpush1.bf16.msra.mxu0 %v5013
  %5052 = vmatprep.subr.bf16.mxu0 0
  %5053 = vmatpush2.bf16.msra.mxu0 0
  %5054 = vmatprep.subr.bf16.mxu0 0
  %5055 = vmatpush2.bf16.msra.mxu0 0
  %5056 = vmatprep.subr.bf16.mxu0 0
  %5057 = vmatpush2.bf16.msra.mxu0 0
  %5058 = vmatprep.subr.bf16.mxu0 0
  %5059 = vmatpush2.bf16.msra.mxu0 0
  %5060 = vmatprep.subr.bf16.mxu0 0
  %5061 = vmatpush2.bf16.msra.mxu0 0
  %5062 = vmatprep.subr.bf16.mxu0 0
  %5063 = vmatpush2.bf16.msra.mxu0 0
  %5064 = vmatprep.subr.bf16.mxu0 0
  %5065 = vmatpush2.bf16.msra.mxu0 %v5022
  %5066 = vmatprep.subr.bf16.mxu0 0
  %5067 = vmatpush2.bf16.msra.mxu0 %v5021
  %5068 = vmatprep.mubr.bf16.mxu0 %v5034
  %5069 = vmatmul.mubr.bf16.gmra.mxu0 %v4950
  %v5070 = vpop.f32.mrf.mxu0
  %v5071 = vadd.f32 0.0, %v5070
  %v5072 = vpop.f32.mrf.mxu0
  %v5073 = vpop.f32.mrf.mxu0
  %v5074 = vadd.f32 0.0, %v5073
  %v5075 = vpop.f32.mrf.mxu0
  %5076 = vdwg.mxu0
  %v5077 = vadd.f32 %v4940, %v5071
  %v5078 = vadd.f32 %v4943, %v5074
  %v5079 = vadd.f32 %v4669, %v4673
  %v5080 = vadd.f32 %v4670, %v4674
  %v5081 = vadd.f32 %v4671, %v4675
  %v5082 = vadd.f32 %v4672, %v4676
  %v5083 = vpack.c.bf16 %v5081, %v5079
  %v5084 = vpack.c.bf16 %v5082, %v5080
  %s5085 = scalar_lea.vmem %s5, 240
  %v5086 = vld [vmem:[%s5085] sm:$0xf]
  %v5087 = vld [vmem:[%s5085 + $0x4] sm:$0xf]
  %v5088 = vld [vmem:[%s5085 + $0x8] sm:$0xf]
  %v5089 = vld [vmem:[%s5085 + $0xc] sm:$0xf]
  %v5090 = vld [vmem:[%s5085 + $0x10] sm:$0xf]
  %v5091 = vld [vmem:[%s5085 + $0x14] sm:$0xf]
  %v5092 = vld [vmem:[%s5085 + $0x18] sm:$0xf]
  %v5093 = vld [vmem:[%s5085 + $0x1c] sm:$0xf]
  %v5094 = vld [vmem:[%s5085 + $0x20] sm:$0xf]
  %v5095 = vld [vmem:[%s5085 + $0x24] sm:$0xf]
  %v5096 = vld [vmem:[%s5085 + $0x28] sm:$0xf]
  %v5097 = vld [vmem:[%s5085 + $0x2c] sm:$0xf]
  %v5098 = vld [vmem:[%s5085 + $0x30] sm:$0xf]
  %v5099 = vld [vmem:[%s5085 + $0x34] sm:$0xf]
  %v5100 = vld [vmem:[%s5085 + $0x38] sm:$0xf]
  %v5101 = vld [vmem:[%s5085 + $0x3c] sm:$0xf]
  %v5102 = vld [vmem:[%s5085 + $0x40] sm:$0xf]
  %v5103 = vld [vmem:[%s5085 + $0x44] sm:$0xf]
  %v5104 = vld [vmem:[%s5085 + $0x48] sm:$0xf]
  %v5105 = vld [vmem:[%s5085 + $0x4c] sm:$0xf]
  %v5126 = vunpack.c.l.b16 %v5086
  %v5127 = vunpack.c.l.b16 %v5087
  %v5128 = vunpack.c.l.b16 %v5088
  %v5129 = vunpack.c.l.b16 %v5089
  %v5130 = vunpack.c.l.b16 %v5090
  %v5131 = vunpack.c.l.b16 %v5091
  %v5132 = vunpack.c.l.b16 %v5092
  %v5133 = vunpack.c.l.b16 %v5093
  %v5134 = vunpack.c.l.b16 %v5094
  %v5135 = vunpack.c.l.b16 %v5095
  %v5136 = vunpack.c.l.b16 %v5096
  %v5137 = vunpack.c.l.b16 %v5097
  %v5138 = vunpack.c.l.b16 %v5098
  %v5139 = vunpack.c.l.b16 %v5099
  %v5140 = vunpack.c.l.b16 %v5100
  %v5141 = vunpack.c.l.b16 %v5101
  %v5142 = vunpack.c.l.b16 %v5102
  %v5143 = vunpack.c.l.b16 %v5103
  %v5144 = vunpack.c.l.b16 %v5104
  %v5145 = vunpack.c.l.b16 %v5105
  %v5146 = vpack.c.b16 %v5127, %v5126
  %v5147 = vpack.c.b16 %v5129, %v5128
  %v5148 = vpack.c.b16 %v5131, %v5130
  %v5149 = vpack.c.b16 %v5133, %v5132
  %v5150 = vpack.c.b16 %v5135, %v5134
  %v5151 = vpack.c.b16 %v5137, %v5136
  %v5152 = vpack.c.b16 %v5139, %v5138
  %v5153 = vpack.c.b16 %v5141, %v5140
  %v5154 = vpack.c.b16 %v5143, %v5142
  %v5155 = vpack.c.b16 %v5145, %v5144
  %v5167 = vsel %vm280, %v5084, 0
  %5169 = vmatprep.subr.bf16.mxu0 0
  %5170 = vmatpush1.bf16.msra.mxu0 %v5153
  %5171 = vmatprep.subr.bf16.mxu0 0
  %5172 = vmatpush1.bf16.msra.mxu0 %v5152
  %5173 = vmatprep.subr.bf16.mxu0 0
  %5174 = vmatpush1.bf16.msra.mxu0 %v5151
  %5175 = vmatprep.subr.bf16.mxu0 0
  %5176 = vmatpush1.bf16.msra.mxu0 %v5150
  %5177 = vmatprep.subr.bf16.mxu0 0
  %5178 = vmatpush1.bf16.msra.mxu0 %v5149
  %5179 = vmatprep.subr.bf16.mxu0 0
  %5180 = vmatpush1.bf16.msra.mxu0 %v5148
  %5181 = vmatprep.subr.bf16.mxu0 0
  %5182 = vmatpush1.bf16.msra.mxu0 %v5147
  %5183 = vmatprep.subr.bf16.mxu0 0
  %5184 = vmatpush1.bf16.msra.mxu0 %v5146
  %5185 = vmatprep.subr.bf16.mxu0 0
  %5186 = vmatpush2.bf16.msra.mxu0 0
  %5187 = vmatprep.subr.bf16.mxu0 0
  %5188 = vmatpush2.bf16.msra.mxu0 0
  %5189 = vmatprep.subr.bf16.mxu0 0
  %5190 = vmatpush2.bf16.msra.mxu0 0
  %5191 = vmatprep.subr.bf16.mxu0 0
  %5192 = vmatpush2.bf16.msra.mxu0 0
  %5193 = vmatprep.subr.bf16.mxu0 0
  %5194 = vmatpush2.bf16.msra.mxu0 0
  %5195 = vmatprep.subr.bf16.mxu0 0
  %5196 = vmatpush2.bf16.msra.mxu0 0
  %5197 = vmatprep.subr.bf16.mxu0 0
  %5198 = vmatpush2.bf16.msra.mxu0 %v5155
  %5199 = vmatprep.subr.bf16.mxu0 0
  %5200 = vmatpush2.bf16.msra.mxu0 %v5154
  %5201 = vmatprep.mubr.bf16.mxu0 %v5167
  %5202 = vmatmul.mubr.bf16.gmra.mxu0 %v5083
  %v5203 = vpop.f32.mrf.mxu0
  %v5204 = vadd.f32 0.0, %v5203
  %v5205 = vpop.f32.mrf.mxu0
  %v5206 = vpop.f32.mrf.mxu0
  %v5207 = vadd.f32 0.0, %v5206
  %v5208 = vpop.f32.mrf.mxu0
  %5209 = vdwg.mxu0
  %v5210 = vadd.f32 %v5077, %v5204
  %v5211 = vadd.f32 %v5078, %v5207
  %v5212 = vadd.f32 %v4677, %v4681
  %v5213 = vadd.f32 %v4678, %v4682
  %v5214 = vadd.f32 %v4679, %v4683
  %v5215 = vadd.f32 %v4680, %v4684
  %v5216 = vpack.c.bf16 %v5214, %v5212
  %v5217 = vpack.c.bf16 %v5215, %v5213
  %s5218 = scalar_lea.vmem %s5, 320
  %v5219 = vld [vmem:[%s5218] sm:$0xf]
  %v5220 = vld [vmem:[%s5218 + $0x4] sm:$0xf]
  %v5221 = vld [vmem:[%s5218 + $0x8] sm:$0xf]
  %v5222 = vld [vmem:[%s5218 + $0xc] sm:$0xf]
  %v5223 = vld [vmem:[%s5218 + $0x10] sm:$0xf]
  %v5224 = vld [vmem:[%s5218 + $0x14] sm:$0xf]
  %v5225 = vld [vmem:[%s5218 + $0x18] sm:$0xf]
  %v5226 = vld [vmem:[%s5218 + $0x1c] sm:$0xf]
  %v5227 = vld [vmem:[%s5218 + $0x20] sm:$0xf]
  %v5228 = vld [vmem:[%s5218 + $0x24] sm:$0xf]
  %v5229 = vld [vmem:[%s5218 + $0x28] sm:$0xf]
  %v5230 = vld [vmem:[%s5218 + $0x2c] sm:$0xf]
  %v5231 = vld [vmem:[%s5218 + $0x30] sm:$0xf]
  %v5232 = vld [vmem:[%s5218 + $0x34] sm:$0xf]
  %v5233 = vld [vmem:[%s5218 + $0x38] sm:$0xf]
  %v5234 = vld [vmem:[%s5218 + $0x3c] sm:$0xf]
  %v5235 = vld [vmem:[%s5218 + $0x40] sm:$0xf]
  %v5236 = vld [vmem:[%s5218 + $0x44] sm:$0xf]
  %v5237 = vld [vmem:[%s5218 + $0x48] sm:$0xf]
  %v5238 = vld [vmem:[%s5218 + $0x4c] sm:$0xf]
  %v5259 = vunpack.c.l.b16 %v5219
  %v5260 = vunpack.c.l.b16 %v5220
  %v5261 = vunpack.c.l.b16 %v5221
  %v5262 = vunpack.c.l.b16 %v5222
  %v5263 = vunpack.c.l.b16 %v5223
  %v5264 = vunpack.c.l.b16 %v5224
  %v5265 = vunpack.c.l.b16 %v5225
  %v5266 = vunpack.c.l.b16 %v5226
  %v5267 = vunpack.c.l.b16 %v5227
  %v5268 = vunpack.c.l.b16 %v5228
  %v5269 = vunpack.c.l.b16 %v5229
  %v5270 = vunpack.c.l.b16 %v5230
  %v5271 = vunpack.c.l.b16 %v5231
  %v5272 = vunpack.c.l.b16 %v5232
  %v5273 = vunpack.c.l.b16 %v5233
  %v5274 = vunpack.c.l.b16 %v5234
  %v5275 = vunpack.c.l.b16 %v5235
  %v5276 = vunpack.c.l.b16 %v5236
  %v5277 = vunpack.c.l.b16 %v5237
  %v5278 = vunpack.c.l.b16 %v5238
  %v5279 = vpack.c.b16 %v5260, %v5259
  %v5280 = vpack.c.b16 %v5262, %v5261
  %v5281 = vpack.c.b16 %v5264, %v5263
  %v5282 = vpack.c.b16 %v5266, %v5265
  %v5283 = vpack.c.b16 %v5268, %v5267
  %v5284 = vpack.c.b16 %v5270, %v5269
  %v5285 = vpack.c.b16 %v5272, %v5271
  %v5286 = vpack.c.b16 %v5274, %v5273
  %v5287 = vpack.c.b16 %v5276, %v5275
  %v5288 = vpack.c.b16 %v5278, %v5277
  %v5300 = vsel %vm280, %v5217, 0
  %5302 = vmatprep.subr.bf16.mxu0 0
  %5303 = vmatpush1.bf16.msra.mxu0 %v5286
  %5304 = vmatprep.subr.bf16.mxu0 0
  %5305 = vmatpush1.bf16.msra.mxu0 %v5285
  %5306 = vmatprep.subr.bf16.mxu0 0
  %5307 = vmatpush1.bf16.msra.mxu0 %v5284
  %5308 = vmatprep.subr.bf16.mxu0 0
  %5309 = vmatpush1.bf16.msra.mxu0 %v5283
  %5310 = vmatprep.subr.bf16.mxu0 0
  %5311 = vmatpush1.bf16.msra.mxu0 %v5282
  %5312 = vmatprep.subr.bf16.mxu0 0
  %5313 = vmatpush1.bf16.msra.mxu0 %v5281
  %5314 = vmatprep.subr.bf16.mxu0 0
  %5315 = vmatpush1.bf16.msra.mxu0 %v5280
  %5316 = vmatprep.subr.bf16.mxu0 0
  %5317 = vmatpush1.bf16.msra.mxu0 %v5279
  %5318 = vmatprep.subr.bf16.mxu0 0
  %5319 = vmatpush2.bf16.msra.mxu0 0
  %5320 = vmatprep.subr.bf16.mxu0 0
  %5321 = vmatpush2.bf16.msra.mxu0 0
  %5322 = vmatprep.subr.bf16.mxu0 0
  %5323 = vmatpush2.bf16.msra.mxu0 0
  %5324 = vmatprep.subr.bf16.mxu0 0
  %5325 = vmatpush2.bf16.msra.mxu0 0
  %5326 = vmatprep.subr.bf16.mxu0 0
  %5327 = vmatpush2.bf16.msra.mxu0 0
  %5328 = vmatprep.subr.bf16.mxu0 0
  %5329 = vmatpush2.bf16.msra.mxu0 0
  %5330 = vmatprep.subr.bf16.mxu0 0
  %5331 = vmatpush2.bf16.msra.mxu0 %v5288
  %5332 = vmatprep.subr.bf16.mxu0 0
  %5333 = vmatpush2.bf16.msra.mxu0 %v5287
  %5334 = vmatprep.mubr.bf16.mxu0 %v5300
  %5335 = vmatmul.mubr.bf16.gmra.mxu0 %v5216
  %v5336 = vpop.f32.mrf.mxu0
  %v5337 = vadd.f32 0.0, %v5336
  %v5338 = vpop.f32.mrf.mxu0
  %v5339 = vpop.f32.mrf.mxu0
  %v5340 = vadd.f32 0.0, %v5339
  %v5341 = vpop.f32.mrf.mxu0
  %5342 = vdwg.mxu0
  %v5343 = vadd.f32 %v5210, %v5337
  %v5344 = vadd.f32 %v5211, %v5340
  %v5345 = vld [vmem:[%s6] sm:$0x1]
  %v5347 = vlaneseq
  %v5348 = vshrl.u32 %v5347, 7
  %v5349 = vsub.s32 0, %v5348
  %v5350 = vrot.slane %v5345, %v5349
  %v5352 = vadd.f32 %v5343, %v5350
  %v5353 = vadd.f32 %v5344, %v5350
  %v5354 = vtanh.pop %v5352
  %v5355 = vtanh.pop %v5353
  %v5356 = vpack.c.bf16 %v5355, %v5354
  %v5357 = vld [vmem:[%s7] sm:$0xf]
  %v5358 = vld [vmem:[%s7 + $0x4] sm:$0xf]
  %v5359 = vld [vmem:[%s7 + $0x8] sm:$0xf]
  %v5360 = vld [vmem:[%s7 + $0xc] sm:$0xf]
  %v5361 = vld [vmem:[%s7 + $0x10] sm:$0xf]
  %v5362 = vld [vmem:[%s7 + $0x14] sm:$0xf]
  %v5363 = vld [vmem:[%s7 + $0x18] sm:$0xf]
  %v5364 = vld [vmem:[%s7 + $0x1c] sm:$0xf]
  %v5365 = vld [vmem:[%s7 + $0x20] sm:$0xf]
  %v5366 = vld [vmem:[%s7 + $0x24] sm:$0xf]
  %v5367 = vld [vmem:[%s7 + $0x28] sm:$0xf]
  %v5368 = vld [vmem:[%s7 + $0x2c] sm:$0xf]
  %v5369 = vld [vmem:[%s7 + $0x30] sm:$0xf]
  %v5370 = vld [vmem:[%s7 + $0x34] sm:$0xf]
  %v5371 = vld [vmem:[%s7 + $0x38] sm:$0xf]
  %v5372 = vld [vmem:[%s8] sm:$0x1]
  %v5374 = vlaneseq
  %v5375 = vshrl.u32 %v5374, 7
  %v5376 = vsub.s32 0, %v5375
  %v5377 = vrot.slane %v5372, %v5376
  %v5394 = vunpack.c.l.b16 %v5357
  %v5395 = vunpack.c.l.b16 %v5358
  %v5396 = vunpack.c.l.b16 %v5359
  %v5397 = vunpack.c.l.b16 %v5360
  %v5398 = vunpack.c.l.b16 %v5361
  %v5399 = vunpack.c.l.b16 %v5362
  %v5400 = vunpack.c.l.b16 %v5363
  %v5401 = vunpack.c.l.b16 %v5364
  %v5402 = vunpack.c.l.b16 %v5365
  %v5403 = vunpack.c.l.b16 %v5366
  %v5404 = vunpack.c.l.b16 %v5367
  %v5405 = vunpack.c.l.b16 %v5368
  %v5406 = vunpack.c.l.b16 %v5369
  %v5407 = vunpack.c.l.b16 %v5370
  %v5408 = vunpack.c.l.b16 %v5371
  %v5409 = vpack.c.b16 %v5395, %v5394
  %v5410 = vpack.c.b16 %v5397, %v5396
  %v5411 = vpack.c.b16 %v5399, %v5398
  %v5412 = vpack.c.b16 %v5401, %v5400
  %v5413 = vpack.c.b16 %v5403, %v5402
  %v5414 = vpack.c.b16 %v5405, %v5404
  %v5415 = vpack.c.b16 %v5407, %v5406
  %v5416 = vpack.c.b16 %v5408, %v5408
  %vm5424 = vcmask 982016
  %v5426 = vsel %vm5424, %v5356, 0
  %v5429 = vsel %vm2997, %v5416, 0
  %5431 = vmatprep.subr.bf16.mxu0 0
  %5432 = vmatpush1.bf16.msra.mxu0 %v5429
  %5433 = vmatprep.subr.bf16.mxu0 0
  %5434 = vmatpush1.bf16.msra.mxu0 %v5415
  %5435 = vmatprep.subr.bf16.mxu0 0
  %5436 = vmatpush1.bf16.msra.mxu0 %v5414
  %5437 = vmatprep.subr.bf16.mxu0 0
  %5438 = vmatpush1.bf16.msra.mxu0 %v5413
  %5439 = vmatprep.subr.bf16.mxu0 0
  %5440 = vmatpush1.bf16.msra.mxu0 %v5412
  %5441 = vmatprep.subr.bf16.mxu0 0
  %5442 = vmatpush1.bf16.msra.mxu0 %v5411
  %5443 = vmatprep.subr.bf16.mxu0 0
  %5444 = vmatpush1.bf16.msra.mxu0 %v5410
  %5445 = vmatprep.subr.bf16.mxu0 0
  %5446 = vmatpush1.bf16.msra.mxu0 %v5409
  %5447 = vmatprep.subr.bf16.mxu0 0
  %5448 = vmatpush2.bf16.msra.mxu0 0
  %5449 = vmatprep.subr.bf16.mxu0 0
  %5450 = vmatpush2.bf16.msra.mxu0 0
  %5451 = vmatprep.subr.bf16.mxu0 0
  %5452 = vmatpush2.bf16.msra.mxu0 0
  %5453 = vmatprep.subr.bf16.mxu0 0
  %5454 = vmatpush2.bf16.msra.mxu0 0
  %5455 = vmatprep.subr.bf16.mxu0 0
  %5456 = vmatpush2.bf16.msra.mxu0 0
  %5457 = vmatprep.subr.bf16.mxu0 0
  %5458 = vmatpush2.bf16.msra.mxu0 0
  %5459 = vmatprep.subr.bf16.mxu0 0
  %5460 = vmatpush2.bf16.msra.mxu0 0
  %5461 = vmatprep.subr.bf16.mxu0 0
  %5462 = vmatpush2.bf16.msra.mxu0 0
  %5463 = vmatprep.mubr.bf16.mxu0 0
  %5464 = vmatmul.mubr.bf16.gmra.mxu0 %v5426
  %v5465 = vpop.f32.mrf.mxu0
  %v5466 = vadd.f32 %v5377, %v5465
  %v5467 = vpop.f32.mrf.mxu0
  %v5468 = vpop.f32.mrf.mxu0
  %v5469 = vadd.f32 %v5377, %v5468
  %v5470 = vpop.f32.mrf.mxu0
  %5471 = vdwg.mxu0
  %vm5472 = vcmask 687104
  %v5473 = vsel %vm5472, %v5466, 0.0
  %5474 = vadd.xlane.f32.xlu0 %v5473
  %v5475 = vpop.xlane.xlu0 %5474
  %v5476 = vsel %vm5472, %v5469, 0.0
  %5477 = vadd.xlane.f32.xlu0 %v5476
  %v5478 = vpop.xlane.xlu0 %5477
  %v5479 = vrcp.pop 84.0
  %v5480 = vmul.f32 %v5475, %v5479
  %v5481 = vmul.f32 %v5478, %v5479
  %v5482 = vsub.f32 %v5466, %v5480
  %v5483 = vsub.f32 %v5469, %v5481
  %v5484 = vmul.f32 %v5482, %v5482
  %v5485 = vmul.f32 %v5483, %v5483
  %v5486 = vsel %vm5472, %v5484, 0.0
  %5487 = vadd.xlane.f32.xlu0 %v5486
  %v5488 = vpop.xlane.xlu0 %5487
  %v5489 = vsel %vm5472, %v5485, 0.0
  %5490 = vadd.xlane.f32.xlu0 %v5489
  %v5491 = vpop.xlane.xlu0 %5490
  %v5492 = vmul.f32 %v5488, %v5479
  %v5493 = vmul.f32 %v5491, %v5479
  %v5494 = vadd.f32 %v5492, 1e-05
  %v5495 = vadd.f32 %v5493, 1e-05
  %v5496 = vrsqrt.pop %v5494
  %v5497 = vrsqrt.pop %v5495
  %v5498 = vmul.f32 %v5482, %v5496
  %v5499 = vmul.f32 %v5483, %v5497
  %v5500 = vld [vmem:[%s9] sm:$0x1]
  %v5502 = vlaneseq
  %v5503 = vshrl.u32 %v5502, 7
  %v5504 = vsub.s32 0, %v5503
  %v5505 = vrot.slane %v5500, %v5504
  %v5507 = vmul.f32 %v5498, %v5505
  %v5508 = vmul.f32 %v5499, %v5505
  %v5509 = vld [vmem:[%s10] sm:$0x1]
  %v5511 = vlaneseq
  %v5512 = vshrl.u32 %v5511, 7
  %v5513 = vsub.s32 0, %v5512
  %v5514 = vrot.slane %v5509, %v5513
  %v5516 = vadd.f32 %v5507, %v5514
  %v5517 = vadd.f32 %v5508, %v5514
  %v5518 = vtanh.pop %v5516
  %v5519 = vtanh.pop %v5517
  %v5520 = vpack.c.bf16 %v5519, %v5518
  %v5521 = vld [vmem:[%s11] sm:$0xf]
  %v5522 = vld [vmem:[%s11 + $0x4] sm:$0xf]
  %v5523 = vld [vmem:[%s11 + $0x8] sm:$0xf]
  %v5524 = vld [vmem:[%s11 + $0xc] sm:$0xf]
  %v5525 = vld [vmem:[%s11 + $0x10] sm:$0xf]
  %v5526 = vld [vmem:[%s11 + $0x14] sm:$0xf]
  %v5527 = vld [vmem:[%s11 + $0x18] sm:$0xf]
  %v5528 = vld [vmem:[%s11 + $0x1c] sm:$0xf]
  %v5529 = vld [vmem:[%s11 + $0x20] sm:$0xf]
  %v5530 = vld [vmem:[%s11 + $0x24] sm:$0xf]
  %v5531 = vld [vmem:[%s11 + $0x28] sm:$0x3]
  %v5532 = vld [vmem:[%s12] sm:$0x1]
  %v5534 = vlaneseq
  %v5535 = vshrl.u32 %v5534, 7
  %v5536 = vsub.s32 0, %v5535
  %v5537 = vrot.slane %v5532, %v5536
  %v5550 = vunpack.c.l.b16 %v5521
  %v5551 = vunpack.c.l.b16 %v5522
  %v5552 = vunpack.c.l.b16 %v5523
  %v5553 = vunpack.c.l.b16 %v5524
  %v5554 = vunpack.c.l.b16 %v5525
  %v5555 = vunpack.c.l.b16 %v5526
  %v5556 = vunpack.c.l.b16 %v5527
  %v5557 = vunpack.c.l.b16 %v5528
  %v5558 = vunpack.c.l.b16 %v5529
  %v5559 = vunpack.c.l.b16 %v5530
  %v5560 = vunpack.c.l.b16 %v5531
  %v5561 = vpack.c.b16 %v5551, %v5550
  %v5562 = vpack.c.b16 %v5553, %v5552
  %v5563 = vpack.c.b16 %v5555, %v5554
  %v5564 = vpack.c.b16 %v5557, %v5556
  %v5565 = vpack.c.b16 %v5559, %v5558
  %v5566 = vpack.c.b16 %v5560, %v5560
  %v5573 = vsel %vm5472, %v5520, 0
  %vm5575 = vcmask 1041408
  %v5577 = vsel %vm5575, %v5566, 0
  %5579 = vmatprep.subr.bf16.mxu0 0
  %5580 = vmatpush1.bf16.msra.mxu0 0
  %5581 = vmatprep.subr.bf16.mxu0 0
  %5582 = vmatpush1.bf16.msra.mxu0 0
  %5583 = vmatprep.subr.bf16.mxu0 0
  %5584 = vmatpush1.bf16.msra.mxu0 %v5577
  %5585 = vmatprep.subr.bf16.mxu0 0
  %5586 = vmatpush1.bf16.msra.mxu0 %v5565
  %5587 = vmatprep.subr.bf16.mxu0 0
  %5588 = vmatpush1.bf16.msra.mxu0 %v5564
  %5589 = vmatprep.subr.bf16.mxu0 0
  %5590 = vmatpush1.bf16.msra.mxu0 %v5563
  %5591 = vmatprep.subr.bf16.mxu0 0
  %5592 = vmatpush1.bf16.msra.mxu0 %v5562
  %5593 = vmatprep.subr.bf16.mxu0 0
  %5594 = vmatpush1.bf16.msra.mxu0 %v5561
  %5595 = vmatprep.subr.bf16.mxu0 0
  %5596 = vmatpush2.bf16.msra.mxu0 0
  %5597 = vmatprep.subr.bf16.mxu0 0
  %5598 = vmatpush2.bf16.msra.mxu0 0
  %5599 = vmatprep.subr.bf16.mxu0 0
  %5600 = vmatpush2.bf16.msra.mxu0 0
  %5601 = vmatprep.subr.bf16.mxu0 0
  %5602 = vmatpush2.bf16.msra.mxu0 0
  %5603 = vmatprep.subr.bf16.mxu0 0
  %5604 = vmatpush2.bf16.msra.mxu0 0
  %5605 = vmatprep.subr.bf16.mxu0 0
  %5606 = vmatpush2.bf16.msra.mxu0 0
  %5607 = vmatprep.subr.bf16.mxu0 0
  %5608 = vmatpush2.bf16.msra.mxu0 0
  %5609 = vmatprep.subr.bf16.mxu0 0
  %5610 = vmatpush2.bf16.msra.mxu0 0
  %5611 = vmatprep.mubr.bf16.mxu0 0
  %5612 = vmatmul.mubr.bf16.gmra.mxu0 %v5573
  %v5613 = vpop.f32.mrf.mxu0
  %v5614 = vadd.f32 %v5537, %v5613
  %v5615 = vpop.f32.mrf.mxu0
  %v5616 = vpop.f32.mrf.mxu0
  %v5617 = vadd.f32 %v5537, %v5616
  %v5618 = vpop.f32.mrf.mxu0
  %5619 = vdwg.mxu0
  %5620 = vst [vmem:[%s13] sm:$0xff] %v5614
  %5621 = vst [vmem:[%s13 + $0x8] sm:$0xff] %v5617
  %5622 = vmax.xlane.f32.xlu0 %v5614
  %v5623 = vpop.xlane.xlu0 %5622
  %5624 = vmax.xlane.f32.xlu0 %v5617
  %v5625 = vpop.xlane.xlu0 %5624
  %v5626 = vsub.f32 %v5614, %v5623
  %v5627 = vsub.f32 %v5617, %v5625
  %v5628 = vmul.f32 %v5626, 1.442695
  %v5629 = vpow.pop %v5628
  %v5630 = vmul.f32 %v5627, 1.442695
  %v5631 = vpow.pop %v5630
  %5632 = vadd.xlane.f32.xlu0 %v5629
  %v5633 = vpop.xlane.xlu0 %5632
  %5634 = vadd.xlane.f32.xlu0 %v5631
  %v5635 = vpop.xlane.xlu0 %5634
  %v5636 = vrcp.pop %v5633
  %v5637 = vmul.f32 %v5629, %v5636
  %v5638 = vrcp.pop %v5635
  %v5639 = vmul.f32 %v5631, %v5638
  %5640 = vst [vmem:[%s14] sm:$0xff] %v5637
  %5641 = vst [vmem:[%s14 + $0x8] sm:$0xff] %v5639
  // Predicated region
  $region54: #{lenet5_forward.1} parent=0 // pred_check
    _
  $region55: #{lenet5_forward.1} parent=0 // pred_check_branch
    %5643 = sbr.rel (0) target = $region57
  $region56: #{lenet5_forward.1} parent=0 // pred_region
    _
  $region57: #{lenet5_forward.1} parent=0 // pred_fallthru
    _
  // Predicated region
  $region58: #{lenet5_forward.1} parent=0 // pred_check
    _
  $region59: #{lenet5_forward.1} parent=0 // pred_check_branch
    %5645 = sbr.rel (0) target = $region61
  $region60: #{lenet5_forward.1} parent=0 // pred_region
    _
  $region61: #{lenet5_forward.1} parent=0 // pred_fallthru
    _
  // Predicated region
  $region62: #{lenet5_forward.1} parent=0 // pred_check
    _
  $region63: #{lenet5_forward.1} parent=0 // pred_check_branch
    %5647 = sbr.rel (0) target = $region65
  $region64: #{lenet5_forward.1} parent=0 // pred_region
    _
  $region65: #{lenet5_forward.1} parent=0 // pred_fallthru
    _
  // Predicated region
  $region66: #{lenet5_forward.1} parent=0 // pred_check
    _
  $region67: #{lenet5_forward.1} parent=0 // pred_check_branch
    %5649 = sbr.rel (0) target = $region69
  $region68: #{lenet5_forward.1} parent=0 // pred_region
    _
  $region69: #{lenet5_forward.1} parent=0 // pred_fallthru
    _

</llo_original>
